<compile_context>
chip_gen: v7x
topology: tpu7x:2x2x1
jax: 0.10.0
libtpu: 0.0.40
codegen_flags: <defaults>
</compile_context>

<pallas_src>
import jax
import jax.numpy as jnp
from jax.experimental import pallas as pl
from jax.experimental.pallas import tpu as pltpu

C0, C1, C2, C3 = 794, 1024, 512, 256
FEAT_COND = 10
NUM_CLASSES = 10

C0_PAD = 896      # 794 padded to a multiple of 128 (zero-padded W1 rows keep math exact)
DOUT_PAD = 128    # final logit width 1 padded to one lane width; column 0 is the real output
TILE_B_MAX = 256  # batch tile: fits v7x 64 MiB VMEM with bf16 weights, fills 2x256 MXU rows


def _round_up(x, m):
    return ((x + m - 1) // m) * m


def _disc_kernel(x_ref, w1_ref, b1_ref, w2_ref, b2_ref,
                 w3_ref, b3_ref, w4_ref, b4_ref,
                 feat_ref, d_ref):
    # x: (tile_b, 896) bf16; weights bf16; biases f32; accumulate in f32 on the MXU.
    x = x_ref[...]
    h = jnp.dot(x, w1_ref[...], preferred_element_type=jnp.float32) + b1_ref[...]
    h = jnp.where(h > 0, h, 0.2 * h)                      # LeakyReLU(0.2); Dropout == identity (eval)
    h = jnp.dot(h.astype(jnp.bfloat16), w2_ref[...],
                preferred_element_type=jnp.float32) + b2_ref[...]
    h = jnp.where(h > 0, h, 0.2 * h)
    h = jnp.dot(h.astype(jnp.bfloat16), w3_ref[...],
                preferred_element_type=jnp.float32) + b3_ref[...]
    h = jnp.where(h > 0, h, 0.2 * h)
    feat_ref[...] = h                                     # (tile_b, 256) f32
    logit = jnp.dot(h.astype(jnp.bfloat16), w4_ref[...],
                    preferred_element_type=jnp.float32) + b4_ref[...]
    d_ref[...] = jax.nn.sigmoid(logit)                    # (tile_b, 128) f32, column 0 is real


def init_params(key):
    ks = jax.random.split(key, 5)
    emb = jax.random.normal(ks[0], (NUM_CLASSES, FEAT_COND), jnp.float32)   # nn.Embedding(10, 10)

    def lin(k, fan_in, fan_out):
        kw, kb = jax.random.split(k)
        bound = 1.0 / jnp.sqrt(jnp.float32(fan_in))
        w = jax.random.uniform(kw, (fan_in, fan_out), jnp.float32, -bound, bound)
        b = jax.random.uniform(kb, (1, fan_out), jnp.float32, -bound, bound)
        return w, b

    w1, b1 = lin(ks[1], C0, C1)
    w2, b2 = lin(ks[2], C1, C2)
    w3, b3 = lin(ks[3], C2, C3)
    w4, b4 = lin(ks[4], C3, 1)

    # Kernel weights: bf16, W1 rows zero-padded 794->896, W4/b4 cols zero-padded 1->128.
    w1k = jnp.zeros((C0_PAD, C1), jnp.bfloat16).at[:C0, :].set(w1.astype(jnp.bfloat16))
    w2k = w2.astype(jnp.bfloat16)
    w3k = w3.astype(jnp.bfloat16)
    w4k = jnp.zeros((C3, DOUT_PAD), jnp.bfloat16).at[:, :1].set(w4.astype(jnp.bfloat16))
    b4p = jnp.zeros((1, DOUT_PAD), jnp.float32).at[:, :1].set(b4)

    return dict(emb=emb, w1k=w1k, b1=b1, w2k=w2k, b2=b2, w3k=w3k, b3=b3,
                w4k=w4k, b4p=b4p)


def discriminator_forward(params, sample, class_label):
    """sample: (B, 784) f32, class_label: (B,) int32 -> (feat (B,256) f32, d_sample (B,1) f32)."""
    B = sample.shape[0]
    # Embedding lookup + concat are cheap glue in plain JAX.
    cond = jnp.take(params["emb"], class_label, axis=0)                        # (B, 10)
    x = jnp.concatenate([sample.astype(jnp.float32), cond], axis=1)            # (B, 794)
    x = x.astype(jnp.bfloat16)

    b_pad8 = _round_up(B, 8)
    tile_b = min(TILE_B_MAX, b_pad8)
    B_pad = _round_up(b_pad8, tile_b)
    x_pad = jnp.pad(x, ((0, B_pad - B), (0, C0_PAD - C0)))                     # (B_pad, 896) bf16

    w_elems = C0_PAD * C1 + C1 * C2 + C2 * C3 + C3 * DOUT_PAD
    cost = pl.CostEstimate(
        flops=2 * B_pad * w_elems,
        transcendentals=B_pad * DOUT_PAD,
        bytes_accessed=(x_pad.size * 2 + w_elems * 2
                        + (C1 + C2 + C3 + DOUT_PAD) * 4
                        + B_pad * C3 * 4 + B_pad * DOUT_PAD * 4),
    )

    grid_spec = pltpu.PrefetchScalarGridSpec(
        num_scalar_prefetch=0,
        grid=(B_pad // tile_b,),
        in_specs=[
            pl.BlockSpec((tile_b, C0_PAD), lambda i: (i, 0)),     # x: batch-tiled
            pl.BlockSpec((C0_PAD, C1), lambda i: (0, 0)),         # weights: constant block,
            pl.BlockSpec((1, C1), lambda i: (0, 0)),              # stay VMEM-resident across
            pl.BlockSpec((C1, C2), lambda i: (0, 0)),             # grid steps
            pl.BlockSpec((1, C2), lambda i: (0, 0)),
            pl.BlockSpec((C2, C3), lambda i: (0, 0)),
            pl.BlockSpec((1, C3), lambda i: (0, 0)),
            pl.BlockSpec((C3, DOUT_PAD), lambda i: (0, 0)),
            pl.BlockSpec((1, DOUT_PAD), lambda i: (0, 0)),
        ],
        out_specs=(
            pl.BlockSpec((tile_b, C3), lambda i: (i, 0)),
            pl.BlockSpec((tile_b, DOUT_PAD), lambda i: (i, 0)),
        ),
    )

    feat_pad, d_pad = pl.pallas_call(
        _disc_kernel,
        out_shape=(jax.ShapeDtypeStruct((B_pad, C3), jnp.float32),
                   jax.ShapeDtypeStruct((B_pad, DOUT_PAD), jnp.float32)),
        grid_spec=grid_spec,
        compiler_params=pltpu.CompilerParams(
            dimension_semantics=("parallel",),
            vmem_limit_bytes=24 << 20),
        cost_estimate=cost,
    )(x_pad, params["w1k"], params["b1"], params["w2k"], params["b2"],
      params["w3k"], params["b3"], params["w4k"], params["b4p"])

    return feat_pad[:B], d_pad[:B, :1]


def _reference_forward(params, sample, class_label):
    """Pure-JAX reference with the same bf16 weight/activation quantization (f32 math)."""
    hp = jax.lax.Precision.HIGHEST
    bf = lambda a: a.astype(jnp.bfloat16).astype(jnp.float32)
    lrelu = lambda h: jnp.where(h > 0, h, 0.2 * h)

    cond = jnp.take(params["emb"], class_label, axis=0)
    x = bf(jnp.concatenate([sample.astype(jnp.float32), cond], axis=1))
    w1 = params["w1k"][:C0, :].astype(jnp.float32)
    w2 = params["w2k"].astype(jnp.float32)
    w3 = params["w3k"].astype(jnp.float32)
    w4 = params["w4k"][:, :1].astype(jnp.float32)

    h = lrelu(jnp.dot(x, w1, precision=hp) + params["b1"])
    h = lrelu(jnp.dot(bf(h), w2, precision=hp) + params["b2"])
    feat = lrelu(jnp.dot(bf(h), w3, precision=hp) + params["b3"])
    d = jax.nn.sigmoid(jnp.dot(bf(feat), w4, precision=hp) + params["b4p"][:, :1])
    return feat, d


if __name__ == "__main__":
    key = jax.random.PRNGKey(0)
    k_param, k_sample, k_label = jax.random.split(key, 3)

    params = init_params(k_param)

    B = 2
    sample = jax.random.normal(k_sample, (B, 784), jnp.float32)
    class_label = jax.random.randint(k_label, (B,), 0, NUM_CLASSES, jnp.int32)

    fwd = jax.jit(discriminator_forward)
    feat, d_sample = jax.block_until_ready(fwd(params, sample, class_label))

    feat_ref, d_ref = _reference_forward(params, sample, class_label)
    assert feat.shape == (B, 256) and d_sample.shape == (B, 1)
    assert jnp.allclose(feat, feat_ref, atol=2e-3, rtol=2e-3)
    assert jnp.allclose(d_sample, d_ref, atol=2e-3, rtol=2e-3)

    print("KERNEL_OK")
</pallas_src>

<mosaic_0001>
module attributes {stable_mosaic.version = 11 : i64} {
  func.func @_disc_kernel(%arg0: i32, %arg1: memref<8x896xbf16, #tpu.memory_space<vmem>>, %arg2: memref<896x1024xbf16, #tpu.memory_space<vmem>>, %arg3: memref<1x1024xf32, #tpu.memory_space<vmem>>, %arg4: memref<1024x512xbf16, #tpu.memory_space<vmem>>, %arg5: memref<1x512xf32, #tpu.memory_space<vmem>>, %arg6: memref<512x256xbf16, #tpu.memory_space<vmem>>, %arg7: memref<1x256xf32, #tpu.memory_space<vmem>>, %arg8: memref<256x128xbf16, #tpu.memory_space<vmem>>, %arg9: memref<1x128xf32, #tpu.memory_space<vmem>>, %arg10: memref<8x256xf32, #tpu.memory_space<vmem>>, %arg11: memref<8x128xf32, #tpu.memory_space<vmem>>) attributes {dimension_semantics = [#tpu.dimension_semantics<parallel>], iteration_bounds = array<i64: 1>, scalar_prefetch = 0 : i64, scratch_operands = 0 : i64, tpu.core_type = #tpu.core_type<tc>, window_params = [{transform_indices = @transform_0, window_bounds = array<i64: 8, 896>}, {pipeline_mode = #tpu.pipeline_mode<synchronous>, transform_indices = @transform_1, window_bounds = array<i64: 896, 1024>}, {pipeline_mode = #tpu.pipeline_mode<synchronous>, transform_indices = @transform_2, window_bounds = array<i64: 1, 1024>}, {pipeline_mode = #tpu.pipeline_mode<synchronous>, transform_indices = @transform_3, window_bounds = array<i64: 1024, 512>}, {pipeline_mode = #tpu.pipeline_mode<synchronous>, transform_indices = @transform_4, window_bounds = array<i64: 1, 512>}, {pipeline_mode = #tpu.pipeline_mode<synchronous>, transform_indices = @transform_5, window_bounds = array<i64: 512, 256>}, {pipeline_mode = #tpu.pipeline_mode<synchronous>, transform_indices = @transform_6, window_bounds = array<i64: 1, 256>}, {pipeline_mode = #tpu.pipeline_mode<synchronous>, transform_indices = @transform_7, window_bounds = array<i64: 256, 128>}, {pipeline_mode = #tpu.pipeline_mode<synchronous>, transform_indices = @transform_8, window_bounds = array<i64: 1, 128>}, {transform_indices = @transform_9, window_bounds = array<i64: 8, 256>}, {transform_indices = @transform_10, window_bounds = array<i64: 8, 128>}]} {
    %c0 = arith.constant 0 : index
    %c0_0 = arith.constant 0 : index
    %0 = vector.load %arg1[%c0, %c0_0] : memref<8x896xbf16, #tpu.memory_space<vmem>>, vector<8x896xbf16>
    %c0_1 = arith.constant 0 : index
    %c0_2 = arith.constant 0 : index
    %1 = vector.load %arg2[%c0_1, %c0_2] : memref<896x1024xbf16, #tpu.memory_space<vmem>>, vector<896x1024xbf16>
    %cst = arith.constant dense<0.000000e+00> : vector<8x1024xf32>
    %2 = tpu.matmul %0, %1, %cst {dimension_numbers = #tpu.dot_dimension_numbers<[1], [0], [0], [1], [0, 0, 1, 1], [], []>} : vector<8x896xbf16>, vector<896x1024xbf16>, vector<8x1024xf32> -> vector<8x1024xf32>
    %c0_3 = arith.constant 0 : index
    %c0_4 = arith.constant 0 : index
    %3 = vector.load %arg3[%c0_3, %c0_4] : memref<1x1024xf32, #tpu.memory_space<vmem>>, vector<1x1024xf32>
    %4 = vector.broadcast %3 : vector<1x1024xf32> to vector<8x1024xf32>
    %5 = arith.addf %2, %4 : vector<8x1024xf32>
    %cst_5 = arith.constant 0.000000e+00 : f32
    %6 = vector.broadcast %cst_5 : f32 to vector<8x1024xf32>
    %7 = arith.cmpf ogt, %5, %6 : vector<8x1024xf32>
    %cst_6 = arith.constant 2.000000e-01 : f32
    %8 = vector.broadcast %cst_6 : f32 to vector<8x1024xf32>
    %9 = arith.mulf %8, %5 : vector<8x1024xf32>
    %10 = arith.select %7, %5, %9 : vector<8x1024xi1>, vector<8x1024xf32>
    %11 = arith.truncf %10 : vector<8x1024xf32> to vector<8x1024xbf16>
    %c0_7 = arith.constant 0 : index
    %c0_8 = arith.constant 0 : index
    %12 = vector.load %arg4[%c0_7, %c0_8] : memref<1024x512xbf16, #tpu.memory_space<vmem>>, vector<1024x512xbf16>
    %cst_9 = arith.constant dense<0.000000e+00> : vector<8x512xf32>
    %13 = tpu.matmul %11, %12, %cst_9 {dimension_numbers = #tpu.dot_dimension_numbers<[1], [0], [0], [1], [0, 0, 1, 1], [], []>} : vector<8x1024xbf16>, vector<1024x512xbf16>, vector<8x512xf32> -> vector<8x512xf32>
    %c0_10 = arith.constant 0 : index
    %c0_11 = arith.constant 0 : index
    %14 = vector.load %arg5[%c0_10, %c0_11] : memref<1x512xf32, #tpu.memory_space<vmem>>, vector<1x512xf32>
    %15 = vector.broadcast %14 : vector<1x512xf32> to vector<8x512xf32>
    %16 = arith.addf %13, %15 : vector<8x512xf32>
    %cst_12 = arith.constant 0.000000e+00 : f32
    %17 = vector.broadcast %cst_12 : f32 to vector<8x512xf32>
    %18 = arith.cmpf ogt, %16, %17 : vector<8x512xf32>
    %cst_13 = arith.constant 2.000000e-01 : f32
    %19 = vector.broadcast %cst_13 : f32 to vector<8x512xf32>
    %20 = arith.mulf %19, %16 : vector<8x512xf32>
    %21 = arith.select %18, %16, %20 : vector<8x512xi1>, vector<8x512xf32>
    %22 = arith.truncf %21 : vector<8x512xf32> to vector<8x512xbf16>
    %c0_14 = arith.constant 0 : index
    %c0_15 = arith.constant 0 : index
    %23 = vector.load %arg6[%c0_14, %c0_15] : memref<512x256xbf16, #tpu.memory_space<vmem>>, vector<512x256xbf16>
    %cst_16 = arith.constant dense<0.000000e+00> : vector<8x256xf32>
    %24 = tpu.matmul %22, %23, %cst_16 {dimension_numbers = #tpu.dot_dimension_numbers<[1], [0], [0], [1], [0, 0, 1, 1], [], []>} : vector<8x512xbf16>, vector<512x256xbf16>, vector<8x256xf32> -> vector<8x256xf32>
    %c0_17 = arith.constant 0 : index
    %c0_18 = arith.constant 0 : index
    %25 = vector.load %arg7[%c0_17, %c0_18] : memref<1x256xf32, #tpu.memory_space<vmem>>, vector<1x256xf32>
    %26 = vector.broadcast %25 : vector<1x256xf32> to vector<8x256xf32>
    %27 = arith.addf %24, %26 : vector<8x256xf32>
    %cst_19 = arith.constant 0.000000e+00 : f32
    %28 = vector.broadcast %cst_19 : f32 to vector<8x256xf32>
    %29 = arith.cmpf ogt, %27, %28 : vector<8x256xf32>
    %cst_20 = arith.constant 2.000000e-01 : f32
    %30 = vector.broadcast %cst_20 : f32 to vector<8x256xf32>
    %31 = arith.mulf %30, %27 : vector<8x256xf32>
    %32 = arith.select %29, %27, %31 : vector<8x256xi1>, vector<8x256xf32>
    %c0_21 = arith.constant 0 : index
    %c0_22 = arith.constant 0 : index
    %33 = vector.load %arg10[%c0_21, %c0_22] : memref<8x256xf32, #tpu.memory_space<vmem>>, vector<8x256xf32>
    tpu.vector_store %arg10[%c0_21, %c0_22], %32 {strides = array<i32>} : memref<8x256xf32, #tpu.memory_space<vmem>>, vector<8x256xf32>,
    %34 = arith.truncf %32 : vector<8x256xf32> to vector<8x256xbf16>
    %c0_23 = arith.constant 0 : index
    %c0_24 = arith.constant 0 : index
    %35 = vector.load %arg8[%c0_23, %c0_24] : memref<256x128xbf16, #tpu.memory_space<vmem>>, vector<256x128xbf16>
    %cst_25 = arith.constant dense<0.000000e+00> : vector<8x128xf32>
    %36 = tpu.matmul %34, %35, %cst_25 {dimension_numbers = #tpu.dot_dimension_numbers<[1], [0], [0], [1], [0, 0, 1, 1], [], []>} : vector<8x256xbf16>, vector<256x128xbf16>, vector<8x128xf32> -> vector<8x128xf32>
    %c0_26 = arith.constant 0 : index
    %c0_27 = arith.constant 0 : index
    %37 = vector.load %arg9[%c0_26, %c0_27] : memref<1x128xf32, #tpu.memory_space<vmem>>, vector<1x128xf32>
    %38 = vector.broadcast %37 : vector<1x128xf32> to vector<8x128xf32>
    %39 = arith.addf %36, %38 : vector<8x128xf32>
    %40 = arith.negf %39 : vector<8x128xf32>
    %41 = math.exp %40 : vector<8x128xf32>
    %cst_28 = arith.constant 1.000000e+00 : f32
    %42 = vector.broadcast %cst_28 : f32 to vector<8x128xf32>
    %43 = arith.addf %42, %41 : vector<8x128xf32>
    %44 = arith.divf %42, %43 : vector<8x128xf32>
    %c0_29 = arith.constant 0 : index
    %c0_30 = arith.constant 0 : index
    %45 = vector.load %arg11[%c0_29, %c0_30] : memref<8x128xf32, #tpu.memory_space<vmem>>, vector<8x128xf32>
    tpu.vector_store %arg11[%c0_29, %c0_30], %44 {strides = array<i32>} : memref<8x128xf32, #tpu.memory_space<vmem>>, vector<8x128xf32>,
    return
  }
  func.func @transform_0(%arg0: i32) -> (i32, i32) {
    %c0_i32 = arith.constant 0 : i32
    %c0_i32_0 = arith.constant 0 : i32
    return %arg0, %c0_i32 : i32, i32
  }
  func.func @transform_1(%arg0: i32) -> (i32, i32) {
    %c0_i32 = arith.constant 0 : i32
    %c0_i32_0 = arith.constant 0 : i32
    %c0_i32_1 = arith.constant 0 : i32
    return %c0_i32, %c0_i32_0 : i32, i32
  }
  func.func @transform_2(%arg0: i32) -> (i32, i32) {
    %c0_i32 = arith.constant 0 : i32
    %c0_i32_0 = arith.constant 0 : i32
    %c0_i32_1 = arith.constant 0 : i32
    return %c0_i32, %c0_i32_0 : i32, i32
  }
  func.func @transform_3(%arg0: i32) -> (i32, i32) {
    %c0_i32 = arith.constant 0 : i32
    %c0_i32_0 = arith.constant 0 : i32
    %c0_i32_1 = arith.constant 0 : i32
    return %c0_i32, %c0_i32_0 : i32, i32
  }
  func.func @transform_4(%arg0: i32) -> (i32, i32) {
    %c0_i32 = arith.constant 0 : i32
    %c0_i32_0 = arith.constant 0 : i32
    %c0_i32_1 = arith.constant 0 : i32
    return %c0_i32, %c0_i32_0 : i32, i32
  }
  func.func @transform_5(%arg0: i32) -> (i32, i32) {
    %c0_i32 = arith.constant 0 : i32
    %c0_i32_0 = arith.constant 0 : i32
    %c0_i32_1 = arith.constant 0 : i32
    return %c0_i32, %c0_i32_0 : i32, i32
  }
  func.func @transform_6(%arg0: i32) -> (i32, i32) {
    %c0_i32 = arith.constant 0 : i32
    %c0_i32_0 = arith.constant 0 : i32
    %c0_i32_1 = arith.constant 0 : i32
    return %c0_i32, %c0_i32_0 : i32, i32
  }
  func.func @transform_7(%arg0: i32) -> (i32, i32) {
    %c0_i32 = arith.constant 0 : i32
    %c0_i32_0 = arith.constant 0 : i32
    %c0_i32_1 = arith.constant 0 : i32
    return %c0_i32, %c0_i32_0 : i32, i32
  }
  func.func @transform_8(%arg0: i32) -> (i32, i32) {
    %c0_i32 = arith.constant 0 : i32
    %c0_i32_0 = arith.constant 0 : i32
    %c0_i32_1 = arith.constant 0 : i32
    return %c0_i32, %c0_i32_0 : i32, i32
  }
  func.func @transform_9(%arg0: i32) -> (i32, i32) {
    %c0_i32 = arith.constant 0 : i32
    %c0_i32_0 = arith.constant 0 : i32
    return %arg0, %c0_i32 : i32, i32
  }
  func.func @transform_10(%arg0: i32) -> (i32, i32) {
    %c0_i32 = arith.constant 0 : i32
    %c0_i32_0 = arith.constant 0 : i32
    return %arg0, %c0_i32 : i32, i32
  }
}

</mosaic_0001>

<llo_original>
// kernel: discriminator_forward.1
$region0: #{discriminator_forward.1}
  #allocation0 [shape = 'u32[]', space=smem, size = 0x4, offset = 0x4, fixed_abs, tag = 'smem constant byte address 0x4 - core index']
  #allocation1 [shape = 'u32[144,128]{1,0:T(1,128)}', space=vmem, size = 0x12000, scoped, tag = 'internal scratch']
  %s0 = inlined_call_operand.vmem [shape: bf16[8,896], index: 0, kind: input, shape index: {}]
  %s1 = inlined_call_operand.hbm [shape: bf16[896,1024], index: 1, kind: input, shape index: {}]
  %s2 = inlined_call_operand.hbm [shape: f32[1,1024], index: 2, kind: input, shape index: {}]
  %s3 = inlined_call_operand.hbm [shape: bf16[1024,512], index: 3, kind: input, shape index: {}]
  %s4 = inlined_call_operand.hbm [shape: f32[1,512], index: 4, kind: input, shape index: {}]
  %s5 = inlined_call_operand.hbm [shape: bf16[512,256], index: 5, kind: input, shape index: {}]
  %s6 = inlined_call_operand.hbm [shape: f32[1,256], index: 6, kind: input, shape index: {}]
  %s7 = inlined_call_operand.hbm [shape: bf16[256,128], index: 7, kind: input, shape index: {}]
  %s8 = inlined_call_operand.hbm [shape: f32[1,128], index: 8, kind: input, shape index: {}]
  %s9 = inlined_call_operand.vmem [shape: f32[8,256], index: 9, kind: output, shape index: {0}]
  %s10 = inlined_call_operand.vmem [shape: f32[8,128], index: 10, kind: output, shape index: {1}]
  %11 = xla_tuple %s9, %s10
  %s12 = sld [smem:[#allocation0]]
  $region86: #{discriminator_forward.1} parent=0
    _
  %s14 = ssub.s32 1, %s12
  %s15 = scalar_select 0, %s14, %s12
  $region1: #{discriminator_forward.1} parent=0
    #allocation2 [shape = 'u8[1835008]{0}', space=vmem, size = 0x1c0000, scoped, tag = 'input window, operand 1, single buffered']
    #allocation3 [shape = 's32[1]{0}', space=sflag, size = 0x4, scoped, tag = 'scoped memory for discriminator_forward.1']
    #allocation4 [shape = 'u8[4096]{0}', space=vmem, size = 0x1000, scoped, tag = 'input window, operand 2, single buffered']
    #allocation5 [shape = 's32[1]{0}', space=sflag, size = 0x4, scoped, tag = 'scoped memory for discriminator_forward.1']
    #allocation6 [shape = 'u8[1048576]{0}', space=vmem, size = 0x100000, scoped, tag = 'input window, operand 3, single buffered']
    #allocation7 [shape = 'u8[2048]{0}', space=vmem, size = 0x800, scoped, tag = 'input window, operand 4, single buffered']
    #allocation8 [shape = 's32[1]{0}', space=sflag, size = 0x4, scoped, tag = 'scoped memory for discriminator_forward.1']
    #allocation9 [shape = 'u8[262144]{0}', space=vmem, size = 0x40000, scoped, tag = 'input window, operand 5, single buffered']
    #allocation10 [shape = 'u8[1024]{0}', space=vmem, size = 0x400, scoped, tag = 'input window, operand 6, single buffered']
    #allocation11 [shape = 's32[1]{0}', space=sflag, size = 0x4, scoped, tag = 'scoped memory for discriminator_forward.1']
    #allocation12 [shape = 'u8[65536]{0}', space=vmem, size = 0x10000, scoped, tag = 'input window, operand 7, single buffered']
    #allocation13 [shape = 'u8[512]{0}', space=vmem, size = 0x400, scoped, tag = 'input window, operand 8, single buffered']
    #allocation14 [shape = 's32[1]{0}', space=sflag, size = 0x4, scoped, tag = 'scoped memory for discriminator_forward.1']
    %16 = vsyncpa [#allocation3], 0
    %17 = vsyncpa [#allocation5], 0
    %18 = vsyncpa [#allocation8], 0
    %19 = vsyncpa [#allocation11], 0
    %20 = vsyncpa [#allocation14], 0
    // Predicated region
    $region2: #{discriminator_forward.1} parent=1 // pred_check
      _
    $region3: #{discriminator_forward.1} parent=1 // pred_check_branch
      %22 = sbr.rel (0) target = $region5
    $region4: #{discriminator_forward.1} parent=1 // pred_region
      _
    $region5: #{discriminator_forward.1} parent=1 // pred_fallthru
      _
    // Predicated region
    $region6: #{discriminator_forward.1} parent=1 // pred_check
      _
    $region7: #{discriminator_forward.1} parent=1 // pred_check_branch
      %24 = sbr.rel (0) target = $region9
    $region8: #{discriminator_forward.1} parent=1 // pred_region
      %s26 = ssub.s32 57344, 57344
      %27 = vsyncadd [#allocation3], %s26
      %s28 = sshll.u32 [#allocation2], 4
      %s29 = int_to_ptr.vmem [resolvable:$true] %s28
      %34 = dma.hbm_to_vmem [thread:$0]  %s1, 57344, %s29, [#allocation3], 512, 512, 32
    $region9: #{discriminator_forward.1} parent=1 // pred_fallthru
      _
    // Predicated region
    $region10: #{discriminator_forward.1} parent=1 // pred_check
      _
    $region11: #{discriminator_forward.1} parent=1 // pred_check_branch
      %36 = sbr.rel (0) target = $region13
    $region12: #{discriminator_forward.1} parent=1 // pred_region
      %s38 = ssub.s32 128, 128
      %39 = vsyncadd [#allocation5], %s38
      %s41 = sshll.u32 [#allocation4], 4
      %s42 = int_to_ptr.vmem [resolvable:$true] %s41
      %44 = dma.hbm_to_vmem [thread:$0]  %s2, 128, %s42, [#allocation5]
    $region13: #{discriminator_forward.1} parent=1 // pred_fallthru
      _
    // Predicated region
    $region14: #{discriminator_forward.1} parent=1 // pred_check
      _
    $region15: #{discriminator_forward.1} parent=1 // pred_check_branch
      %46 = sbr.rel (0) target = $region17
    $region16: #{discriminator_forward.1} parent=1 // pred_region
      %s48 = ssub.s32 32768, 32768
      %49 = vsyncadd [#allocation5], %s48
      %s50 = sshll.u32 [#allocation6], 4
      %s51 = int_to_ptr.vmem [resolvable:$true] %s50
      %56 = dma.hbm_to_vmem [thread:$0]  %s3, 32768, %s51, [#allocation5], 256, 256, 16
    $region17: #{discriminator_forward.1} parent=1 // pred_fallthru
      _
    // Predicated region
    $region18: #{discriminator_forward.1} parent=1 // pred_check
      _
    $region19: #{discriminator_forward.1} parent=1 // pred_check_branch
      %58 = sbr.rel (0) target = $region21
    $region20: #{discriminator_forward.1} parent=1 // pred_region
      %s60 = ssub.s32 64, 64
      %61 = vsyncadd [#allocation8], %s60
      %s63 = sshll.u32 [#allocation7], 4
      %s64 = int_to_ptr.vmem [resolvable:$true] %s63
      %66 = dma.hbm_to_vmem [thread:$0]  %s4, 64, %s64, [#allocation8]
    $region21: #{discriminator_forward.1} parent=1 // pred_fallthru
      _
    // Predicated region
    $region22: #{discriminator_forward.1} parent=1 // pred_check
      _
    $region23: #{discriminator_forward.1} parent=1 // pred_check_branch
      %68 = sbr.rel (0) target = $region25
    $region24: #{discriminator_forward.1} parent=1 // pred_region
      %s70 = ssub.s32 8192, 8192
      %71 = vsyncadd [#allocation8], %s70
      %s72 = sshll.u32 [#allocation9], 4
      %s73 = int_to_ptr.vmem [resolvable:$true] %s72
      %78 = dma.hbm_to_vmem [thread:$0]  %s5, 8192, %s73, [#allocation8], 128, 128, 8
    $region25: #{discriminator_forward.1} parent=1 // pred_fallthru
      _
    // Predicated region
    $region26: #{discriminator_forward.1} parent=1 // pred_check
      _
    $region27: #{discriminator_forward.1} parent=1 // pred_check_branch
      %80 = sbr.rel (0) target = $region29
    $region28: #{discriminator_forward.1} parent=1 // pred_region
      %s82 = ssub.s32 32, 32
      %83 = vsyncadd [#allocation11], %s82
      %s85 = sshll.u32 [#allocation10], 4
      %s86 = int_to_ptr.vmem [resolvable:$true] %s85
      %88 = dma.hbm_to_vmem [thread:$0]  %s6, 32, %s86, [#allocation11]
    $region29: #{discriminator_forward.1} parent=1 // pred_fallthru
      _
    // Predicated region
    $region30: #{discriminator_forward.1} parent=1 // pred_check
      _
    $region31: #{discriminator_forward.1} parent=1 // pred_check_branch
      %90 = sbr.rel (0) target = $region33
    $region32: #{discriminator_forward.1} parent=1 // pred_region
      %s92 = ssub.s32 2048, 2048
      %93 = vsyncadd [#allocation11], %s92
      %s94 = sshll.u32 [#allocation12], 4
      %s95 = int_to_ptr.vmem [resolvable:$true] %s94
      %100 = dma.hbm_to_vmem [thread:$0]  %s7, 2048, %s95, [#allocation11], 64, 64, 4
    $region33: #{discriminator_forward.1} parent=1 // pred_fallthru
      _
    // Predicated region
    $region34: #{discriminator_forward.1} parent=1 // pred_check
      _
    $region35: #{discriminator_forward.1} parent=1 // pred_check_branch
      %102 = sbr.rel (0) target = $region37
    $region36: #{discriminator_forward.1} parent=1 // pred_region
      %s104 = ssub.s32 16, 16
      %105 = vsyncadd [#allocation14], %s104
      %s107 = sshll.u32 [#allocation13], 4
      %s108 = int_to_ptr.vmem [resolvable:$true] %s107
      %110 = dma.hbm_to_vmem [thread:$0]  %s8, 16, %s108, [#allocation14]
    $region37: #{discriminator_forward.1} parent=1 // pred_fallthru
      _
    // Predicated region
    $region38: #{discriminator_forward.1} parent=1 // pred_check
      _
    $region39: #{discriminator_forward.1} parent=1 // pred_check_branch
      %112 = sbr.rel (0) target = $region41
    $region40: #{discriminator_forward.1} parent=1 // pred_region
      %113 = dma.done [#allocation3], 57344
    $region41: #{discriminator_forward.1} parent=1 // pred_fallthru
      _
    // Predicated region
    $region42: #{discriminator_forward.1} parent=1 // pred_check
      _
    $region43: #{discriminator_forward.1} parent=1 // pred_check_branch
      %115 = sbr.rel (0) target = $region45
    $region44: #{discriminator_forward.1} parent=1 // pred_region
      %116 = dma.done [#allocation5], 128
    $region45: #{discriminator_forward.1} parent=1 // pred_fallthru
      _
    // Predicated region
    $region46: #{discriminator_forward.1} parent=1 // pred_check
      _
    $region47: #{discriminator_forward.1} parent=1 // pred_check_branch
      %118 = sbr.rel (0) target = $region49
    $region48: #{discriminator_forward.1} parent=1 // pred_region
      %119 = dma.done [#allocation5], 32768
    $region49: #{discriminator_forward.1} parent=1 // pred_fallthru
      _
    // Predicated region
    $region50: #{discriminator_forward.1} parent=1 // pred_check
      _
    $region51: #{discriminator_forward.1} parent=1 // pred_check_branch
      %121 = sbr.rel (0) target = $region53
    $region52: #{discriminator_forward.1} parent=1 // pred_region
      %122 = dma.done [#allocation8], 64
    $region53: #{discriminator_forward.1} parent=1 // pred_fallthru
      _
    // Predicated region
    $region54: #{discriminator_forward.1} parent=1 // pred_check
      _
    $region55: #{discriminator_forward.1} parent=1 // pred_check_branch
      %124 = sbr.rel (0) target = $region57
    $region56: #{discriminator_forward.1} parent=1 // pred_region
      %125 = dma.done [#allocation8], 8192
    $region57: #{discriminator_forward.1} parent=1 // pred_fallthru
      _
    // Predicated region
    $region58: #{discriminator_forward.1} parent=1 // pred_check
      _
    $region59: #{discriminator_forward.1} parent=1 // pred_check_branch
      %127 = sbr.rel (0) target = $region61
    $region60: #{discriminator_forward.1} parent=1 // pred_region
      %128 = dma.done [#allocation11], 32
    $region61: #{discriminator_forward.1} parent=1 // pred_fallthru
      _
    // Predicated region
    $region62: #{discriminator_forward.1} parent=1 // pred_check
      _
    $region63: #{discriminator_forward.1} parent=1 // pred_check_branch
      %130 = sbr.rel (0) target = $region65
    $region64: #{discriminator_forward.1} parent=1 // pred_region
      %131 = dma.done [#allocation11], 2048
    $region65: #{discriminator_forward.1} parent=1 // pred_fallthru
      _
    // Predicated region
    $region66: #{discriminator_forward.1} parent=1 // pred_check
      _
    $region67: #{discriminator_forward.1} parent=1 // pred_check_branch
      %133 = sbr.rel (0) target = $region69
    $region68: #{discriminator_forward.1} parent=1 // pred_region
      %134 = dma.done [#allocation14], 16
    $region69: #{discriminator_forward.1} parent=1 // pred_fallthru
      _
    %v136 = vld [vmem:[%s0] sm:$0xff]
    %v137 = vld [vmem:[%s0 + $0x8] sm:$0xff]
    %v138 = vld [vmem:[%s0 + $0x10] sm:$0xff]
    %v139 = vld [vmem:[%s0 + $0x18] sm:$0xf]
    %v140 = vld [vmem:[#allocation2] sm:$0xff]
    %v141 = vld [vmem:[#allocation2 + $0x8] sm:$0xff]
    %v142 = vld [vmem:[#allocation2 + $0x10] sm:$0xff]
    %v143 = vld [vmem:[#allocation2 + $0x18] sm:$0xff]
    %v144 = vld [vmem:[#allocation2 + $0x20] sm:$0xff]
    %v145 = vld [vmem:[#allocation2 + $0x28] sm:$0xff]
    %v146 = vld [vmem:[#allocation2 + $0x30] sm:$0xff]
    %v147 = vld [vmem:[#allocation2 + $0x38] sm:$0xff]
    %v148 = vld [vmem:[#allocation2 + $0x40] sm:$0xff]
    %v149 = vld [vmem:[#allocation2 + $0x48] sm:$0xff]
    %v150 = vld [vmem:[#allocation2 + $0x50] sm:$0xff]
    %v151 = vld [vmem:[#allocation2 + $0x58] sm:$0xff]
    %v152 = vld [vmem:[#allocation2 + $0x60] sm:$0xff]
    %v153 = vld [vmem:[#allocation2 + $0x68] sm:$0xff]
    %v154 = vld [vmem:[#allocation2 + $0x70] sm:$0xff]
    %v155 = vld [vmem:[#allocation2 + $0x78] sm:$0xff]
    %v156 = vld [vmem:[#allocation2 + $0x80] sm:$0xff]
    %v157 = vld [vmem:[#allocation2 + $0x88] sm:$0xff]
    %v158 = vld [vmem:[#allocation2 + $0x90] sm:$0xff]
    %v159 = vld [vmem:[#allocation2 + $0x98] sm:$0xff]
    %v160 = vld [vmem:[#allocation2 + $0xa0] sm:$0xff]
    %v161 = vld [vmem:[#allocation2 + $0xa8] sm:$0xff]
    %v162 = vld [vmem:[#allocation2 + $0xb0] sm:$0xff]
    %v163 = vld [vmem:[#allocation2 + $0xb8] sm:$0xff]
    %v164 = vld [vmem:[#allocation2 + $0xc0] sm:$0xff]
    %v165 = vld [vmem:[#allocation2 + $0xc8] sm:$0xff]
    %v166 = vld [vmem:[#allocation2 + $0xd0] sm:$0xff]
    %v167 = vld [vmem:[#allocation2 + $0xd8] sm:$0xff]
    %v168 = vld [vmem:[#allocation2 + $0xe0] sm:$0xff]
    %v169 = vld [vmem:[#allocation2 + $0xe8] sm:$0xff]
    %v170 = vld [vmem:[#allocation2 + $0xf0] sm:$0xff]
    %v171 = vld [vmem:[#allocation2 + $0xf8] sm:$0xff]
    %v172 = vld [vmem:[#allocation2 + $0x100] sm:$0xff]
    %v173 = vld [vmem:[#allocation2 + $0x108] sm:$0xff]
    %v174 = vld [vmem:[#allocation2 + $0x110] sm:$0xff]
    %v175 = vld [vmem:[#allocation2 + $0x118] sm:$0xff]
    %v176 = vld [vmem:[#allocation2 + $0x120] sm:$0xff]
    %v177 = vld [vmem:[#allocation2 + $0x128] sm:$0xff]
    %v178 = vld [vmem:[#allocation2 + $0x130] sm:$0xff]
    %v179 = vld [vmem:[#allocation2 + $0x138] sm:$0xff]
    %v180 = vld [vmem:[#allocation2 + $0x140] sm:$0xff]
    %v181 = vld [vmem:[#allocation2 + $0x148] sm:$0xff]
    %v182 = vld [vmem:[#allocation2 + $0x150] sm:$0xff]
    %v183 = vld [vmem:[#allocation2 + $0x158] sm:$0xff]
    %v184 = vld [vmem:[#allocation2 + $0x160] sm:$0xff]
    %v185 = vld [vmem:[#allocation2 + $0x168] sm:$0xff]
    %v186 = vld [vmem:[#allocation2 + $0x170] sm:$0xff]
    %v187 = vld [vmem:[#allocation2 + $0x178] sm:$0xff]
    %v188 = vld [vmem:[#allocation2 + $0x180] sm:$0xff]
    %v189 = vld [vmem:[#allocation2 + $0x188] sm:$0xff]
    %v190 = vld [vmem:[#allocation2 + $0x190] sm:$0xff]
    %v191 = vld [vmem:[#allocation2 + $0x198] sm:$0xff]
    %v192 = vld [vmem:[#allocation2 + $0x1a0] sm:$0xff]
    %v193 = vld [vmem:[#allocation2 + $0x1a8] sm:$0xff]
    %v194 = vld [vmem:[#allocation2 + $0x1b0] sm:$0xff]
    %v195 = vld [vmem:[#allocation2 + $0x1b8] sm:$0xff]
    %v196 = vld [vmem:[#allocation2 + $0x1c0] sm:$0xff]
    %v197 = vld [vmem:[#allocation2 + $0x1c8] sm:$0xff]
    %v198 = vld [vmem:[#allocation2 + $0x1d0] sm:$0xff]
    %v199 = vld [vmem:[#allocation2 + $0x1d8] sm:$0xff]
    %v200 = vld [vmem:[#allocation2 + $0x1e0] sm:$0xff]
    %v201 = vld [vmem:[#allocation2 + $0x1e8] sm:$0xff]
    %v202 = vld [vmem:[#allocation2 + $0x1f0] sm:$0xff]
    %v203 = vld [vmem:[#allocation2 + $0x1f8] sm:$0xff]
    %v204 = vld [vmem:[#allocation2 + $0x200] sm:$0xff]
    %v205 = vld [vmem:[#allocation2 + $0x208] sm:$0xff]
    %v206 = vld [vmem:[#allocation2 + $0x210] sm:$0xff]
    %v207 = vld [vmem:[#allocation2 + $0x218] sm:$0xff]
    %v208 = vld [vmem:[#allocation2 + $0x220] sm:$0xff]
    %v209 = vld [vmem:[#allocation2 + $0x228] sm:$0xff]
    %v210 = vld [vmem:[#allocation2 + $0x230] sm:$0xff]
    %v211 = vld [vmem:[#allocation2 + $0x238] sm:$0xff]
    %v212 = vld [vmem:[#allocation2 + $0x240] sm:$0xff]
    %v213 = vld [vmem:[#allocation2 + $0x248] sm:$0xff]
    %v214 = vld [vmem:[#allocation2 + $0x250] sm:$0xff]
    %v215 = vld [vmem:[#allocation2 + $0x258] sm:$0xff]
    %v216 = vld [vmem:[#allocation2 + $0x260] sm:$0xff]
    %v217 = vld [vmem:[#allocation2 + $0x268] sm:$0xff]
    %v218 = vld [vmem:[#allocation2 + $0x270] sm:$0xff]
    %v219 = vld [vmem:[#allocation2 + $0x278] sm:$0xff]
    %v220 = vld [vmem:[#allocation2 + $0x280] sm:$0xff]
    %v221 = vld [vmem:[#allocation2 + $0x288] sm:$0xff]
    %v222 = vld [vmem:[#allocation2 + $0x290] sm:$0xff]
    %v223 = vld [vmem:[#allocation2 + $0x298] sm:$0xff]
    %v224 = vld [vmem:[#allocation2 + $0x2a0] sm:$0xff]
    %v225 = vld [vmem:[#allocation2 + $0x2a8] sm:$0xff]
    %v226 = vld [vmem:[#allocation2 + $0x2b0] sm:$0xff]
    %v227 = vld [vmem:[#allocation2 + $0x2b8] sm:$0xff]
    %v228 = vld [vmem:[#allocation2 + $0x2c0] sm:$0xff]
    %v229 = vld [vmem:[#allocation2 + $0x2c8] sm:$0xff]
    %v230 = vld [vmem:[#allocation2 + $0x2d0] sm:$0xff]
    %v231 = vld [vmem:[#allocation2 + $0x2d8] sm:$0xff]
    %v232 = vld [vmem:[#allocation2 + $0x2e0] sm:$0xff]
    %v233 = vld [vmem:[#allocation2 + $0x2e8] sm:$0xff]
    %v234 = vld [vmem:[#allocation2 + $0x2f0] sm:$0xff]
    %v235 = vld [vmem:[#allocation2 + $0x2f8] sm:$0xff]
    %v236 = vld [vmem:[#allocation2 + $0x300] sm:$0xff]
    %v237 = vld [vmem:[#allocation2 + $0x308] sm:$0xff]
    %v238 = vld [vmem:[#allocation2 + $0x310] sm:$0xff]
    %v239 = vld [vmem:[#allocation2 + $0x318] sm:$0xff]
    %v240 = vld [vmem:[#allocation2 + $0x320] sm:$0xff]
    %v241 = vld [vmem:[#allocation2 + $0x328] sm:$0xff]
    %v242 = vld [vmem:[#allocation2 + $0x330] sm:$0xff]
    %v243 = vld [vmem:[#allocation2 + $0x338] sm:$0xff]
    %v244 = vld [vmem:[#allocation2 + $0x340] sm:$0xff]
    %v245 = vld [vmem:[#allocation2 + $0x348] sm:$0xff]
    %v246 = vld [vmem:[#allocation2 + $0x350] sm:$0xff]
    %v247 = vld [vmem:[#allocation2 + $0x358] sm:$0xff]
    %v248 = vld [vmem:[#allocation2 + $0x360] sm:$0xff]
    %v249 = vld [vmem:[#allocation2 + $0x368] sm:$0xff]
    %v250 = vld [vmem:[#allocation2 + $0x370] sm:$0xff]
    %v251 = vld [vmem:[#allocation2 + $0x378] sm:$0xff]
    %v252 = vld [vmem:[#allocation2 + $0x380] sm:$0xff]
    %v253 = vld [vmem:[#allocation2 + $0x388] sm:$0xff]
    %v254 = vld [vmem:[#allocation2 + $0x390] sm:$0xff]
    %v255 = vld [vmem:[#allocation2 + $0x398] sm:$0xff]
    %v256 = vld [vmem:[#allocation2 + $0x3a0] sm:$0xff]
    %v257 = vld [vmem:[#allocation2 + $0x3a8] sm:$0xff]
    %v258 = vld [vmem:[#allocation2 + $0x3b0] sm:$0xff]
    %v259 = vld [vmem:[#allocation2 + $0x3b8] sm:$0xff]
    %v260 = vld [vmem:[#allocation2 + $0x3c0] sm:$0xff]
    %v261 = vld [vmem:[#allocation2 + $0x3c8] sm:$0xff]
    %v262 = vld [vmem:[#allocation2 + $0x3d0] sm:$0xff]
    %v263 = vld [vmem:[#allocation2 + $0x3d8] sm:$0xff]
    %v264 = vld [vmem:[#allocation2 + $0x3e0] sm:$0xff]
    %v265 = vld [vmem:[#allocation2 + $0x3e8] sm:$0xff]
    %v266 = vld [vmem:[#allocation2 + $0x3f0] sm:$0xff]
    %v267 = vld [vmem:[#allocation2 + $0x3f8] sm:$0xff]
    %v268 = vld [vmem:[#allocation2 + $0x400] sm:$0xff]
    %v269 = vld [vmem:[#allocation2 + $0x408] sm:$0xff]
    %v270 = vld [vmem:[#allocation2 + $0x410] sm:$0xff]
    %v271 = vld [vmem:[#allocation2 + $0x418] sm:$0xff]
    %v272 = vld [vmem:[#allocation2 + $0x420] sm:$0xff]
    %v273 = vld [vmem:[#allocation2 + $0x428] sm:$0xff]
    %v274 = vld [vmem:[#allocation2 + $0x430] sm:$0xff]
    %v275 = vld [vmem:[#allocation2 + $0x438] sm:$0xff]
    %v276 = vld [vmem:[#allocation2 + $0x440] sm:$0xff]
    %v277 = vld [vmem:[#allocation2 + $0x448] sm:$0xff]
    %v278 = vld [vmem:[#allocation2 + $0x450] sm:$0xff]
    %v279 = vld [vmem:[#allocation2 + $0x458] sm:$0xff]
    %v280 = vld [vmem:[#allocation2 + $0x460] sm:$0xff]
    %v281 = vld [vmem:[#allocation2 + $0x468] sm:$0xff]
    %v282 = vld [vmem:[#allocation2 + $0x470] sm:$0xff]
    %v283 = vld [vmem:[#allocation2 + $0x478] sm:$0xff]
    %v284 = vld [vmem:[#allocation2 + $0x480] sm:$0xff]
    %v285 = vld [vmem:[#allocation2 + $0x488] sm:$0xff]
    %v286 = vld [vmem:[#allocation2 + $0x490] sm:$0xff]
    %v287 = vld [vmem:[#allocation2 + $0x498] sm:$0xff]
    %v288 = vld [vmem:[#allocation2 + $0x4a0] sm:$0xff]
    %v289 = vld [vmem:[#allocation2 + $0x4a8] sm:$0xff]
    %v290 = vld [vmem:[#allocation2 + $0x4b0] sm:$0xff]
    %v291 = vld [vmem:[#allocation2 + $0x4b8] sm:$0xff]
    %v292 = vld [vmem:[#allocation2 + $0x4c0] sm:$0xff]
    %v293 = vld [vmem:[#allocation2 + $0x4c8] sm:$0xff]
    %v294 = vld [vmem:[#allocation2 + $0x4d0] sm:$0xff]
    %v295 = vld [vmem:[#allocation2 + $0x4d8] sm:$0xff]
    %v296 = vld [vmem:[#allocation2 + $0x4e0] sm:$0xff]
    %v297 = vld [vmem:[#allocation2 + $0x4e8] sm:$0xff]
    %v298 = vld [vmem:[#allocation2 + $0x4f0] sm:$0xff]
    %v299 = vld [vmem:[#allocation2 + $0x4f8] sm:$0xff]
    %v300 = vld [vmem:[#allocation2 + $0x500] sm:$0xff]
    %v301 = vld [vmem:[#allocation2 + $0x508] sm:$0xff]
    %v302 = vld [vmem:[#allocation2 + $0x510] sm:$0xff]
    %v303 = vld [vmem:[#allocation2 + $0x518] sm:$0xff]
    %v304 = vld [vmem:[#allocation2 + $0x520] sm:$0xff]
    %v305 = vld [vmem:[#allocation2 + $0x528] sm:$0xff]
    %v306 = vld [vmem:[#allocation2 + $0x530] sm:$0xff]
    %v307 = vld [vmem:[#allocation2 + $0x538] sm:$0xff]
    %v308 = vld [vmem:[#allocation2 + $0x540] sm:$0xff]
    %v309 = vld [vmem:[#allocation2 + $0x548] sm:$0xff]
    %v310 = vld [vmem:[#allocation2 + $0x550] sm:$0xff]
    %v311 = vld [vmem:[#allocation2 + $0x558] sm:$0xff]
    %v312 = vld [vmem:[#allocation2 + $0x560] sm:$0xff]
    %v313 = vld [vmem:[#allocation2 + $0x568] sm:$0xff]
    %v314 = vld [vmem:[#allocation2 + $0x570] sm:$0xff]
    %v315 = vld [vmem:[#allocation2 + $0x578] sm:$0xff]
    %v316 = vld [vmem:[#allocation2 + $0x580] sm:$0xff]
    %v317 = vld [vmem:[#allocation2 + $0x588] sm:$0xff]
    %v318 = vld [vmem:[#allocation2 + $0x590] sm:$0xff]
    %v319 = vld [vmem:[#allocation2 + $0x598] sm:$0xff]
    %v320 = vld [vmem:[#allocation2 + $0x5a0] sm:$0xff]
    %v321 = vld [vmem:[#allocation2 + $0x5a8] sm:$0xff]
    %v322 = vld [vmem:[#allocation2 + $0x5b0] sm:$0xff]
    %v323 = vld [vmem:[#allocation2 + $0x5b8] sm:$0xff]
    %v324 = vld [vmem:[#allocation2 + $0x5c0] sm:$0xff]
    %v325 = vld [vmem:[#allocation2 + $0x5c8] sm:$0xff]
    %v326 = vld [vmem:[#allocation2 + $0x5d0] sm:$0xff]
    %v327 = vld [vmem:[#allocation2 + $0x5d8] sm:$0xff]
    %v328 = vld [vmem:[#allocation2 + $0x5e0] sm:$0xff]
    %v329 = vld [vmem:[#allocation2 + $0x5e8] sm:$0xff]
    %v330 = vld [vmem:[#allocation2 + $0x5f0] sm:$0xff]
    %v331 = vld [vmem:[#allocation2 + $0x5f8] sm:$0xff]
    %v332 = vld [vmem:[#allocation2 + $0x600] sm:$0xff]
    %v333 = vld [vmem:[#allocation2 + $0x608] sm:$0xff]
    %v334 = vld [vmem:[#allocation2 + $0x610] sm:$0xff]
    %v335 = vld [vmem:[#allocation2 + $0x618] sm:$0xff]
    %v336 = vld [vmem:[#allocation2 + $0x620] sm:$0xff]
    %v337 = vld [vmem:[#allocation2 + $0x628] sm:$0xff]
    %v338 = vld [vmem:[#allocation2 + $0x630] sm:$0xff]
    %v339 = vld [vmem:[#allocation2 + $0x638] sm:$0xff]
    %v340 = vld [vmem:[#allocation2 + $0x640] sm:$0xff]
    %v341 = vld [vmem:[#allocation2 + $0x648] sm:$0xff]
    %v342 = vld [vmem:[#allocation2 + $0x650] sm:$0xff]
    %v343 = vld [vmem:[#allocation2 + $0x658] sm:$0xff]
    %v344 = vld [vmem:[#allocation2 + $0x660] sm:$0xff]
    %v345 = vld [vmem:[#allocation2 + $0x668] sm:$0xff]
    %v346 = vld [vmem:[#allocation2 + $0x670] sm:$0xff]
    %v347 = vld [vmem:[#allocation2 + $0x678] sm:$0xff]
    %v348 = vld [vmem:[#allocation2 + $0x680] sm:$0xff]
    %v349 = vld [vmem:[#allocation2 + $0x688] sm:$0xff]
    %v350 = vld [vmem:[#allocation2 + $0x690] sm:$0xff]
    %v351 = vld [vmem:[#allocation2 + $0x698] sm:$0xff]
    %v352 = vld [vmem:[#allocation2 + $0x6a0] sm:$0xff]
    %v353 = vld [vmem:[#allocation2 + $0x6a8] sm:$0xff]
    %v354 = vld [vmem:[#allocation2 + $0x6b0] sm:$0xff]
    %v355 = vld [vmem:[#allocation2 + $0x6b8] sm:$0xff]
    %v356 = vld [vmem:[#allocation2 + $0x6c0] sm:$0xff]
    %v357 = vld [vmem:[#allocation2 + $0x6c8] sm:$0xff]
    %v358 = vld [vmem:[#allocation2 + $0x6d0] sm:$0xff]
    %v359 = vld [vmem:[#allocation2 + $0x6d8] sm:$0xff]
    %v360 = vld [vmem:[#allocation2 + $0x6e0] sm:$0xff]
    %v361 = vld [vmem:[#allocation2 + $0x6e8] sm:$0xff]
    %v362 = vld [vmem:[#allocation2 + $0x6f0] sm:$0xff]
    %v363 = vld [vmem:[#allocation2 + $0x6f8] sm:$0xff]
    %v364 = vld [vmem:[#allocation2 + $0x700] sm:$0xff]
    %v365 = vld [vmem:[#allocation2 + $0x708] sm:$0xff]
    %v366 = vld [vmem:[#allocation2 + $0x710] sm:$0xff]
    %v367 = vld [vmem:[#allocation2 + $0x718] sm:$0xff]
    %v368 = vld [vmem:[#allocation2 + $0x720] sm:$0xff]
    %v369 = vld [vmem:[#allocation2 + $0x728] sm:$0xff]
    %v370 = vld [vmem:[#allocation2 + $0x730] sm:$0xff]
    %v371 = vld [vmem:[#allocation2 + $0x738] sm:$0xff]
    %v372 = vld [vmem:[#allocation2 + $0x740] sm:$0xff]
    %v373 = vld [vmem:[#allocation2 + $0x748] sm:$0xff]
    %v374 = vld [vmem:[#allocation2 + $0x750] sm:$0xff]
    %v375 = vld [vmem:[#allocation2 + $0x758] sm:$0xff]
    %v376 = vld [vmem:[#allocation2 + $0x760] sm:$0xff]
    %v377 = vld [vmem:[#allocation2 + $0x768] sm:$0xff]
    %v378 = vld [vmem:[#allocation2 + $0x770] sm:$0xff]
    %v379 = vld [vmem:[#allocation2 + $0x778] sm:$0xff]
    %v380 = vld [vmem:[#allocation2 + $0x780] sm:$0xff]
    %v381 = vld [vmem:[#allocation2 + $0x788] sm:$0xff]
    %v382 = vld [vmem:[#allocation2 + $0x790] sm:$0xff]
    %v383 = vld [vmem:[#allocation2 + $0x798] sm:$0xff]
    %v384 = vld [vmem:[#allocation2 + $0x7a0] sm:$0xff]
    %v385 = vld [vmem:[#allocation2 + $0x7a8] sm:$0xff]
    %v386 = vld [vmem:[#allocation2 + $0x7b0] sm:$0xff]
    %v387 = vld [vmem:[#allocation2 + $0x7b8] sm:$0xff]
    %v388 = vld [vmem:[#allocation2 + $0x7c0] sm:$0xff]
    %v389 = vld [vmem:[#allocation2 + $0x7c8] sm:$0xff]
    %v390 = vld [vmem:[#allocation2 + $0x7d0] sm:$0xff]
    %v391 = vld [vmem:[#allocation2 + $0x7d8] sm:$0xff]
    %v392 = vld [vmem:[#allocation2 + $0x7e0] sm:$0xff]
    %v393 = vld [vmem:[#allocation2 + $0x7e8] sm:$0xff]
    %v394 = vld [vmem:[#allocation2 + $0x7f0] sm:$0xff]
    %v395 = vld [vmem:[#allocation2 + $0x7f8] sm:$0xff]
    %v396 = vld [vmem:[#allocation2 + $0x800] sm:$0xff]
    %v397 = vld [vmem:[#allocation2 + $0x808] sm:$0xff]
    %v398 = vld [vmem:[#allocation2 + $0x810] sm:$0xff]
    %v399 = vld [vmem:[#allocation2 + $0x818] sm:$0xff]
    %v400 = vld [vmem:[#allocation2 + $0x820] sm:$0xff]
    %v401 = vld [vmem:[#allocation2 + $0x828] sm:$0xff]
    %v402 = vld [vmem:[#allocation2 + $0x830] sm:$0xff]
    %v403 = vld [vmem:[#allocation2 + $0x838] sm:$0xff]
    %v404 = vld [vmem:[#allocation2 + $0x840] sm:$0xff]
    %v405 = vld [vmem:[#allocation2 + $0x848] sm:$0xff]
    %v406 = vld [vmem:[#allocation2 + $0x850] sm:$0xff]
    %v407 = vld [vmem:[#allocation2 + $0x858] sm:$0xff]
    %v408 = vld [vmem:[#allocation2 + $0x860] sm:$0xff]
    %v409 = vld [vmem:[#allocation2 + $0x868] sm:$0xff]
    %v410 = vld [vmem:[#allocation2 + $0x870] sm:$0xff]
    %v411 = vld [vmem:[#allocation2 + $0x878] sm:$0xff]
    %v412 = vld [vmem:[#allocation2 + $0x880] sm:$0xff]
    %v413 = vld [vmem:[#allocation2 + $0x888] sm:$0xff]
    %v414 = vld [vmem:[#allocation2 + $0x890] sm:$0xff]
    %v415 = vld [vmem:[#allocation2 + $0x898] sm:$0xff]
    %v416 = vld [vmem:[#allocation2 + $0x8a0] sm:$0xff]
    %v417 = vld [vmem:[#allocation2 + $0x8a8] sm:$0xff]
    %v418 = vld [vmem:[#allocation2 + $0x8b0] sm:$0xff]
    %v419 = vld [vmem:[#allocation2 + $0x8b8] sm:$0xff]
    %v420 = vld [vmem:[#allocation2 + $0x8c0] sm:$0xff]
    %v421 = vld [vmem:[#allocation2 + $0x8c8] sm:$0xff]
    %v422 = vld [vmem:[#allocation2 + $0x8d0] sm:$0xff]
    %v423 = vld [vmem:[#allocation2 + $0x8d8] sm:$0xff]
    %v424 = vld [vmem:[#allocation2 + $0x8e0] sm:$0xff]
    %v425 = vld [vmem:[#allocation2 + $0x8e8] sm:$0xff]
    %v426 = vld [vmem:[#allocation2 + $0x8f0] sm:$0xff]
    %v427 = vld [vmem:[#allocation2 + $0x8f8] sm:$0xff]
    %v428 = vld [vmem:[#allocation2 + $0x900] sm:$0xff]
    %v429 = vld [vmem:[#allocation2 + $0x908] sm:$0xff]
    %v430 = vld [vmem:[#allocation2 + $0x910] sm:$0xff]
    %v431 = vld [vmem:[#allocation2 + $0x918] sm:$0xff]
    %v432 = vld [vmem:[#allocation2 + $0x920] sm:$0xff]
    %v433 = vld [vmem:[#allocation2 + $0x928] sm:$0xff]
    %v434 = vld [vmem:[#allocation2 + $0x930] sm:$0xff]
    %v435 = vld [vmem:[#allocation2 + $0x938] sm:$0xff]
    %v436 = vld [vmem:[#allocation2 + $0x940] sm:$0xff]
    %v437 = vld [vmem:[#allocation2 + $0x948] sm:$0xff]
    %v438 = vld [vmem:[#allocation2 + $0x950] sm:$0xff]
    %v439 = vld [vmem:[#allocation2 + $0x958] sm:$0xff]
    %v440 = vld [vmem:[#allocation2 + $0x960] sm:$0xff]
    %v441 = vld [vmem:[#allocation2 + $0x968] sm:$0xff]
    %v442 = vld [vmem:[#allocation2 + $0x970] sm:$0xff]
    %v443 = vld [vmem:[#allocation2 + $0x978] sm:$0xff]
    %v444 = vld [vmem:[#allocation2 + $0x980] sm:$0xff]
    %v445 = vld [vmem:[#allocation2 + $0x988] sm:$0xff]
    %v446 = vld [vmem:[#allocation2 + $0x990] sm:$0xff]
    %v447 = vld [vmem:[#allocation2 + $0x998] sm:$0xff]
    %v448 = vld [vmem:[#allocation2 + $0x9a0] sm:$0xff]
    %v449 = vld [vmem:[#allocation2 + $0x9a8] sm:$0xff]
    %v450 = vld [vmem:[#allocation2 + $0x9b0] sm:$0xff]
    %v451 = vld [vmem:[#allocation2 + $0x9b8] sm:$0xff]
    %v452 = vld [vmem:[#allocation2 + $0x9c0] sm:$0xff]
    %v453 = vld [vmem:[#allocation2 + $0x9c8] sm:$0xff]
    %v454 = vld [vmem:[#allocation2 + $0x9d0] sm:$0xff]
    %v455 = vld [vmem:[#allocation2 + $0x9d8] sm:$0xff]
    %v456 = vld [vmem:[#allocation2 + $0x9e0] sm:$0xff]
    %v457 = vld [vmem:[#allocation2 + $0x9e8] sm:$0xff]
    %v458 = vld [vmem:[#allocation2 + $0x9f0] sm:$0xff]
    %v459 = vld [vmem:[#allocation2 + $0x9f8] sm:$0xff]
    %v460 = vld [vmem:[#allocation2 + $0xa00] sm:$0xff]
    %v461 = vld [vmem:[#allocation2 + $0xa08] sm:$0xff]
    %v462 = vld [vmem:[#allocation2 + $0xa10] sm:$0xff]
    %v463 = vld [vmem:[#allocation2 + $0xa18] sm:$0xff]
    %v464 = vld [vmem:[#allocation2 + $0xa20] sm:$0xff]
    %v465 = vld [vmem:[#allocation2 + $0xa28] sm:$0xff]
    %v466 = vld [vmem:[#allocation2 + $0xa30] sm:$0xff]
    %v467 = vld [vmem:[#allocation2 + $0xa38] sm:$0xff]
    %v468 = vld [vmem:[#allocation2 + $0xa40] sm:$0xff]
    %v469 = vld [vmem:[#allocation2 + $0xa48] sm:$0xff]
    %v470 = vld [vmem:[#allocation2 + $0xa50] sm:$0xff]
    %v471 = vld [vmem:[#allocation2 + $0xa58] sm:$0xff]
    %v472 = vld [vmem:[#allocation2 + $0xa60] sm:$0xff]
    %v473 = vld [vmem:[#allocation2 + $0xa68] sm:$0xff]
    %v474 = vld [vmem:[#allocation2 + $0xa70] sm:$0xff]
    %v475 = vld [vmem:[#allocation2 + $0xa78] sm:$0xff]
    %v476 = vld [vmem:[#allocation2 + $0xa80] sm:$0xff]
    %v477 = vld [vmem:[#allocation2 + $0xa88] sm:$0xff]
    %v478 = vld [vmem:[#allocation2 + $0xa90] sm:$0xff]
    %v479 = vld [vmem:[#allocation2 + $0xa98] sm:$0xff]
    %v480 = vld [vmem:[#allocation2 + $0xaa0] sm:$0xff]
    %v481 = vld [vmem:[#allocation2 + $0xaa8] sm:$0xff]
    %v482 = vld [vmem:[#allocation2 + $0xab0] sm:$0xff]
    %v483 = vld [vmem:[#allocation2 + $0xab8] sm:$0xff]
    %v484 = vld [vmem:[#allocation2 + $0xac0] sm:$0xff]
    %v485 = vld [vmem:[#allocation2 + $0xac8] sm:$0xff]
    %v486 = vld [vmem:[#allocation2 + $0xad0] sm:$0xff]
    %v487 = vld [vmem:[#allocation2 + $0xad8] sm:$0xff]
    %v488 = vld [vmem:[#allocation2 + $0xae0] sm:$0xff]
    %v489 = vld [vmem:[#allocation2 + $0xae8] sm:$0xff]
    %v490 = vld [vmem:[#allocation2 + $0xaf0] sm:$0xff]
    %v491 = vld [vmem:[#allocation2 + $0xaf8] sm:$0xff]
    %v492 = vld [vmem:[#allocation2 + $0xb00] sm:$0xff]
    %v493 = vld [vmem:[#allocation2 + $0xb08] sm:$0xff]
    %v494 = vld [vmem:[#allocation2 + $0xb10] sm:$0xff]
    %v495 = vld [vmem:[#allocation2 + $0xb18] sm:$0xff]
    %v496 = vld [vmem:[#allocation2 + $0xb20] sm:$0xff]
    %v497 = vld [vmem:[#allocation2 + $0xb28] sm:$0xff]
    %v498 = vld [vmem:[#allocation2 + $0xb30] sm:$0xff]
    %v499 = vld [vmem:[#allocation2 + $0xb38] sm:$0xff]
    %v500 = vld [vmem:[#allocation2 + $0xb40] sm:$0xff]
    %v501 = vld [vmem:[#allocation2 + $0xb48] sm:$0xff]
    %v502 = vld [vmem:[#allocation2 + $0xb50] sm:$0xff]
    %v503 = vld [vmem:[#allocation2 + $0xb58] sm:$0xff]
    %v504 = vld [vmem:[#allocation2 + $0xb60] sm:$0xff]
    %v505 = vld [vmem:[#allocation2 + $0xb68] sm:$0xff]
    %v506 = vld [vmem:[#allocation2 + $0xb70] sm:$0xff]
    %v507 = vld [vmem:[#allocation2 + $0xb78] sm:$0xff]
    %v508 = vld [vmem:[#allocation2 + $0xb80] sm:$0xff]
    %v509 = vld [vmem:[#allocation2 + $0xb88] sm:$0xff]
    %v510 = vld [vmem:[#allocation2 + $0xb90] sm:$0xff]
    %v511 = vld [vmem:[#allocation2 + $0xb98] sm:$0xff]
    %v512 = vld [vmem:[#allocation2 + $0xba0] sm:$0xff]
    %v513 = vld [vmem:[#allocation2 + $0xba8] sm:$0xff]
    %v514 = vld [vmem:[#allocation2 + $0xbb0] sm:$0xff]
    %v515 = vld [vmem:[#allocation2 + $0xbb8] sm:$0xff]
    %v516 = vld [vmem:[#allocation2 + $0xbc0] sm:$0xff]
    %v517 = vld [vmem:[#allocation2 + $0xbc8] sm:$0xff]
    %v518 = vld [vmem:[#allocation2 + $0xbd0] sm:$0xff]
    %v519 = vld [vmem:[#allocation2 + $0xbd8] sm:$0xff]
    %v520 = vld [vmem:[#allocation2 + $0xbe0] sm:$0xff]
    %v521 = vld [vmem:[#allocation2 + $0xbe8] sm:$0xff]
    %v522 = vld [vmem:[#allocation2 + $0xbf0] sm:$0xff]
    %v523 = vld [vmem:[#allocation2 + $0xbf8] sm:$0xff]
    %v524 = vld [vmem:[#allocation2 + $0xc00] sm:$0xff]
    %v525 = vld [vmem:[#allocation2 + $0xc08] sm:$0xff]
    %v526 = vld [vmem:[#allocation2 + $0xc10] sm:$0xff]
    %v527 = vld [vmem:[#allocation2 + $0xc18] sm:$0xff]
    %v528 = vld [vmem:[#allocation2 + $0xc20] sm:$0xff]
    %v529 = vld [vmem:[#allocation2 + $0xc28] sm:$0xff]
    %v530 = vld [vmem:[#allocation2 + $0xc30] sm:$0xff]
    %v531 = vld [vmem:[#allocation2 + $0xc38] sm:$0xff]
    %v532 = vld [vmem:[#allocation2 + $0xc40] sm:$0xff]
    %v533 = vld [vmem:[#allocation2 + $0xc48] sm:$0xff]
    %v534 = vld [vmem:[#allocation2 + $0xc50] sm:$0xff]
    %v535 = vld [vmem:[#allocation2 + $0xc58] sm:$0xff]
    %v536 = vld [vmem:[#allocation2 + $0xc60] sm:$0xff]
    %v537 = vld [vmem:[#allocation2 + $0xc68] sm:$0xff]
    %v538 = vld [vmem:[#allocation2 + $0xc70] sm:$0xff]
    %v539 = vld [vmem:[#allocation2 + $0xc78] sm:$0xff]
    %v540 = vld [vmem:[#allocation2 + $0xc80] sm:$0xff]
    %v541 = vld [vmem:[#allocation2 + $0xc88] sm:$0xff]
    %v542 = vld [vmem:[#allocation2 + $0xc90] sm:$0xff]
    %v543 = vld [vmem:[#allocation2 + $0xc98] sm:$0xff]
    %v544 = vld [vmem:[#allocation2 + $0xca0] sm:$0xff]
    %v545 = vld [vmem:[#allocation2 + $0xca8] sm:$0xff]
    %v546 = vld [vmem:[#allocation2 + $0xcb0] sm:$0xff]
    %v547 = vld [vmem:[#allocation2 + $0xcb8] sm:$0xff]
    %v548 = vld [vmem:[#allocation2 + $0xcc0] sm:$0xff]
    %v549 = vld [vmem:[#allocation2 + $0xcc8] sm:$0xff]
    %v550 = vld [vmem:[#allocation2 + $0xcd0] sm:$0xff]
    %v551 = vld [vmem:[#allocation2 + $0xcd8] sm:$0xff]
    %v552 = vld [vmem:[#allocation2 + $0xce0] sm:$0xff]
    %v553 = vld [vmem:[#allocation2 + $0xce8] sm:$0xff]
    %v554 = vld [vmem:[#allocation2 + $0xcf0] sm:$0xff]
    %v555 = vld [vmem:[#allocation2 + $0xcf8] sm:$0xff]
    %v556 = vld [vmem:[#allocation2 + $0xd00] sm:$0xff]
    %v557 = vld [vmem:[#allocation2 + $0xd08] sm:$0xff]
    %v558 = vld [vmem:[#allocation2 + $0xd10] sm:$0xff]
    %v559 = vld [vmem:[#allocation2 + $0xd18] sm:$0xff]
    %v560 = vld [vmem:[#allocation2 + $0xd20] sm:$0xff]
    %v561 = vld [vmem:[#allocation2 + $0xd28] sm:$0xff]
    %v562 = vld [vmem:[#allocation2 + $0xd30] sm:$0xff]
    %v563 = vld [vmem:[#allocation2 + $0xd38] sm:$0xff]
    %v564 = vld [vmem:[#allocation2 + $0xd40] sm:$0xff]
    %v565 = vld [vmem:[#allocation2 + $0xd48] sm:$0xff]
    %v566 = vld [vmem:[#allocation2 + $0xd50] sm:$0xff]
    %v567 = vld [vmem:[#allocation2 + $0xd58] sm:$0xff]
    %v568 = vld [vmem:[#allocation2 + $0xd60] sm:$0xff]
    %v569 = vld [vmem:[#allocation2 + $0xd68] sm:$0xff]
    %v570 = vld [vmem:[#allocation2 + $0xd70] sm:$0xff]
    %v571 = vld [vmem:[#allocation2 + $0xd78] sm:$0xff]
    %v572 = vld [vmem:[#allocation2 + $0xd80] sm:$0xff]
    %v573 = vld [vmem:[#allocation2 + $0xd88] sm:$0xff]
    %v574 = vld [vmem:[#allocation2 + $0xd90] sm:$0xff]
    %v575 = vld [vmem:[#allocation2 + $0xd98] sm:$0xff]
    %v576 = vld [vmem:[#allocation2 + $0xda0] sm:$0xff]
    %v577 = vld [vmem:[#allocation2 + $0xda8] sm:$0xff]
    %v578 = vld [vmem:[#allocation2 + $0xdb0] sm:$0xff]
    %v579 = vld [vmem:[#allocation2 + $0xdb8] sm:$0xff]
    %v580 = vld [vmem:[#allocation2 + $0xdc0] sm:$0xff]
    %v581 = vld [vmem:[#allocation2 + $0xdc8] sm:$0xff]
    %v582 = vld [vmem:[#allocation2 + $0xdd0] sm:$0xff]
    %v583 = vld [vmem:[#allocation2 + $0xdd8] sm:$0xff]
    %v584 = vld [vmem:[#allocation2 + $0xde0] sm:$0xff]
    %v585 = vld [vmem:[#allocation2 + $0xde8] sm:$0xff]
    %v586 = vld [vmem:[#allocation2 + $0xdf0] sm:$0xff]
    %v587 = vld [vmem:[#allocation2 + $0xdf8] sm:$0xff]
    %v588 = vld [vmem:[#allocation4] sm:$0xff]
    %v590 = vlaneseq
    %v591 = vshrl.u32 %v590, 7
    %v592 = vsub.s32 0, %v591
    %v593 = vrot.slane %v588, %v592
    %v594 = vlaneseq
    %v595 = vshrl.u32 %v594, 7
    %v596 = vsub.s32 1, %v595
    %v597 = vrot.slane %v588, %v596
    %v598 = vlaneseq
    %v599 = vshrl.u32 %v598, 7
    %v600 = vsub.s32 2, %v599
    %v601 = vrot.slane %v588, %v600
    %v602 = vlaneseq
    %v603 = vshrl.u32 %v602, 7
    %v604 = vsub.s32 3, %v603
    %v605 = vrot.slane %v588, %v604
    %v606 = vlaneseq
    %v607 = vshrl.u32 %v606, 7
    %v608 = vsub.s32 4, %v607
    %v609 = vrot.slane %v588, %v608
    %v610 = vlaneseq
    %v611 = vshrl.u32 %v610, 7
    %v612 = vsub.s32 5, %v611
    %v613 = vrot.slane %v588, %v612
    %v614 = vlaneseq
    %v615 = vshrl.u32 %v614, 7
    %v616 = vsub.s32 6, %v615
    %v617 = vrot.slane %v588, %v616
    %v618 = vlaneseq
    %v619 = vshrl.u32 %v618, 7
    %v620 = vsub.s32 7, %v619
    %v621 = vrot.slane %v588, %v620
    %v634 = vunpack.c.l.b16 %v136
    %v635 = vunpack.c.h.b16 %v136
    %v636 = vunpack.c.l.b16 %v137
    %v637 = vunpack.c.h.b16 %v137
    %v638 = vunpack.c.l.b16 %v138
    %v639 = vunpack.c.h.b16 %v138
    %v640 = vunpack.c.l.b16 %v139
    %v641 = vpack.c.b16 %v634, %v634
    %v642 = vpack.c.b16 %v635, %v635
    %v643 = vpack.c.b16 %v636, %v636
    %v644 = vpack.c.b16 %v637, %v637
    %v645 = vpack.c.b16 %v638, %v638
    %v646 = vpack.c.b16 %v639, %v639
    %v647 = vpack.c.b16 %v640, %v640
    %v1103 = vunpack.c.l.b16 %v140
    %v1104 = vunpack.c.h.b16 %v140
    %v1105 = vunpack.c.l.b16 %v141
    %v1106 = vunpack.c.h.b16 %v141
    %v1107 = vunpack.c.l.b16 %v142
    %v1108 = vunpack.c.h.b16 %v142
    %v1109 = vunpack.c.l.b16 %v143
    %v1110 = vunpack.c.h.b16 %v143
    %v1111 = vunpack.c.l.b16 %v144
    %v1112 = vunpack.c.h.b16 %v144
    %v1113 = vunpack.c.l.b16 %v145
    %v1114 = vunpack.c.h.b16 %v145
    %v1115 = vunpack.c.l.b16 %v146
    %v1116 = vunpack.c.h.b16 %v146
    %v1117 = vunpack.c.l.b16 %v147
    %v1118 = vunpack.c.h.b16 %v147
    %v1119 = vunpack.c.l.b16 %v148
    %v1120 = vunpack.c.h.b16 %v148
    %v1121 = vunpack.c.l.b16 %v149
    %v1122 = vunpack.c.h.b16 %v149
    %v1123 = vunpack.c.l.b16 %v150
    %v1124 = vunpack.c.h.b16 %v150
    %v1125 = vunpack.c.l.b16 %v151
    %v1126 = vunpack.c.h.b16 %v151
    %v1127 = vunpack.c.l.b16 %v152
    %v1128 = vunpack.c.h.b16 %v152
    %v1129 = vunpack.c.l.b16 %v153
    %v1130 = vunpack.c.h.b16 %v153
    %v1131 = vunpack.c.l.b16 %v154
    %v1132 = vunpack.c.h.b16 %v154
    %v1133 = vunpack.c.l.b16 %v155
    %v1134 = vunpack.c.h.b16 %v155
    %v1135 = vunpack.c.l.b16 %v156
    %v1136 = vunpack.c.h.b16 %v156
    %v1137 = vunpack.c.l.b16 %v157
    %v1138 = vunpack.c.h.b16 %v157
    %v1139 = vunpack.c.l.b16 %v158
    %v1140 = vunpack.c.h.b16 %v158
    %v1141 = vunpack.c.l.b16 %v159
    %v1142 = vunpack.c.h.b16 %v159
    %v1143 = vunpack.c.l.b16 %v160
    %v1144 = vunpack.c.h.b16 %v160
    %v1145 = vunpack.c.l.b16 %v161
    %v1146 = vunpack.c.h.b16 %v161
    %v1147 = vunpack.c.l.b16 %v162
    %v1148 = vunpack.c.h.b16 %v162
    %v1149 = vunpack.c.l.b16 %v163
    %v1150 = vunpack.c.h.b16 %v163
    %v1151 = vunpack.c.l.b16 %v164
    %v1152 = vunpack.c.h.b16 %v164
    %v1153 = vunpack.c.l.b16 %v165
    %v1154 = vunpack.c.h.b16 %v165
    %v1155 = vunpack.c.l.b16 %v166
    %v1156 = vunpack.c.h.b16 %v166
    %v1157 = vunpack.c.l.b16 %v167
    %v1158 = vunpack.c.h.b16 %v167
    %v1159 = vunpack.c.l.b16 %v168
    %v1160 = vunpack.c.h.b16 %v168
    %v1161 = vunpack.c.l.b16 %v169
    %v1162 = vunpack.c.h.b16 %v169
    %v1163 = vunpack.c.l.b16 %v170
    %v1164 = vunpack.c.h.b16 %v170
    %v1165 = vunpack.c.l.b16 %v171
    %v1166 = vunpack.c.h.b16 %v171
    %v1167 = vunpack.c.l.b16 %v172
    %v1168 = vunpack.c.h.b16 %v172
    %v1169 = vunpack.c.l.b16 %v173
    %v1170 = vunpack.c.h.b16 %v173
    %v1171 = vunpack.c.l.b16 %v174
    %v1172 = vunpack.c.h.b16 %v174
    %v1173 = vunpack.c.l.b16 %v175
    %v1174 = vunpack.c.h.b16 %v175
    %v1175 = vunpack.c.l.b16 %v176
    %v1176 = vunpack.c.h.b16 %v176
    %v1177 = vunpack.c.l.b16 %v177
    %v1178 = vunpack.c.h.b16 %v177
    %v1179 = vunpack.c.l.b16 %v178
    %v1180 = vunpack.c.h.b16 %v178
    %v1181 = vunpack.c.l.b16 %v179
    %v1182 = vunpack.c.h.b16 %v179
    %v1183 = vunpack.c.l.b16 %v180
    %v1184 = vunpack.c.h.b16 %v180
    %v1185 = vunpack.c.l.b16 %v181
    %v1186 = vunpack.c.h.b16 %v181
    %v1187 = vunpack.c.l.b16 %v182
    %v1188 = vunpack.c.h.b16 %v182
    %v1189 = vunpack.c.l.b16 %v183
    %v1190 = vunpack.c.h.b16 %v183
    %v1191 = vunpack.c.l.b16 %v184
    %v1192 = vunpack.c.h.b16 %v184
    %v1193 = vunpack.c.l.b16 %v185
    %v1194 = vunpack.c.h.b16 %v185
    %v1195 = vunpack.c.l.b16 %v186
    %v1196 = vunpack.c.h.b16 %v186
    %v1197 = vunpack.c.l.b16 %v187
    %v1198 = vunpack.c.h.b16 %v187
    %v1199 = vunpack.c.l.b16 %v188
    %v1200 = vunpack.c.h.b16 %v188
    %v1201 = vunpack.c.l.b16 %v189
    %v1202 = vunpack.c.h.b16 %v189
    %v1203 = vunpack.c.l.b16 %v190
    %v1204 = vunpack.c.h.b16 %v190
    %v1205 = vunpack.c.l.b16 %v191
    %v1206 = vunpack.c.h.b16 %v191
    %v1207 = vunpack.c.l.b16 %v192
    %v1208 = vunpack.c.h.b16 %v192
    %v1209 = vunpack.c.l.b16 %v193
    %v1210 = vunpack.c.h.b16 %v193
    %v1211 = vunpack.c.l.b16 %v194
    %v1212 = vunpack.c.h.b16 %v194
    %v1213 = vunpack.c.l.b16 %v195
    %v1214 = vunpack.c.h.b16 %v195
    %v1215 = vunpack.c.l.b16 %v196
    %v1216 = vunpack.c.h.b16 %v196
    %v1217 = vunpack.c.l.b16 %v197
    %v1218 = vunpack.c.h.b16 %v197
    %v1219 = vunpack.c.l.b16 %v198
    %v1220 = vunpack.c.h.b16 %v198
    %v1221 = vunpack.c.l.b16 %v199
    %v1222 = vunpack.c.h.b16 %v199
    %v1223 = vunpack.c.l.b16 %v200
    %v1224 = vunpack.c.h.b16 %v200
    %v1225 = vunpack.c.l.b16 %v201
    %v1226 = vunpack.c.h.b16 %v201
    %v1227 = vunpack.c.l.b16 %v202
    %v1228 = vunpack.c.h.b16 %v202
    %v1229 = vunpack.c.l.b16 %v203
    %v1230 = vunpack.c.h.b16 %v203
    %v1231 = vunpack.c.l.b16 %v204
    %v1232 = vunpack.c.h.b16 %v204
    %v1233 = vunpack.c.l.b16 %v205
    %v1234 = vunpack.c.h.b16 %v205
    %v1235 = vunpack.c.l.b16 %v206
    %v1236 = vunpack.c.h.b16 %v206
    %v1237 = vunpack.c.l.b16 %v207
    %v1238 = vunpack.c.h.b16 %v207
    %v1239 = vunpack.c.l.b16 %v208
    %v1240 = vunpack.c.h.b16 %v208
    %v1241 = vunpack.c.l.b16 %v209
    %v1242 = vunpack.c.h.b16 %v209
    %v1243 = vunpack.c.l.b16 %v210
    %v1244 = vunpack.c.h.b16 %v210
    %v1245 = vunpack.c.l.b16 %v211
    %v1246 = vunpack.c.h.b16 %v211
    %v1247 = vunpack.c.l.b16 %v212
    %v1248 = vunpack.c.h.b16 %v212
    %v1249 = vunpack.c.l.b16 %v213
    %v1250 = vunpack.c.h.b16 %v213
    %v1251 = vunpack.c.l.b16 %v214
    %v1252 = vunpack.c.h.b16 %v214
    %v1253 = vunpack.c.l.b16 %v215
    %v1254 = vunpack.c.h.b16 %v215
    %v1255 = vunpack.c.l.b16 %v216
    %v1256 = vunpack.c.h.b16 %v216
    %v1257 = vunpack.c.l.b16 %v217
    %v1258 = vunpack.c.h.b16 %v217
    %v1259 = vunpack.c.l.b16 %v218
    %v1260 = vunpack.c.h.b16 %v218
    %v1261 = vunpack.c.l.b16 %v219
    %v1262 = vunpack.c.h.b16 %v219
    %v1263 = vunpack.c.l.b16 %v220
    %v1264 = vunpack.c.h.b16 %v220
    %v1265 = vunpack.c.l.b16 %v221
    %v1266 = vunpack.c.h.b16 %v221
    %v1267 = vunpack.c.l.b16 %v222
    %v1268 = vunpack.c.h.b16 %v222
    %v1269 = vunpack.c.l.b16 %v223
    %v1270 = vunpack.c.h.b16 %v223
    %v1271 = vunpack.c.l.b16 %v224
    %v1272 = vunpack.c.h.b16 %v224
    %v1273 = vunpack.c.l.b16 %v225
    %v1274 = vunpack.c.h.b16 %v225
    %v1275 = vunpack.c.l.b16 %v226
    %v1276 = vunpack.c.h.b16 %v226
    %v1277 = vunpack.c.l.b16 %v227
    %v1278 = vunpack.c.h.b16 %v227
    %v1279 = vunpack.c.l.b16 %v228
    %v1280 = vunpack.c.h.b16 %v228
    %v1281 = vunpack.c.l.b16 %v229
    %v1282 = vunpack.c.h.b16 %v229
    %v1283 = vunpack.c.l.b16 %v230
    %v1284 = vunpack.c.h.b16 %v230
    %v1285 = vunpack.c.l.b16 %v231
    %v1286 = vunpack.c.h.b16 %v231
    %v1287 = vunpack.c.l.b16 %v232
    %v1288 = vunpack.c.h.b16 %v232
    %v1289 = vunpack.c.l.b16 %v233
    %v1290 = vunpack.c.h.b16 %v233
    %v1291 = vunpack.c.l.b16 %v234
    %v1292 = vunpack.c.h.b16 %v234
    %v1293 = vunpack.c.l.b16 %v235
    %v1294 = vunpack.c.h.b16 %v235
    %v1295 = vunpack.c.l.b16 %v236
    %v1296 = vunpack.c.h.b16 %v236
    %v1297 = vunpack.c.l.b16 %v237
    %v1298 = vunpack.c.h.b16 %v237
    %v1299 = vunpack.c.l.b16 %v238
    %v1300 = vunpack.c.h.b16 %v238
    %v1301 = vunpack.c.l.b16 %v239
    %v1302 = vunpack.c.h.b16 %v239
    %v1303 = vunpack.c.l.b16 %v240
    %v1304 = vunpack.c.h.b16 %v240
    %v1305 = vunpack.c.l.b16 %v241
    %v1306 = vunpack.c.h.b16 %v241
    %v1307 = vunpack.c.l.b16 %v242
    %v1308 = vunpack.c.h.b16 %v242
    %v1309 = vunpack.c.l.b16 %v243
    %v1310 = vunpack.c.h.b16 %v243
    %v1311 = vunpack.c.l.b16 %v244
    %v1312 = vunpack.c.h.b16 %v244
    %v1313 = vunpack.c.l.b16 %v245
    %v1314 = vunpack.c.h.b16 %v245
    %v1315 = vunpack.c.l.b16 %v246
    %v1316 = vunpack.c.h.b16 %v246
    %v1317 = vunpack.c.l.b16 %v247
    %v1318 = vunpack.c.h.b16 %v247
    %v1319 = vunpack.c.l.b16 %v248
    %v1320 = vunpack.c.h.b16 %v248
    %v1321 = vunpack.c.l.b16 %v249
    %v1322 = vunpack.c.h.b16 %v249
    %v1323 = vunpack.c.l.b16 %v250
    %v1324 = vunpack.c.h.b16 %v250
    %v1325 = vunpack.c.l.b16 %v251
    %v1326 = vunpack.c.h.b16 %v251
    %v1327 = vunpack.c.l.b16 %v252
    %v1328 = vunpack.c.h.b16 %v252
    %v1329 = vunpack.c.l.b16 %v253
    %v1330 = vunpack.c.h.b16 %v253
    %v1331 = vunpack.c.l.b16 %v254
    %v1332 = vunpack.c.h.b16 %v254
    %v1333 = vunpack.c.l.b16 %v255
    %v1334 = vunpack.c.h.b16 %v255
    %v1335 = vunpack.c.l.b16 %v256
    %v1336 = vunpack.c.h.b16 %v256
    %v1337 = vunpack.c.l.b16 %v257
    %v1338 = vunpack.c.h.b16 %v257
    %v1339 = vunpack.c.l.b16 %v258
    %v1340 = vunpack.c.h.b16 %v258
    %v1341 = vunpack.c.l.b16 %v259
    %v1342 = vunpack.c.h.b16 %v259
    %v1343 = vunpack.c.l.b16 %v260
    %v1344 = vunpack.c.h.b16 %v260
    %v1345 = vunpack.c.l.b16 %v261
    %v1346 = vunpack.c.h.b16 %v261
    %v1347 = vunpack.c.l.b16 %v262
    %v1348 = vunpack.c.h.b16 %v262
    %v1349 = vunpack.c.l.b16 %v263
    %v1350 = vunpack.c.h.b16 %v263
    %v1351 = vunpack.c.l.b16 %v264
    %v1352 = vunpack.c.h.b16 %v264
    %v1353 = vunpack.c.l.b16 %v265
    %v1354 = vunpack.c.h.b16 %v265
    %v1355 = vunpack.c.l.b16 %v266
    %v1356 = vunpack.c.h.b16 %v266
    %v1357 = vunpack.c.l.b16 %v267
    %v1358 = vunpack.c.h.b16 %v267
    %v1359 = vunpack.c.l.b16 %v268
    %v1360 = vunpack.c.h.b16 %v268
    %v1361 = vunpack.c.l.b16 %v269
    %v1362 = vunpack.c.h.b16 %v269
    %v1363 = vunpack.c.l.b16 %v270
    %v1364 = vunpack.c.h.b16 %v270
    %v1365 = vunpack.c.l.b16 %v271
    %v1366 = vunpack.c.h.b16 %v271
    %v1367 = vunpack.c.l.b16 %v272
    %v1368 = vunpack.c.h.b16 %v272
    %v1369 = vunpack.c.l.b16 %v273
    %v1370 = vunpack.c.h.b16 %v273
    %v1371 = vunpack.c.l.b16 %v274
    %v1372 = vunpack.c.h.b16 %v274
    %v1373 = vunpack.c.l.b16 %v275
    %v1374 = vunpack.c.h.b16 %v275
    %v1375 = vunpack.c.l.b16 %v276
    %v1376 = vunpack.c.h.b16 %v276
    %v1377 = vunpack.c.l.b16 %v277
    %v1378 = vunpack.c.h.b16 %v277
    %v1379 = vunpack.c.l.b16 %v278
    %v1380 = vunpack.c.h.b16 %v278
    %v1381 = vunpack.c.l.b16 %v279
    %v1382 = vunpack.c.h.b16 %v279
    %v1383 = vunpack.c.l.b16 %v280
    %v1384 = vunpack.c.h.b16 %v280
    %v1385 = vunpack.c.l.b16 %v281
    %v1386 = vunpack.c.h.b16 %v281
    %v1387 = vunpack.c.l.b16 %v282
    %v1388 = vunpack.c.h.b16 %v282
    %v1389 = vunpack.c.l.b16 %v283
    %v1390 = vunpack.c.h.b16 %v283
    %v1391 = vunpack.c.l.b16 %v284
    %v1392 = vunpack.c.h.b16 %v284
    %v1393 = vunpack.c.l.b16 %v285
    %v1394 = vunpack.c.h.b16 %v285
    %v1395 = vunpack.c.l.b16 %v286
    %v1396 = vunpack.c.h.b16 %v286
    %v1397 = vunpack.c.l.b16 %v287
    %v1398 = vunpack.c.h.b16 %v287
    %v1399 = vunpack.c.l.b16 %v288
    %v1400 = vunpack.c.h.b16 %v288
    %v1401 = vunpack.c.l.b16 %v289
    %v1402 = vunpack.c.h.b16 %v289
    %v1403 = vunpack.c.l.b16 %v290
    %v1404 = vunpack.c.h.b16 %v290
    %v1405 = vunpack.c.l.b16 %v291
    %v1406 = vunpack.c.h.b16 %v291
    %v1407 = vunpack.c.l.b16 %v292
    %v1408 = vunpack.c.h.b16 %v292
    %v1409 = vunpack.c.l.b16 %v293
    %v1410 = vunpack.c.h.b16 %v293
    %v1411 = vunpack.c.l.b16 %v294
    %v1412 = vunpack.c.h.b16 %v294
    %v1413 = vunpack.c.l.b16 %v295
    %v1414 = vunpack.c.h.b16 %v295
    %v1415 = vunpack.c.l.b16 %v296
    %v1416 = vunpack.c.h.b16 %v296
    %v1417 = vunpack.c.l.b16 %v297
    %v1418 = vunpack.c.h.b16 %v297
    %v1419 = vunpack.c.l.b16 %v298
    %v1420 = vunpack.c.h.b16 %v298
    %v1421 = vunpack.c.l.b16 %v299
    %v1422 = vunpack.c.h.b16 %v299
    %v1423 = vunpack.c.l.b16 %v300
    %v1424 = vunpack.c.h.b16 %v300
    %v1425 = vunpack.c.l.b16 %v301
    %v1426 = vunpack.c.h.b16 %v301
    %v1427 = vunpack.c.l.b16 %v302
    %v1428 = vunpack.c.h.b16 %v302
    %v1429 = vunpack.c.l.b16 %v303
    %v1430 = vunpack.c.h.b16 %v303
    %v1431 = vunpack.c.l.b16 %v304
    %v1432 = vunpack.c.h.b16 %v304
    %v1433 = vunpack.c.l.b16 %v305
    %v1434 = vunpack.c.h.b16 %v305
    %v1435 = vunpack.c.l.b16 %v306
    %v1436 = vunpack.c.h.b16 %v306
    %v1437 = vunpack.c.l.b16 %v307
    %v1438 = vunpack.c.h.b16 %v307
    %v1439 = vunpack.c.l.b16 %v308
    %v1440 = vunpack.c.h.b16 %v308
    %v1441 = vunpack.c.l.b16 %v309
    %v1442 = vunpack.c.h.b16 %v309
    %v1443 = vunpack.c.l.b16 %v310
    %v1444 = vunpack.c.h.b16 %v310
    %v1445 = vunpack.c.l.b16 %v311
    %v1446 = vunpack.c.h.b16 %v311
    %v1447 = vunpack.c.l.b16 %v312
    %v1448 = vunpack.c.h.b16 %v312
    %v1449 = vunpack.c.l.b16 %v313
    %v1450 = vunpack.c.h.b16 %v313
    %v1451 = vunpack.c.l.b16 %v314
    %v1452 = vunpack.c.h.b16 %v314
    %v1453 = vunpack.c.l.b16 %v315
    %v1454 = vunpack.c.h.b16 %v315
    %v1455 = vunpack.c.l.b16 %v316
    %v1456 = vunpack.c.h.b16 %v316
    %v1457 = vunpack.c.l.b16 %v317
    %v1458 = vunpack.c.h.b16 %v317
    %v1459 = vunpack.c.l.b16 %v318
    %v1460 = vunpack.c.h.b16 %v318
    %v1461 = vunpack.c.l.b16 %v319
    %v1462 = vunpack.c.h.b16 %v319
    %v1463 = vunpack.c.l.b16 %v320
    %v1464 = vunpack.c.h.b16 %v320
    %v1465 = vunpack.c.l.b16 %v321
    %v1466 = vunpack.c.h.b16 %v321
    %v1467 = vunpack.c.l.b16 %v322
    %v1468 = vunpack.c.h.b16 %v322
    %v1469 = vunpack.c.l.b16 %v323
    %v1470 = vunpack.c.h.b16 %v323
    %v1471 = vunpack.c.l.b16 %v324
    %v1472 = vunpack.c.h.b16 %v324
    %v1473 = vunpack.c.l.b16 %v325
    %v1474 = vunpack.c.h.b16 %v325
    %v1475 = vunpack.c.l.b16 %v326
    %v1476 = vunpack.c.h.b16 %v326
    %v1477 = vunpack.c.l.b16 %v327
    %v1478 = vunpack.c.h.b16 %v327
    %v1479 = vunpack.c.l.b16 %v328
    %v1480 = vunpack.c.h.b16 %v328
    %v1481 = vunpack.c.l.b16 %v329
    %v1482 = vunpack.c.h.b16 %v329
    %v1483 = vunpack.c.l.b16 %v330
    %v1484 = vunpack.c.h.b16 %v330
    %v1485 = vunpack.c.l.b16 %v331
    %v1486 = vunpack.c.h.b16 %v331
    %v1487 = vunpack.c.l.b16 %v332
    %v1488 = vunpack.c.h.b16 %v332
    %v1489 = vunpack.c.l.b16 %v333
    %v1490 = vunpack.c.h.b16 %v333
    %v1491 = vunpack.c.l.b16 %v334
    %v1492 = vunpack.c.h.b16 %v334
    %v1493 = vunpack.c.l.b16 %v335
    %v1494 = vunpack.c.h.b16 %v335
    %v1495 = vunpack.c.l.b16 %v336
    %v1496 = vunpack.c.h.b16 %v336
    %v1497 = vunpack.c.l.b16 %v337
    %v1498 = vunpack.c.h.b16 %v337
    %v1499 = vunpack.c.l.b16 %v338
    %v1500 = vunpack.c.h.b16 %v338
    %v1501 = vunpack.c.l.b16 %v339
    %v1502 = vunpack.c.h.b16 %v339
    %v1503 = vunpack.c.l.b16 %v340
    %v1504 = vunpack.c.h.b16 %v340
    %v1505 = vunpack.c.l.b16 %v341
    %v1506 = vunpack.c.h.b16 %v341
    %v1507 = vunpack.c.l.b16 %v342
    %v1508 = vunpack.c.h.b16 %v342
    %v1509 = vunpack.c.l.b16 %v343
    %v1510 = vunpack.c.h.b16 %v343
    %v1511 = vunpack.c.l.b16 %v344
    %v1512 = vunpack.c.h.b16 %v344
    %v1513 = vunpack.c.l.b16 %v345
    %v1514 = vunpack.c.h.b16 %v345
    %v1515 = vunpack.c.l.b16 %v346
    %v1516 = vunpack.c.h.b16 %v346
    %v1517 = vunpack.c.l.b16 %v347
    %v1518 = vunpack.c.h.b16 %v347
    %v1519 = vunpack.c.l.b16 %v348
    %v1520 = vunpack.c.h.b16 %v348
    %v1521 = vunpack.c.l.b16 %v349
    %v1522 = vunpack.c.h.b16 %v349
    %v1523 = vunpack.c.l.b16 %v350
    %v1524 = vunpack.c.h.b16 %v350
    %v1525 = vunpack.c.l.b16 %v351
    %v1526 = vunpack.c.h.b16 %v351
    %v1527 = vunpack.c.l.b16 %v352
    %v1528 = vunpack.c.h.b16 %v352
    %v1529 = vunpack.c.l.b16 %v353
    %v1530 = vunpack.c.h.b16 %v353
    %v1531 = vunpack.c.l.b16 %v354
    %v1532 = vunpack.c.h.b16 %v354
    %v1533 = vunpack.c.l.b16 %v355
    %v1534 = vunpack.c.h.b16 %v355
    %v1535 = vunpack.c.l.b16 %v356
    %v1536 = vunpack.c.h.b16 %v356
    %v1537 = vunpack.c.l.b16 %v357
    %v1538 = vunpack.c.h.b16 %v357
    %v1539 = vunpack.c.l.b16 %v358
    %v1540 = vunpack.c.h.b16 %v358
    %v1541 = vunpack.c.l.b16 %v359
    %v1542 = vunpack.c.h.b16 %v359
    %v1543 = vunpack.c.l.b16 %v360
    %v1544 = vunpack.c.h.b16 %v360
    %v1545 = vunpack.c.l.b16 %v361
    %v1546 = vunpack.c.h.b16 %v361
    %v1547 = vunpack.c.l.b16 %v362
    %v1548 = vunpack.c.h.b16 %v362
    %v1549 = vunpack.c.l.b16 %v363
    %v1550 = vunpack.c.h.b16 %v363
    %v1551 = vunpack.c.l.b16 %v364
    %v1552 = vunpack.c.h.b16 %v364
    %v1553 = vunpack.c.l.b16 %v365
    %v1554 = vunpack.c.h.b16 %v365
    %v1555 = vunpack.c.l.b16 %v366
    %v1556 = vunpack.c.h.b16 %v366
    %v1557 = vunpack.c.l.b16 %v367
    %v1558 = vunpack.c.h.b16 %v367
    %v1559 = vunpack.c.l.b16 %v368
    %v1560 = vunpack.c.h.b16 %v368
    %v1561 = vunpack.c.l.b16 %v369
    %v1562 = vunpack.c.h.b16 %v369
    %v1563 = vunpack.c.l.b16 %v370
    %v1564 = vunpack.c.h.b16 %v370
    %v1565 = vunpack.c.l.b16 %v371
    %v1566 = vunpack.c.h.b16 %v371
    %v1567 = vunpack.c.l.b16 %v372
    %v1568 = vunpack.c.h.b16 %v372
    %v1569 = vunpack.c.l.b16 %v373
    %v1570 = vunpack.c.h.b16 %v373
    %v1571 = vunpack.c.l.b16 %v374
    %v1572 = vunpack.c.h.b16 %v374
    %v1573 = vunpack.c.l.b16 %v375
    %v1574 = vunpack.c.h.b16 %v375
    %v1575 = vunpack.c.l.b16 %v376
    %v1576 = vunpack.c.h.b16 %v376
    %v1577 = vunpack.c.l.b16 %v377
    %v1578 = vunpack.c.h.b16 %v377
    %v1579 = vunpack.c.l.b16 %v378
    %v1580 = vunpack.c.h.b16 %v378
    %v1581 = vunpack.c.l.b16 %v379
    %v1582 = vunpack.c.h.b16 %v379
    %v1583 = vunpack.c.l.b16 %v380
    %v1584 = vunpack.c.h.b16 %v380
    %v1585 = vunpack.c.l.b16 %v381
    %v1586 = vunpack.c.h.b16 %v381
    %v1587 = vunpack.c.l.b16 %v382
    %v1588 = vunpack.c.h.b16 %v382
    %v1589 = vunpack.c.l.b16 %v383
    %v1590 = vunpack.c.h.b16 %v383
    %v1591 = vunpack.c.l.b16 %v384
    %v1592 = vunpack.c.h.b16 %v384
    %v1593 = vunpack.c.l.b16 %v385
    %v1594 = vunpack.c.h.b16 %v385
    %v1595 = vunpack.c.l.b16 %v386
    %v1596 = vunpack.c.h.b16 %v386
    %v1597 = vunpack.c.l.b16 %v387
    %v1598 = vunpack.c.h.b16 %v387
    %v1599 = vunpack.c.l.b16 %v388
    %v1600 = vunpack.c.h.b16 %v388
    %v1601 = vunpack.c.l.b16 %v389
    %v1602 = vunpack.c.h.b16 %v389
    %v1603 = vunpack.c.l.b16 %v390
    %v1604 = vunpack.c.h.b16 %v390
    %v1605 = vunpack.c.l.b16 %v391
    %v1606 = vunpack.c.h.b16 %v391
    %v1607 = vunpack.c.l.b16 %v392
    %v1608 = vunpack.c.h.b16 %v392
    %v1609 = vunpack.c.l.b16 %v393
    %v1610 = vunpack.c.h.b16 %v393
    %v1611 = vunpack.c.l.b16 %v394
    %v1612 = vunpack.c.h.b16 %v394
    %v1613 = vunpack.c.l.b16 %v395
    %v1614 = vunpack.c.h.b16 %v395
    %v1615 = vunpack.c.l.b16 %v396
    %v1616 = vunpack.c.h.b16 %v396
    %v1617 = vunpack.c.l.b16 %v397
    %v1618 = vunpack.c.h.b16 %v397
    %v1619 = vunpack.c.l.b16 %v398
    %v1620 = vunpack.c.h.b16 %v398
    %v1621 = vunpack.c.l.b16 %v399
    %v1622 = vunpack.c.h.b16 %v399
    %v1623 = vunpack.c.l.b16 %v400
    %v1624 = vunpack.c.h.b16 %v400
    %v1625 = vunpack.c.l.b16 %v401
    %v1626 = vunpack.c.h.b16 %v401
    %v1627 = vunpack.c.l.b16 %v402
    %v1628 = vunpack.c.h.b16 %v402
    %v1629 = vunpack.c.l.b16 %v403
    %v1630 = vunpack.c.h.b16 %v403
    %v1631 = vunpack.c.l.b16 %v404
    %v1632 = vunpack.c.h.b16 %v404
    %v1633 = vunpack.c.l.b16 %v405
    %v1634 = vunpack.c.h.b16 %v405
    %v1635 = vunpack.c.l.b16 %v406
    %v1636 = vunpack.c.h.b16 %v406
    %v1637 = vunpack.c.l.b16 %v407
    %v1638 = vunpack.c.h.b16 %v407
    %v1639 = vunpack.c.l.b16 %v408
    %v1640 = vunpack.c.h.b16 %v408
    %v1641 = vunpack.c.l.b16 %v409
    %v1642 = vunpack.c.h.b16 %v409
    %v1643 = vunpack.c.l.b16 %v410
    %v1644 = vunpack.c.h.b16 %v410
    %v1645 = vunpack.c.l.b16 %v411
    %v1646 = vunpack.c.h.b16 %v411
    %v1647 = vunpack.c.l.b16 %v412
    %v1648 = vunpack.c.h.b16 %v412
    %v1649 = vunpack.c.l.b16 %v413
    %v1650 = vunpack.c.h.b16 %v413
    %v1651 = vunpack.c.l.b16 %v414
    %v1652 = vunpack.c.h.b16 %v414
    %v1653 = vunpack.c.l.b16 %v415
    %v1654 = vunpack.c.h.b16 %v415
    %v1655 = vunpack.c.l.b16 %v416
    %v1656 = vunpack.c.h.b16 %v416
    %v1657 = vunpack.c.l.b16 %v417
    %v1658 = vunpack.c.h.b16 %v417
    %v1659 = vunpack.c.l.b16 %v418
    %v1660 = vunpack.c.h.b16 %v418
    %v1661 = vunpack.c.l.b16 %v419
    %v1662 = vunpack.c.h.b16 %v419
    %v1663 = vunpack.c.l.b16 %v420
    %v1664 = vunpack.c.h.b16 %v420
    %v1665 = vunpack.c.l.b16 %v421
    %v1666 = vunpack.c.h.b16 %v421
    %v1667 = vunpack.c.l.b16 %v422
    %v1668 = vunpack.c.h.b16 %v422
    %v1669 = vunpack.c.l.b16 %v423
    %v1670 = vunpack.c.h.b16 %v423
    %v1671 = vunpack.c.l.b16 %v424
    %v1672 = vunpack.c.h.b16 %v424
    %v1673 = vunpack.c.l.b16 %v425
    %v1674 = vunpack.c.h.b16 %v425
    %v1675 = vunpack.c.l.b16 %v426
    %v1676 = vunpack.c.h.b16 %v426
    %v1677 = vunpack.c.l.b16 %v427
    %v1678 = vunpack.c.h.b16 %v427
    %v1679 = vunpack.c.l.b16 %v428
    %v1680 = vunpack.c.h.b16 %v428
    %v1681 = vunpack.c.l.b16 %v429
    %v1682 = vunpack.c.h.b16 %v429
    %v1683 = vunpack.c.l.b16 %v430
    %v1684 = vunpack.c.h.b16 %v430
    %v1685 = vunpack.c.l.b16 %v431
    %v1686 = vunpack.c.h.b16 %v431
    %v1687 = vunpack.c.l.b16 %v432
    %v1688 = vunpack.c.h.b16 %v432
    %v1689 = vunpack.c.l.b16 %v433
    %v1690 = vunpack.c.h.b16 %v433
    %v1691 = vunpack.c.l.b16 %v434
    %v1692 = vunpack.c.h.b16 %v434
    %v1693 = vunpack.c.l.b16 %v435
    %v1694 = vunpack.c.h.b16 %v435
    %v1695 = vunpack.c.l.b16 %v436
    %v1696 = vunpack.c.h.b16 %v436
    %v1697 = vunpack.c.l.b16 %v437
    %v1698 = vunpack.c.h.b16 %v437
    %v1699 = vunpack.c.l.b16 %v438
    %v1700 = vunpack.c.h.b16 %v438
    %v1701 = vunpack.c.l.b16 %v439
    %v1702 = vunpack.c.h.b16 %v439
    %v1703 = vunpack.c.l.b16 %v440
    %v1704 = vunpack.c.h.b16 %v440
    %v1705 = vunpack.c.l.b16 %v441
    %v1706 = vunpack.c.h.b16 %v441
    %v1707 = vunpack.c.l.b16 %v442
    %v1708 = vunpack.c.h.b16 %v442
    %v1709 = vunpack.c.l.b16 %v443
    %v1710 = vunpack.c.h.b16 %v443
    %v1711 = vunpack.c.l.b16 %v444
    %v1712 = vunpack.c.h.b16 %v444
    %v1713 = vunpack.c.l.b16 %v445
    %v1714 = vunpack.c.h.b16 %v445
    %v1715 = vunpack.c.l.b16 %v446
    %v1716 = vunpack.c.h.b16 %v446
    %v1717 = vunpack.c.l.b16 %v447
    %v1718 = vunpack.c.h.b16 %v447
    %v1719 = vunpack.c.l.b16 %v448
    %v1720 = vunpack.c.h.b16 %v448
    %v1721 = vunpack.c.l.b16 %v449
    %v1722 = vunpack.c.h.b16 %v449
    %v1723 = vunpack.c.l.b16 %v450
    %v1724 = vunpack.c.h.b16 %v450
    %v1725 = vunpack.c.l.b16 %v451
    %v1726 = vunpack.c.h.b16 %v451
    %v1727 = vunpack.c.l.b16 %v452
    %v1728 = vunpack.c.h.b16 %v452
    %v1729 = vunpack.c.l.b16 %v453
    %v1730 = vunpack.c.h.b16 %v453
    %v1731 = vunpack.c.l.b16 %v454
    %v1732 = vunpack.c.h.b16 %v454
    %v1733 = vunpack.c.l.b16 %v455
    %v1734 = vunpack.c.h.b16 %v455
    %v1735 = vunpack.c.l.b16 %v456
    %v1736 = vunpack.c.h.b16 %v456
    %v1737 = vunpack.c.l.b16 %v457
    %v1738 = vunpack.c.h.b16 %v457
    %v1739 = vunpack.c.l.b16 %v458
    %v1740 = vunpack.c.h.b16 %v458
    %v1741 = vunpack.c.l.b16 %v459
    %v1742 = vunpack.c.h.b16 %v459
    %v1743 = vunpack.c.l.b16 %v460
    %v1744 = vunpack.c.h.b16 %v460
    %v1745 = vunpack.c.l.b16 %v461
    %v1746 = vunpack.c.h.b16 %v461
    %v1747 = vunpack.c.l.b16 %v462
    %v1748 = vunpack.c.h.b16 %v462
    %v1749 = vunpack.c.l.b16 %v463
    %v1750 = vunpack.c.h.b16 %v463
    %v1751 = vunpack.c.l.b16 %v464
    %v1752 = vunpack.c.h.b16 %v464
    %v1753 = vunpack.c.l.b16 %v465
    %v1754 = vunpack.c.h.b16 %v465
    %v1755 = vunpack.c.l.b16 %v466
    %v1756 = vunpack.c.h.b16 %v466
    %v1757 = vunpack.c.l.b16 %v467
    %v1758 = vunpack.c.h.b16 %v467
    %v1759 = vunpack.c.l.b16 %v468
    %v1760 = vunpack.c.h.b16 %v468
    %v1761 = vunpack.c.l.b16 %v469
    %v1762 = vunpack.c.h.b16 %v469
    %v1763 = vunpack.c.l.b16 %v470
    %v1764 = vunpack.c.h.b16 %v470
    %v1765 = vunpack.c.l.b16 %v471
    %v1766 = vunpack.c.h.b16 %v471
    %v1767 = vunpack.c.l.b16 %v472
    %v1768 = vunpack.c.h.b16 %v472
    %v1769 = vunpack.c.l.b16 %v473
    %v1770 = vunpack.c.h.b16 %v473
    %v1771 = vunpack.c.l.b16 %v474
    %v1772 = vunpack.c.h.b16 %v474
    %v1773 = vunpack.c.l.b16 %v475
    %v1774 = vunpack.c.h.b16 %v475
    %v1775 = vunpack.c.l.b16 %v476
    %v1776 = vunpack.c.h.b16 %v476
    %v1777 = vunpack.c.l.b16 %v477
    %v1778 = vunpack.c.h.b16 %v477
    %v1779 = vunpack.c.l.b16 %v478
    %v1780 = vunpack.c.h.b16 %v478
    %v1781 = vunpack.c.l.b16 %v479
    %v1782 = vunpack.c.h.b16 %v479
    %v1783 = vunpack.c.l.b16 %v480
    %v1784 = vunpack.c.h.b16 %v480
    %v1785 = vunpack.c.l.b16 %v481
    %v1786 = vunpack.c.h.b16 %v481
    %v1787 = vunpack.c.l.b16 %v482
    %v1788 = vunpack.c.h.b16 %v482
    %v1789 = vunpack.c.l.b16 %v483
    %v1790 = vunpack.c.h.b16 %v483
    %v1791 = vunpack.c.l.b16 %v484
    %v1792 = vunpack.c.h.b16 %v484
    %v1793 = vunpack.c.l.b16 %v485
    %v1794 = vunpack.c.h.b16 %v485
    %v1795 = vunpack.c.l.b16 %v486
    %v1796 = vunpack.c.h.b16 %v486
    %v1797 = vunpack.c.l.b16 %v487
    %v1798 = vunpack.c.h.b16 %v487
    %v1799 = vunpack.c.l.b16 %v488
    %v1800 = vunpack.c.h.b16 %v488
    %v1801 = vunpack.c.l.b16 %v489
    %v1802 = vunpack.c.h.b16 %v489
    %v1803 = vunpack.c.l.b16 %v490
    %v1804 = vunpack.c.h.b16 %v490
    %v1805 = vunpack.c.l.b16 %v491
    %v1806 = vunpack.c.h.b16 %v491
    %v1807 = vunpack.c.l.b16 %v492
    %v1808 = vunpack.c.h.b16 %v492
    %v1809 = vunpack.c.l.b16 %v493
    %v1810 = vunpack.c.h.b16 %v493
    %v1811 = vunpack.c.l.b16 %v494
    %v1812 = vunpack.c.h.b16 %v494
    %v1813 = vunpack.c.l.b16 %v495
    %v1814 = vunpack.c.h.b16 %v495
    %v1815 = vunpack.c.l.b16 %v496
    %v1816 = vunpack.c.h.b16 %v496
    %v1817 = vunpack.c.l.b16 %v497
    %v1818 = vunpack.c.h.b16 %v497
    %v1819 = vunpack.c.l.b16 %v498
    %v1820 = vunpack.c.h.b16 %v498
    %v1821 = vunpack.c.l.b16 %v499
    %v1822 = vunpack.c.h.b16 %v499
    %v1823 = vunpack.c.l.b16 %v500
    %v1824 = vunpack.c.h.b16 %v500
    %v1825 = vunpack.c.l.b16 %v501
    %v1826 = vunpack.c.h.b16 %v501
    %v1827 = vunpack.c.l.b16 %v502
    %v1828 = vunpack.c.h.b16 %v502
    %v1829 = vunpack.c.l.b16 %v503
    %v1830 = vunpack.c.h.b16 %v503
    %v1831 = vunpack.c.l.b16 %v504
    %v1832 = vunpack.c.h.b16 %v504
    %v1833 = vunpack.c.l.b16 %v505
    %v1834 = vunpack.c.h.b16 %v505
    %v1835 = vunpack.c.l.b16 %v506
    %v1836 = vunpack.c.h.b16 %v506
    %v1837 = vunpack.c.l.b16 %v507
    %v1838 = vunpack.c.h.b16 %v507
    %v1839 = vunpack.c.l.b16 %v508
    %v1840 = vunpack.c.h.b16 %v508
    %v1841 = vunpack.c.l.b16 %v509
    %v1842 = vunpack.c.h.b16 %v509
    %v1843 = vunpack.c.l.b16 %v510
    %v1844 = vunpack.c.h.b16 %v510
    %v1845 = vunpack.c.l.b16 %v511
    %v1846 = vunpack.c.h.b16 %v511
    %v1847 = vunpack.c.l.b16 %v512
    %v1848 = vunpack.c.h.b16 %v512
    %v1849 = vunpack.c.l.b16 %v513
    %v1850 = vunpack.c.h.b16 %v513
    %v1851 = vunpack.c.l.b16 %v514
    %v1852 = vunpack.c.h.b16 %v514
    %v1853 = vunpack.c.l.b16 %v515
    %v1854 = vunpack.c.h.b16 %v515
    %v1855 = vunpack.c.l.b16 %v516
    %v1856 = vunpack.c.h.b16 %v516
    %v1857 = vunpack.c.l.b16 %v517
    %v1858 = vunpack.c.h.b16 %v517
    %v1859 = vunpack.c.l.b16 %v518
    %v1860 = vunpack.c.h.b16 %v518
    %v1861 = vunpack.c.l.b16 %v519
    %v1862 = vunpack.c.h.b16 %v519
    %v1863 = vunpack.c.l.b16 %v520
    %v1864 = vunpack.c.h.b16 %v520
    %v1865 = vunpack.c.l.b16 %v521
    %v1866 = vunpack.c.h.b16 %v521
    %v1867 = vunpack.c.l.b16 %v522
    %v1868 = vunpack.c.h.b16 %v522
    %v1869 = vunpack.c.l.b16 %v523
    %v1870 = vunpack.c.h.b16 %v523
    %v1871 = vunpack.c.l.b16 %v524
    %v1872 = vunpack.c.h.b16 %v524
    %v1873 = vunpack.c.l.b16 %v525
    %v1874 = vunpack.c.h.b16 %v525
    %v1875 = vunpack.c.l.b16 %v526
    %v1876 = vunpack.c.h.b16 %v526
    %v1877 = vunpack.c.l.b16 %v527
    %v1878 = vunpack.c.h.b16 %v527
    %v1879 = vunpack.c.l.b16 %v528
    %v1880 = vunpack.c.h.b16 %v528
    %v1881 = vunpack.c.l.b16 %v529
    %v1882 = vunpack.c.h.b16 %v529
    %v1883 = vunpack.c.l.b16 %v530
    %v1884 = vunpack.c.h.b16 %v530
    %v1885 = vunpack.c.l.b16 %v531
    %v1886 = vunpack.c.h.b16 %v531
    %v1887 = vunpack.c.l.b16 %v532
    %v1888 = vunpack.c.h.b16 %v532
    %v1889 = vunpack.c.l.b16 %v533
    %v1890 = vunpack.c.h.b16 %v533
    %v1891 = vunpack.c.l.b16 %v534
    %v1892 = vunpack.c.h.b16 %v534
    %v1893 = vunpack.c.l.b16 %v535
    %v1894 = vunpack.c.h.b16 %v535
    %v1895 = vunpack.c.l.b16 %v536
    %v1896 = vunpack.c.h.b16 %v536
    %v1897 = vunpack.c.l.b16 %v537
    %v1898 = vunpack.c.h.b16 %v537
    %v1899 = vunpack.c.l.b16 %v538
    %v1900 = vunpack.c.h.b16 %v538
    %v1901 = vunpack.c.l.b16 %v539
    %v1902 = vunpack.c.h.b16 %v539
    %v1903 = vunpack.c.l.b16 %v540
    %v1904 = vunpack.c.h.b16 %v540
    %v1905 = vunpack.c.l.b16 %v541
    %v1906 = vunpack.c.h.b16 %v541
    %v1907 = vunpack.c.l.b16 %v542
    %v1908 = vunpack.c.h.b16 %v542
    %v1909 = vunpack.c.l.b16 %v543
    %v1910 = vunpack.c.h.b16 %v543
    %v1911 = vunpack.c.l.b16 %v544
    %v1912 = vunpack.c.h.b16 %v544
    %v1913 = vunpack.c.l.b16 %v545
    %v1914 = vunpack.c.h.b16 %v545
    %v1915 = vunpack.c.l.b16 %v546
    %v1916 = vunpack.c.h.b16 %v546
    %v1917 = vunpack.c.l.b16 %v547
    %v1918 = vunpack.c.h.b16 %v547
    %v1919 = vunpack.c.l.b16 %v548
    %v1920 = vunpack.c.h.b16 %v548
    %v1921 = vunpack.c.l.b16 %v549
    %v1922 = vunpack.c.h.b16 %v549
    %v1923 = vunpack.c.l.b16 %v550
    %v1924 = vunpack.c.h.b16 %v550
    %v1925 = vunpack.c.l.b16 %v551
    %v1926 = vunpack.c.h.b16 %v551
    %v1927 = vunpack.c.l.b16 %v552
    %v1928 = vunpack.c.h.b16 %v552
    %v1929 = vunpack.c.l.b16 %v553
    %v1930 = vunpack.c.h.b16 %v553
    %v1931 = vunpack.c.l.b16 %v554
    %v1932 = vunpack.c.h.b16 %v554
    %v1933 = vunpack.c.l.b16 %v555
    %v1934 = vunpack.c.h.b16 %v555
    %v1935 = vunpack.c.l.b16 %v556
    %v1936 = vunpack.c.h.b16 %v556
    %v1937 = vunpack.c.l.b16 %v557
    %v1938 = vunpack.c.h.b16 %v557
    %v1939 = vunpack.c.l.b16 %v558
    %v1940 = vunpack.c.h.b16 %v558
    %v1941 = vunpack.c.l.b16 %v559
    %v1942 = vunpack.c.h.b16 %v559
    %v1943 = vunpack.c.l.b16 %v560
    %v1944 = vunpack.c.h.b16 %v560
    %v1945 = vunpack.c.l.b16 %v561
    %v1946 = vunpack.c.h.b16 %v561
    %v1947 = vunpack.c.l.b16 %v562
    %v1948 = vunpack.c.h.b16 %v562
    %v1949 = vunpack.c.l.b16 %v563
    %v1950 = vunpack.c.h.b16 %v563
    %v1951 = vunpack.c.l.b16 %v564
    %v1952 = vunpack.c.h.b16 %v564
    %v1953 = vunpack.c.l.b16 %v565
    %v1954 = vunpack.c.h.b16 %v565
    %v1955 = vunpack.c.l.b16 %v566
    %v1956 = vunpack.c.h.b16 %v566
    %v1957 = vunpack.c.l.b16 %v567
    %v1958 = vunpack.c.h.b16 %v567
    %v1959 = vunpack.c.l.b16 %v568
    %v1960 = vunpack.c.h.b16 %v568
    %v1961 = vunpack.c.l.b16 %v569
    %v1962 = vunpack.c.h.b16 %v569
    %v1963 = vunpack.c.l.b16 %v570
    %v1964 = vunpack.c.h.b16 %v570
    %v1965 = vunpack.c.l.b16 %v571
    %v1966 = vunpack.c.h.b16 %v571
    %v1967 = vunpack.c.l.b16 %v572
    %v1968 = vunpack.c.h.b16 %v572
    %v1969 = vunpack.c.l.b16 %v573
    %v1970 = vunpack.c.h.b16 %v573
    %v1971 = vunpack.c.l.b16 %v574
    %v1972 = vunpack.c.h.b16 %v574
    %v1973 = vunpack.c.l.b16 %v575
    %v1974 = vunpack.c.h.b16 %v575
    %v1975 = vunpack.c.l.b16 %v576
    %v1976 = vunpack.c.h.b16 %v576
    %v1977 = vunpack.c.l.b16 %v577
    %v1978 = vunpack.c.h.b16 %v577
    %v1979 = vunpack.c.l.b16 %v578
    %v1980 = vunpack.c.h.b16 %v578
    %v1981 = vunpack.c.l.b16 %v579
    %v1982 = vunpack.c.h.b16 %v579
    %v1983 = vunpack.c.l.b16 %v580
    %v1984 = vunpack.c.h.b16 %v580
    %v1985 = vunpack.c.l.b16 %v581
    %v1986 = vunpack.c.h.b16 %v581
    %v1987 = vunpack.c.l.b16 %v582
    %v1988 = vunpack.c.h.b16 %v582
    %v1989 = vunpack.c.l.b16 %v583
    %v1990 = vunpack.c.h.b16 %v583
    %v1991 = vunpack.c.l.b16 %v584
    %v1992 = vunpack.c.h.b16 %v584
    %v1993 = vunpack.c.l.b16 %v585
    %v1994 = vunpack.c.h.b16 %v585
    %v1995 = vunpack.c.l.b16 %v586
    %v1996 = vunpack.c.h.b16 %v586
    %v1997 = vunpack.c.l.b16 %v587
    %v1998 = vunpack.c.h.b16 %v587
    %v1999 = vpack.c.b16 %v1111, %v1103
    %v2000 = vpack.c.b16 %v1112, %v1104
    %v2001 = vpack.c.b16 %v1113, %v1105
    %v2002 = vpack.c.b16 %v1114, %v1106
    %v2003 = vpack.c.b16 %v1115, %v1107
    %v2004 = vpack.c.b16 %v1116, %v1108
    %v2005 = vpack.c.b16 %v1117, %v1109
    %v2006 = vpack.c.b16 %v1118, %v1110
    %v2007 = vpack.c.b16 %v1127, %v1119
    %v2008 = vpack.c.b16 %v1128, %v1120
    %v2009 = vpack.c.b16 %v1129, %v1121
    %v2010 = vpack.c.b16 %v1130, %v1122
    %v2011 = vpack.c.b16 %v1131, %v1123
    %v2012 = vpack.c.b16 %v1132, %v1124
    %v2013 = vpack.c.b16 %v1133, %v1125
    %v2014 = vpack.c.b16 %v1134, %v1126
    %v2015 = vpack.c.b16 %v1143, %v1135
    %v2016 = vpack.c.b16 %v1144, %v1136
    %v2017 = vpack.c.b16 %v1145, %v1137
    %v2018 = vpack.c.b16 %v1146, %v1138
    %v2019 = vpack.c.b16 %v1147, %v1139
    %v2020 = vpack.c.b16 %v1148, %v1140
    %v2021 = vpack.c.b16 %v1149, %v1141
    %v2022 = vpack.c.b16 %v1150, %v1142
    %v2023 = vpack.c.b16 %v1159, %v1151
    %v2024 = vpack.c.b16 %v1160, %v1152
    %v2025 = vpack.c.b16 %v1161, %v1153
    %v2026 = vpack.c.b16 %v1162, %v1154
    %v2027 = vpack.c.b16 %v1163, %v1155
    %v2028 = vpack.c.b16 %v1164, %v1156
    %v2029 = vpack.c.b16 %v1165, %v1157
    %v2030 = vpack.c.b16 %v1166, %v1158
    %v2031 = vpack.c.b16 %v1175, %v1167
    %v2032 = vpack.c.b16 %v1176, %v1168
    %v2033 = vpack.c.b16 %v1177, %v1169
    %v2034 = vpack.c.b16 %v1178, %v1170
    %v2035 = vpack.c.b16 %v1179, %v1171
    %v2036 = vpack.c.b16 %v1180, %v1172
    %v2037 = vpack.c.b16 %v1181, %v1173
    %v2038 = vpack.c.b16 %v1182, %v1174
    %v2039 = vpack.c.b16 %v1191, %v1183
    %v2040 = vpack.c.b16 %v1192, %v1184
    %v2041 = vpack.c.b16 %v1193, %v1185
    %v2042 = vpack.c.b16 %v1194, %v1186
    %v2043 = vpack.c.b16 %v1195, %v1187
    %v2044 = vpack.c.b16 %v1196, %v1188
    %v2045 = vpack.c.b16 %v1197, %v1189
    %v2046 = vpack.c.b16 %v1198, %v1190
    %v2047 = vpack.c.b16 %v1207, %v1199
    %v2048 = vpack.c.b16 %v1208, %v1200
    %v2049 = vpack.c.b16 %v1209, %v1201
    %v2050 = vpack.c.b16 %v1210, %v1202
    %v2051 = vpack.c.b16 %v1211, %v1203
    %v2052 = vpack.c.b16 %v1212, %v1204
    %v2053 = vpack.c.b16 %v1213, %v1205
    %v2054 = vpack.c.b16 %v1214, %v1206
    %v2055 = vpack.c.b16 %v1223, %v1215
    %v2056 = vpack.c.b16 %v1224, %v1216
    %v2057 = vpack.c.b16 %v1225, %v1217
    %v2058 = vpack.c.b16 %v1226, %v1218
    %v2059 = vpack.c.b16 %v1227, %v1219
    %v2060 = vpack.c.b16 %v1228, %v1220
    %v2061 = vpack.c.b16 %v1229, %v1221
    %v2062 = vpack.c.b16 %v1230, %v1222
    %v2063 = vpack.c.b16 %v1239, %v1231
    %v2064 = vpack.c.b16 %v1240, %v1232
    %v2065 = vpack.c.b16 %v1241, %v1233
    %v2066 = vpack.c.b16 %v1242, %v1234
    %v2067 = vpack.c.b16 %v1243, %v1235
    %v2068 = vpack.c.b16 %v1244, %v1236
    %v2069 = vpack.c.b16 %v1245, %v1237
    %v2070 = vpack.c.b16 %v1246, %v1238
    %v2071 = vpack.c.b16 %v1255, %v1247
    %v2072 = vpack.c.b16 %v1256, %v1248
    %v2073 = vpack.c.b16 %v1257, %v1249
    %v2074 = vpack.c.b16 %v1258, %v1250
    %v2075 = vpack.c.b16 %v1259, %v1251
    %v2076 = vpack.c.b16 %v1260, %v1252
    %v2077 = vpack.c.b16 %v1261, %v1253
    %v2078 = vpack.c.b16 %v1262, %v1254
    %v2079 = vpack.c.b16 %v1271, %v1263
    %v2080 = vpack.c.b16 %v1272, %v1264
    %v2081 = vpack.c.b16 %v1273, %v1265
    %v2082 = vpack.c.b16 %v1274, %v1266
    %v2083 = vpack.c.b16 %v1275, %v1267
    %v2084 = vpack.c.b16 %v1276, %v1268
    %v2085 = vpack.c.b16 %v1277, %v1269
    %v2086 = vpack.c.b16 %v1278, %v1270
    %v2087 = vpack.c.b16 %v1287, %v1279
    %v2088 = vpack.c.b16 %v1288, %v1280
    %v2089 = vpack.c.b16 %v1289, %v1281
    %v2090 = vpack.c.b16 %v1290, %v1282
    %v2091 = vpack.c.b16 %v1291, %v1283
    %v2092 = vpack.c.b16 %v1292, %v1284
    %v2093 = vpack.c.b16 %v1293, %v1285
    %v2094 = vpack.c.b16 %v1294, %v1286
    %v2095 = vpack.c.b16 %v1303, %v1295
    %v2096 = vpack.c.b16 %v1304, %v1296
    %v2097 = vpack.c.b16 %v1305, %v1297
    %v2098 = vpack.c.b16 %v1306, %v1298
    %v2099 = vpack.c.b16 %v1307, %v1299
    %v2100 = vpack.c.b16 %v1308, %v1300
    %v2101 = vpack.c.b16 %v1309, %v1301
    %v2102 = vpack.c.b16 %v1310, %v1302
    %v2103 = vpack.c.b16 %v1319, %v1311
    %v2104 = vpack.c.b16 %v1320, %v1312
    %v2105 = vpack.c.b16 %v1321, %v1313
    %v2106 = vpack.c.b16 %v1322, %v1314
    %v2107 = vpack.c.b16 %v1323, %v1315
    %v2108 = vpack.c.b16 %v1324, %v1316
    %v2109 = vpack.c.b16 %v1325, %v1317
    %v2110 = vpack.c.b16 %v1326, %v1318
    %v2111 = vpack.c.b16 %v1335, %v1327
    %v2112 = vpack.c.b16 %v1336, %v1328
    %v2113 = vpack.c.b16 %v1337, %v1329
    %v2114 = vpack.c.b16 %v1338, %v1330
    %v2115 = vpack.c.b16 %v1339, %v1331
    %v2116 = vpack.c.b16 %v1340, %v1332
    %v2117 = vpack.c.b16 %v1341, %v1333
    %v2118 = vpack.c.b16 %v1342, %v1334
    %v2119 = vpack.c.b16 %v1351, %v1343
    %v2120 = vpack.c.b16 %v1352, %v1344
    %v2121 = vpack.c.b16 %v1353, %v1345
    %v2122 = vpack.c.b16 %v1354, %v1346
    %v2123 = vpack.c.b16 %v1355, %v1347
    %v2124 = vpack.c.b16 %v1356, %v1348
    %v2125 = vpack.c.b16 %v1357, %v1349
    %v2126 = vpack.c.b16 %v1358, %v1350
    %v2127 = vpack.c.b16 %v1367, %v1359
    %v2128 = vpack.c.b16 %v1368, %v1360
    %v2129 = vpack.c.b16 %v1369, %v1361
    %v2130 = vpack.c.b16 %v1370, %v1362
    %v2131 = vpack.c.b16 %v1371, %v1363
    %v2132 = vpack.c.b16 %v1372, %v1364
    %v2133 = vpack.c.b16 %v1373, %v1365
    %v2134 = vpack.c.b16 %v1374, %v1366
    %v2135 = vpack.c.b16 %v1383, %v1375
    %v2136 = vpack.c.b16 %v1384, %v1376
    %v2137 = vpack.c.b16 %v1385, %v1377
    %v2138 = vpack.c.b16 %v1386, %v1378
    %v2139 = vpack.c.b16 %v1387, %v1379
    %v2140 = vpack.c.b16 %v1388, %v1380
    %v2141 = vpack.c.b16 %v1389, %v1381
    %v2142 = vpack.c.b16 %v1390, %v1382
    %v2143 = vpack.c.b16 %v1399, %v1391
    %v2144 = vpack.c.b16 %v1400, %v1392
    %v2145 = vpack.c.b16 %v1401, %v1393
    %v2146 = vpack.c.b16 %v1402, %v1394
    %v2147 = vpack.c.b16 %v1403, %v1395
    %v2148 = vpack.c.b16 %v1404, %v1396
    %v2149 = vpack.c.b16 %v1405, %v1397
    %v2150 = vpack.c.b16 %v1406, %v1398
    %v2151 = vpack.c.b16 %v1415, %v1407
    %v2152 = vpack.c.b16 %v1416, %v1408
    %v2153 = vpack.c.b16 %v1417, %v1409
    %v2154 = vpack.c.b16 %v1418, %v1410
    %v2155 = vpack.c.b16 %v1419, %v1411
    %v2156 = vpack.c.b16 %v1420, %v1412
    %v2157 = vpack.c.b16 %v1421, %v1413
    %v2158 = vpack.c.b16 %v1422, %v1414
    %v2159 = vpack.c.b16 %v1431, %v1423
    %v2160 = vpack.c.b16 %v1432, %v1424
    %v2161 = vpack.c.b16 %v1433, %v1425
    %v2162 = vpack.c.b16 %v1434, %v1426
    %v2163 = vpack.c.b16 %v1435, %v1427
    %v2164 = vpack.c.b16 %v1436, %v1428
    %v2165 = vpack.c.b16 %v1437, %v1429
    %v2166 = vpack.c.b16 %v1438, %v1430
    %v2167 = vpack.c.b16 %v1447, %v1439
    %v2168 = vpack.c.b16 %v1448, %v1440
    %v2169 = vpack.c.b16 %v1449, %v1441
    %v2170 = vpack.c.b16 %v1450, %v1442
    %v2171 = vpack.c.b16 %v1451, %v1443
    %v2172 = vpack.c.b16 %v1452, %v1444
    %v2173 = vpack.c.b16 %v1453, %v1445
    %v2174 = vpack.c.b16 %v1454, %v1446
    %v2175 = vpack.c.b16 %v1463, %v1455
    %v2176 = vpack.c.b16 %v1464, %v1456
    %v2177 = vpack.c.b16 %v1465, %v1457
    %v2178 = vpack.c.b16 %v1466, %v1458
    %v2179 = vpack.c.b16 %v1467, %v1459
    %v2180 = vpack.c.b16 %v1468, %v1460
    %v2181 = vpack.c.b16 %v1469, %v1461
    %v2182 = vpack.c.b16 %v1470, %v1462
    %v2183 = vpack.c.b16 %v1479, %v1471
    %v2184 = vpack.c.b16 %v1480, %v1472
    %v2185 = vpack.c.b16 %v1481, %v1473
    %v2186 = vpack.c.b16 %v1482, %v1474
    %v2187 = vpack.c.b16 %v1483, %v1475
    %v2188 = vpack.c.b16 %v1484, %v1476
    %v2189 = vpack.c.b16 %v1485, %v1477
    %v2190 = vpack.c.b16 %v1486, %v1478
    %v2191 = vpack.c.b16 %v1495, %v1487
    %v2192 = vpack.c.b16 %v1496, %v1488
    %v2193 = vpack.c.b16 %v1497, %v1489
    %v2194 = vpack.c.b16 %v1498, %v1490
    %v2195 = vpack.c.b16 %v1499, %v1491
    %v2196 = vpack.c.b16 %v1500, %v1492
    %v2197 = vpack.c.b16 %v1501, %v1493
    %v2198 = vpack.c.b16 %v1502, %v1494
    %v2199 = vpack.c.b16 %v1511, %v1503
    %v2200 = vpack.c.b16 %v1512, %v1504
    %v2201 = vpack.c.b16 %v1513, %v1505
    %v2202 = vpack.c.b16 %v1514, %v1506
    %v2203 = vpack.c.b16 %v1515, %v1507
    %v2204 = vpack.c.b16 %v1516, %v1508
    %v2205 = vpack.c.b16 %v1517, %v1509
    %v2206 = vpack.c.b16 %v1518, %v1510
    %v2207 = vpack.c.b16 %v1527, %v1519
    %v2208 = vpack.c.b16 %v1528, %v1520
    %v2209 = vpack.c.b16 %v1529, %v1521
    %v2210 = vpack.c.b16 %v1530, %v1522
    %v2211 = vpack.c.b16 %v1531, %v1523
    %v2212 = vpack.c.b16 %v1532, %v1524
    %v2213 = vpack.c.b16 %v1533, %v1525
    %v2214 = vpack.c.b16 %v1534, %v1526
    %v2215 = vpack.c.b16 %v1543, %v1535
    %v2216 = vpack.c.b16 %v1544, %v1536
    %v2217 = vpack.c.b16 %v1545, %v1537
    %v2218 = vpack.c.b16 %v1546, %v1538
    %v2219 = vpack.c.b16 %v1547, %v1539
    %v2220 = vpack.c.b16 %v1548, %v1540
    %v2221 = vpack.c.b16 %v1549, %v1541
    %v2222 = vpack.c.b16 %v1550, %v1542
    %v2223 = vpack.c.b16 %v1559, %v1551
    %v2224 = vpack.c.b16 %v1560, %v1552
    %v2225 = vpack.c.b16 %v1561, %v1553
    %v2226 = vpack.c.b16 %v1562, %v1554
    %v2227 = vpack.c.b16 %v1563, %v1555
    %v2228 = vpack.c.b16 %v1564, %v1556
    %v2229 = vpack.c.b16 %v1565, %v1557
    %v2230 = vpack.c.b16 %v1566, %v1558
    %v2231 = vpack.c.b16 %v1575, %v1567
    %v2232 = vpack.c.b16 %v1576, %v1568
    %v2233 = vpack.c.b16 %v1577, %v1569
    %v2234 = vpack.c.b16 %v1578, %v1570
    %v2235 = vpack.c.b16 %v1579, %v1571
    %v2236 = vpack.c.b16 %v1580, %v1572
    %v2237 = vpack.c.b16 %v1581, %v1573
    %v2238 = vpack.c.b16 %v1582, %v1574
    %v2239 = vpack.c.b16 %v1591, %v1583
    %v2240 = vpack.c.b16 %v1592, %v1584
    %v2241 = vpack.c.b16 %v1593, %v1585
    %v2242 = vpack.c.b16 %v1594, %v1586
    %v2243 = vpack.c.b16 %v1595, %v1587
    %v2244 = vpack.c.b16 %v1596, %v1588
    %v2245 = vpack.c.b16 %v1597, %v1589
    %v2246 = vpack.c.b16 %v1598, %v1590
    %v2247 = vpack.c.b16 %v1607, %v1599
    %v2248 = vpack.c.b16 %v1608, %v1600
    %v2249 = vpack.c.b16 %v1609, %v1601
    %v2250 = vpack.c.b16 %v1610, %v1602
    %v2251 = vpack.c.b16 %v1611, %v1603
    %v2252 = vpack.c.b16 %v1612, %v1604
    %v2253 = vpack.c.b16 %v1613, %v1605
    %v2254 = vpack.c.b16 %v1614, %v1606
    %v2255 = vpack.c.b16 %v1623, %v1615
    %v2256 = vpack.c.b16 %v1624, %v1616
    %v2257 = vpack.c.b16 %v1625, %v1617
    %v2258 = vpack.c.b16 %v1626, %v1618
    %v2259 = vpack.c.b16 %v1627, %v1619
    %v2260 = vpack.c.b16 %v1628, %v1620
    %v2261 = vpack.c.b16 %v1629, %v1621
    %v2262 = vpack.c.b16 %v1630, %v1622
    %v2263 = vpack.c.b16 %v1639, %v1631
    %v2264 = vpack.c.b16 %v1640, %v1632
    %v2265 = vpack.c.b16 %v1641, %v1633
    %v2266 = vpack.c.b16 %v1642, %v1634
    %v2267 = vpack.c.b16 %v1643, %v1635
    %v2268 = vpack.c.b16 %v1644, %v1636
    %v2269 = vpack.c.b16 %v1645, %v1637
    %v2270 = vpack.c.b16 %v1646, %v1638
    %v2271 = vpack.c.b16 %v1655, %v1647
    %v2272 = vpack.c.b16 %v1656, %v1648
    %v2273 = vpack.c.b16 %v1657, %v1649
    %v2274 = vpack.c.b16 %v1658, %v1650
    %v2275 = vpack.c.b16 %v1659, %v1651
    %v2276 = vpack.c.b16 %v1660, %v1652
    %v2277 = vpack.c.b16 %v1661, %v1653
    %v2278 = vpack.c.b16 %v1662, %v1654
    %v2279 = vpack.c.b16 %v1671, %v1663
    %v2280 = vpack.c.b16 %v1672, %v1664
    %v2281 = vpack.c.b16 %v1673, %v1665
    %v2282 = vpack.c.b16 %v1674, %v1666
    %v2283 = vpack.c.b16 %v1675, %v1667
    %v2284 = vpack.c.b16 %v1676, %v1668
    %v2285 = vpack.c.b16 %v1677, %v1669
    %v2286 = vpack.c.b16 %v1678, %v1670
    %v2287 = vpack.c.b16 %v1687, %v1679
    %v2288 = vpack.c.b16 %v1688, %v1680
    %v2289 = vpack.c.b16 %v1689, %v1681
    %v2290 = vpack.c.b16 %v1690, %v1682
    %v2291 = vpack.c.b16 %v1691, %v1683
    %v2292 = vpack.c.b16 %v1692, %v1684
    %v2293 = vpack.c.b16 %v1693, %v1685
    %v2294 = vpack.c.b16 %v1694, %v1686
    %v2295 = vpack.c.b16 %v1703, %v1695
    %v2296 = vpack.c.b16 %v1704, %v1696
    %v2297 = vpack.c.b16 %v1705, %v1697
    %v2298 = vpack.c.b16 %v1706, %v1698
    %v2299 = vpack.c.b16 %v1707, %v1699
    %v2300 = vpack.c.b16 %v1708, %v1700
    %v2301 = vpack.c.b16 %v1709, %v1701
    %v2302 = vpack.c.b16 %v1710, %v1702
    %v2303 = vpack.c.b16 %v1719, %v1711
    %v2304 = vpack.c.b16 %v1720, %v1712
    %v2305 = vpack.c.b16 %v1721, %v1713
    %v2306 = vpack.c.b16 %v1722, %v1714
    %v2307 = vpack.c.b16 %v1723, %v1715
    %v2308 = vpack.c.b16 %v1724, %v1716
    %v2309 = vpack.c.b16 %v1725, %v1717
    %v2310 = vpack.c.b16 %v1726, %v1718
    %v2311 = vpack.c.b16 %v1735, %v1727
    %v2312 = vpack.c.b16 %v1736, %v1728
    %v2313 = vpack.c.b16 %v1737, %v1729
    %v2314 = vpack.c.b16 %v1738, %v1730
    %v2315 = vpack.c.b16 %v1739, %v1731
    %v2316 = vpack.c.b16 %v1740, %v1732
    %v2317 = vpack.c.b16 %v1741, %v1733
    %v2318 = vpack.c.b16 %v1742, %v1734
    %v2319 = vpack.c.b16 %v1751, %v1743
    %v2320 = vpack.c.b16 %v1752, %v1744
    %v2321 = vpack.c.b16 %v1753, %v1745
    %v2322 = vpack.c.b16 %v1754, %v1746
    %v2323 = vpack.c.b16 %v1755, %v1747
    %v2324 = vpack.c.b16 %v1756, %v1748
    %v2325 = vpack.c.b16 %v1757, %v1749
    %v2326 = vpack.c.b16 %v1758, %v1750
    %v2327 = vpack.c.b16 %v1767, %v1759
    %v2328 = vpack.c.b16 %v1768, %v1760
    %v2329 = vpack.c.b16 %v1769, %v1761
    %v2330 = vpack.c.b16 %v1770, %v1762
    %v2331 = vpack.c.b16 %v1771, %v1763
    %v2332 = vpack.c.b16 %v1772, %v1764
    %v2333 = vpack.c.b16 %v1773, %v1765
    %v2334 = vpack.c.b16 %v1774, %v1766
    %v2335 = vpack.c.b16 %v1783, %v1775
    %v2336 = vpack.c.b16 %v1784, %v1776
    %v2337 = vpack.c.b16 %v1785, %v1777
    %v2338 = vpack.c.b16 %v1786, %v1778
    %v2339 = vpack.c.b16 %v1787, %v1779
    %v2340 = vpack.c.b16 %v1788, %v1780
    %v2341 = vpack.c.b16 %v1789, %v1781
    %v2342 = vpack.c.b16 %v1790, %v1782
    %v2343 = vpack.c.b16 %v1799, %v1791
    %v2344 = vpack.c.b16 %v1800, %v1792
    %v2345 = vpack.c.b16 %v1801, %v1793
    %v2346 = vpack.c.b16 %v1802, %v1794
    %v2347 = vpack.c.b16 %v1803, %v1795
    %v2348 = vpack.c.b16 %v1804, %v1796
    %v2349 = vpack.c.b16 %v1805, %v1797
    %v2350 = vpack.c.b16 %v1806, %v1798
    %v2351 = vpack.c.b16 %v1815, %v1807
    %v2352 = vpack.c.b16 %v1816, %v1808
    %v2353 = vpack.c.b16 %v1817, %v1809
    %v2354 = vpack.c.b16 %v1818, %v1810
    %v2355 = vpack.c.b16 %v1819, %v1811
    %v2356 = vpack.c.b16 %v1820, %v1812
    %v2357 = vpack.c.b16 %v1821, %v1813
    %v2358 = vpack.c.b16 %v1822, %v1814
    %v2359 = vpack.c.b16 %v1831, %v1823
    %v2360 = vpack.c.b16 %v1832, %v1824
    %v2361 = vpack.c.b16 %v1833, %v1825
    %v2362 = vpack.c.b16 %v1834, %v1826
    %v2363 = vpack.c.b16 %v1835, %v1827
    %v2364 = vpack.c.b16 %v1836, %v1828
    %v2365 = vpack.c.b16 %v1837, %v1829
    %v2366 = vpack.c.b16 %v1838, %v1830
    %v2367 = vpack.c.b16 %v1847, %v1839
    %v2368 = vpack.c.b16 %v1848, %v1840
    %v2369 = vpack.c.b16 %v1849, %v1841
    %v2370 = vpack.c.b16 %v1850, %v1842
    %v2371 = vpack.c.b16 %v1851, %v1843
    %v2372 = vpack.c.b16 %v1852, %v1844
    %v2373 = vpack.c.b16 %v1853, %v1845
    %v2374 = vpack.c.b16 %v1854, %v1846
    %v2375 = vpack.c.b16 %v1863, %v1855
    %v2376 = vpack.c.b16 %v1864, %v1856
    %v2377 = vpack.c.b16 %v1865, %v1857
    %v2378 = vpack.c.b16 %v1866, %v1858
    %v2379 = vpack.c.b16 %v1867, %v1859
    %v2380 = vpack.c.b16 %v1868, %v1860
    %v2381 = vpack.c.b16 %v1869, %v1861
    %v2382 = vpack.c.b16 %v1870, %v1862
    %v2383 = vpack.c.b16 %v1879, %v1871
    %v2384 = vpack.c.b16 %v1880, %v1872
    %v2385 = vpack.c.b16 %v1881, %v1873
    %v2386 = vpack.c.b16 %v1882, %v1874
    %v2387 = vpack.c.b16 %v1883, %v1875
    %v2388 = vpack.c.b16 %v1884, %v1876
    %v2389 = vpack.c.b16 %v1885, %v1877
    %v2390 = vpack.c.b16 %v1886, %v1878
    %v2391 = vpack.c.b16 %v1895, %v1887
    %v2392 = vpack.c.b16 %v1896, %v1888
    %v2393 = vpack.c.b16 %v1897, %v1889
    %v2394 = vpack.c.b16 %v1898, %v1890
    %v2395 = vpack.c.b16 %v1899, %v1891
    %v2396 = vpack.c.b16 %v1900, %v1892
    %v2397 = vpack.c.b16 %v1901, %v1893
    %v2398 = vpack.c.b16 %v1902, %v1894
    %v2399 = vpack.c.b16 %v1911, %v1903
    %v2400 = vpack.c.b16 %v1912, %v1904
    %v2401 = vpack.c.b16 %v1913, %v1905
    %v2402 = vpack.c.b16 %v1914, %v1906
    %v2403 = vpack.c.b16 %v1915, %v1907
    %v2404 = vpack.c.b16 %v1916, %v1908
    %v2405 = vpack.c.b16 %v1917, %v1909
    %v2406 = vpack.c.b16 %v1918, %v1910
    %v2407 = vpack.c.b16 %v1927, %v1919
    %v2408 = vpack.c.b16 %v1928, %v1920
    %v2409 = vpack.c.b16 %v1929, %v1921
    %v2410 = vpack.c.b16 %v1930, %v1922
    %v2411 = vpack.c.b16 %v1931, %v1923
    %v2412 = vpack.c.b16 %v1932, %v1924
    %v2413 = vpack.c.b16 %v1933, %v1925
    %v2414 = vpack.c.b16 %v1934, %v1926
    %v2415 = vpack.c.b16 %v1943, %v1935
    %v2416 = vpack.c.b16 %v1944, %v1936
    %v2417 = vpack.c.b16 %v1945, %v1937
    %v2418 = vpack.c.b16 %v1946, %v1938
    %v2419 = vpack.c.b16 %v1947, %v1939
    %v2420 = vpack.c.b16 %v1948, %v1940
    %v2421 = vpack.c.b16 %v1949, %v1941
    %v2422 = vpack.c.b16 %v1950, %v1942
    %v2423 = vpack.c.b16 %v1959, %v1951
    %v2424 = vpack.c.b16 %v1960, %v1952
    %v2425 = vpack.c.b16 %v1961, %v1953
    %v2426 = vpack.c.b16 %v1962, %v1954
    %v2427 = vpack.c.b16 %v1963, %v1955
    %v2428 = vpack.c.b16 %v1964, %v1956
    %v2429 = vpack.c.b16 %v1965, %v1957
    %v2430 = vpack.c.b16 %v1966, %v1958
    %v2431 = vpack.c.b16 %v1975, %v1967
    %v2432 = vpack.c.b16 %v1976, %v1968
    %v2433 = vpack.c.b16 %v1977, %v1969
    %v2434 = vpack.c.b16 %v1978, %v1970
    %v2435 = vpack.c.b16 %v1979, %v1971
    %v2436 = vpack.c.b16 %v1980, %v1972
    %v2437 = vpack.c.b16 %v1981, %v1973
    %v2438 = vpack.c.b16 %v1982, %v1974
    %v2439 = vpack.c.b16 %v1991, %v1983
    %v2440 = vpack.c.b16 %v1992, %v1984
    %v2441 = vpack.c.b16 %v1993, %v1985
    %v2442 = vpack.c.b16 %v1994, %v1986
    %v2443 = vpack.c.b16 %v1995, %v1987
    %v2444 = vpack.c.b16 %v1996, %v1988
    %v2445 = vpack.c.b16 %v1997, %v1989
    %v2446 = vpack.c.b16 %v1998, %v1990
    %2895 = vmatprep.subr.bf16.mxu0 %v2000
    %2896 = vmatpush1.bf16.msra.mxu0 %v1999
    %2897 = vmatprep.subr.bf16.mxu0 %v2008
    %2898 = vmatpush1.bf16.msra.mxu0 %v2007
    %2899 = vmatprep.subr.bf16.mxu0 %v2016
    %2900 = vmatpush1.bf16.msra.mxu0 %v2015
    %2901 = vmatprep.subr.bf16.mxu0 %v2024
    %2902 = vmatpush1.bf16.msra.mxu0 %v2023
    %2903 = vmatprep.subr.bf16.mxu0 %v2032
    %2904 = vmatpush1.bf16.msra.mxu0 %v2031
    %2905 = vmatprep.subr.bf16.mxu0 %v2040
    %2906 = vmatpush1.bf16.msra.mxu0 %v2039
    %2907 = vmatprep.subr.bf16.mxu0 %v2048
    %2908 = vmatpush1.bf16.msra.mxu0 %v2047
    %2909 = vmatprep.subr.bf16.mxu0 %v2056
    %2910 = vmatpush1.bf16.msra.mxu0 %v2055
    %2911 = vmatprep.subr.bf16.mxu0 %v2064
    %2912 = vmatpush1.bf16.msra.mxu0 %v2063
    %2913 = vmatprep.subr.bf16.mxu0 %v2072
    %2914 = vmatpush1.bf16.msra.mxu0 %v2071
    %2915 = vmatprep.subr.bf16.mxu0 %v2080
    %2916 = vmatpush1.bf16.msra.mxu0 %v2079
    %2917 = vmatprep.subr.bf16.mxu0 %v2088
    %2918 = vmatpush1.bf16.msra.mxu0 %v2087
    %2919 = vmatprep.subr.bf16.mxu0 %v2096
    %2920 = vmatpush1.bf16.msra.mxu0 %v2095
    %2921 = vmatprep.subr.bf16.mxu0 %v2104
    %2922 = vmatpush1.bf16.msra.mxu0 %v2103
    %2923 = vmatprep.subr.bf16.mxu0 %v2112
    %2924 = vmatpush1.bf16.msra.mxu0 %v2111
    %2925 = vmatprep.subr.bf16.mxu0 %v2120
    %2926 = vmatpush1.bf16.msra.mxu0 %v2119
    %2927 = vmatprep.mubr.bf16.mxu0 %v642
    %2928 = vmatmul.mubr.bf16.gmra.mrb[0].mxu0 %v641
    %v2929 = vpop.f32.mrb[0].mxu0
    %v2930 = vadd.f32 %v593, %v2929
    %v2931 = vpop.f32.mrb[0].mxu0
    %v2932 = vadd.f32 %v597, %v2931
    %v2933 = vpop.f32.mrb[0].mxu0
    %v2934 = vpop.f32.mrb[0].mxu0
    %2935 = vdwg.mxu0
    %2936 = vmatprep.subr.bf16.mxu0 %v2128
    %2937 = vmatpush1.bf16.msra.mxu0 %v2127
    %2938 = vmatprep.subr.bf16.mxu0 %v2136
    %2939 = vmatpush1.bf16.msra.mxu0 %v2135
    %2940 = vmatprep.subr.bf16.mxu0 %v2144
    %2941 = vmatpush1.bf16.msra.mxu0 %v2143
    %2942 = vmatprep.subr.bf16.mxu0 %v2152
    %2943 = vmatpush1.bf16.msra.mxu0 %v2151
    %2944 = vmatprep.subr.bf16.mxu0 %v2160
    %2945 = vmatpush1.bf16.msra.mxu0 %v2159
    %2946 = vmatprep.subr.bf16.mxu0 %v2168
    %2947 = vmatpush1.bf16.msra.mxu0 %v2167
    %2948 = vmatprep.subr.bf16.mxu0 %v2176
    %2949 = vmatpush1.bf16.msra.mxu0 %v2175
    %2950 = vmatprep.subr.bf16.mxu0 %v2184
    %2951 = vmatpush1.bf16.msra.mxu0 %v2183
    %2952 = vmatprep.subr.bf16.mxu0 %v2192
    %2953 = vmatpush1.bf16.msra.mxu0 %v2191
    %2954 = vmatprep.subr.bf16.mxu0 %v2200
    %2955 = vmatpush1.bf16.msra.mxu0 %v2199
    %2956 = vmatprep.subr.bf16.mxu0 %v2208
    %2957 = vmatpush1.bf16.msra.mxu0 %v2207
    %2958 = vmatprep.subr.bf16.mxu0 %v2216
    %2959 = vmatpush1.bf16.msra.mxu0 %v2215
    %2960 = vmatprep.subr.bf16.mxu0 %v2224
    %2961 = vmatpush1.bf16.msra.mxu0 %v2223
    %2962 = vmatprep.subr.bf16.mxu0 %v2232
    %2963 = vmatpush1.bf16.msra.mxu0 %v2231
    %2964 = vmatprep.subr.bf16.mxu0 %v2240
    %2965 = vmatpush1.bf16.msra.mxu0 %v2239
    %2966 = vmatprep.subr.bf16.mxu0 %v2248
    %2967 = vmatpush1.bf16.msra.mxu0 %v2247
    %2968 = vmatprep.mubr.bf16.mxu0 %v644
    %2969 = vmatmul.mubr.bf16.gmra.mrb[0].mxu0 %v643
    %v2970 = vpop.f32.mrb[0].mxu0
    %v2971 = vadd.f32 %v2930, %v2970
    %v2972 = vpop.f32.mrb[0].mxu0
    %v2973 = vadd.f32 %v2932, %v2972
    %v2974 = vpop.f32.mrb[0].mxu0
    %v2975 = vpop.f32.mrb[0].mxu0
    %2976 = vdwg.mxu0
    %2977 = vmatprep.subr.bf16.mxu0 %v2256
    %2978 = vmatpush1.bf16.msra.mxu0 %v2255
    %2979 = vmatprep.subr.bf16.mxu0 %v2264
    %2980 = vmatpush1.bf16.msra.mxu0 %v2263
    %2981 = vmatprep.subr.bf16.mxu0 %v2272
    %2982 = vmatpush1.bf16.msra.mxu0 %v2271
    %2983 = vmatprep.subr.bf16.mxu0 %v2280
    %2984 = vmatpush1.bf16.msra.mxu0 %v2279
    %2985 = vmatprep.subr.bf16.mxu0 %v2288
    %2986 = vmatpush1.bf16.msra.mxu0 %v2287
    %2987 = vmatprep.subr.bf16.mxu0 %v2296
    %2988 = vmatpush1.bf16.msra.mxu0 %v2295
    %2989 = vmatprep.subr.bf16.mxu0 %v2304
    %2990 = vmatpush1.bf16.msra.mxu0 %v2303
    %2991 = vmatprep.subr.bf16.mxu0 %v2312
    %2992 = vmatpush1.bf16.msra.mxu0 %v2311
    %2993 = vmatprep.subr.bf16.mxu0 %v2320
    %2994 = vmatpush1.bf16.msra.mxu0 %v2319
    %2995 = vmatprep.subr.bf16.mxu0 %v2328
    %2996 = vmatpush1.bf16.msra.mxu0 %v2327
    %2997 = vmatprep.subr.bf16.mxu0 %v2336
    %2998 = vmatpush1.bf16.msra.mxu0 %v2335
    %2999 = vmatprep.subr.bf16.mxu0 %v2344
    %3000 = vmatpush1.bf16.msra.mxu0 %v2343
    %3001 = vmatprep.subr.bf16.mxu0 %v2352
    %3002 = vmatpush1.bf16.msra.mxu0 %v2351
    %3003 = vmatprep.subr.bf16.mxu0 %v2360
    %3004 = vmatpush1.bf16.msra.mxu0 %v2359
    %3005 = vmatprep.subr.bf16.mxu0 %v2368
    %3006 = vmatpush1.bf16.msra.mxu0 %v2367
    %3007 = vmatprep.subr.bf16.mxu0 %v2376
    %3008 = vmatpush1.bf16.msra.mxu0 %v2375
    %3009 = vmatprep.mubr.bf16.mxu0 %v646
    %3010 = vmatmul.mubr.bf16.gmra.mrb[0].mxu0 %v645
    %v3011 = vpop.f32.mrb[0].mxu0
    %v3012 = vadd.f32 %v2971, %v3011
    %v3013 = vpop.f32.mrb[0].mxu0
    %v3014 = vadd.f32 %v2973, %v3013
    %v3015 = vpop.f32.mrb[0].mxu0
    %v3016 = vpop.f32.mrb[0].mxu0
    %3017 = vdwg.mxu0
    %3018 = vmatprep.subr.bf16.mxu0 %v2384
    %3019 = vmatpush1.bf16.msra.mxu0 %v2383
    %3020 = vmatprep.subr.bf16.mxu0 %v2392
    %3021 = vmatpush1.bf16.msra.mxu0 %v2391
    %3022 = vmatprep.subr.bf16.mxu0 %v2400
    %3023 = vmatpush1.bf16.msra.mxu0 %v2399
    %3024 = vmatprep.subr.bf16.mxu0 %v2408
    %3025 = vmatpush1.bf16.msra.mxu0 %v2407
    %3026 = vmatprep.subr.bf16.mxu0 %v2416
    %3027 = vmatpush1.bf16.msra.mxu0 %v2415
    %3028 = vmatprep.subr.bf16.mxu0 %v2424
    %3029 = vmatpush1.bf16.msra.mxu0 %v2423
    %3030 = vmatprep.subr.bf16.mxu0 %v2432
    %3031 = vmatpush1.bf16.msra.mxu0 %v2431
    %3032 = vmatprep.subr.bf16.mxu0 %v2440
    %3033 = vmatpush1.bf16.msra.mxu0 %v2439
    %3034 = vmatprep.subr.bf16.mxu0 0
    %3035 = vmatpush1.bf16.msra.mxu0 0
    %3036 = vmatprep.subr.bf16.mxu0 0
    %3037 = vmatpush1.bf16.msra.mxu0 0
    %3038 = vmatprep.subr.bf16.mxu0 0
    %3039 = vmatpush1.bf16.msra.mxu0 0
    %3040 = vmatprep.subr.bf16.mxu0 0
    %3041 = vmatpush1.bf16.msra.mxu0 0
    %3042 = vmatprep.subr.bf16.mxu0 0
    %3043 = vmatpush1.bf16.msra.mxu0 0
    %3044 = vmatprep.subr.bf16.mxu0 0
    %3045 = vmatpush1.bf16.msra.mxu0 0
    %3046 = vmatprep.subr.bf16.mxu0 0
    %3047 = vmatpush1.bf16.msra.mxu0 0
    %3048 = vmatprep.subr.bf16.mxu0 0
    %3049 = vmatpush1.bf16.msra.mxu0 0
    %3050 = vmatprep.mubr.bf16.mxu0 0
    %3051 = vmatmul.mubr.bf16.gmra.mrb[0].mxu0 %v647
    %v3052 = vpop.f32.mrb[0].mxu0
    %v3053 = vadd.f32 %v3012, %v3052
    %v3054 = vpop.f32.mrb[0].mxu0
    %v3055 = vadd.f32 %v3014, %v3054
    %v3056 = vpop.f32.mrb[0].mxu0
    %v3057 = vpop.f32.mrb[0].mxu0
    %3058 = vdwg.mxu0
    %3059 = vmatprep.subr.bf16.mxu0 %v2002
    %3060 = vmatpush1.bf16.msra.mxu0 %v2001
    %3061 = vmatprep.subr.bf16.mxu0 %v2010
    %3062 = vmatpush1.bf16.msra.mxu0 %v2009
    %3063 = vmatprep.subr.bf16.mxu0 %v2018
    %3064 = vmatpush1.bf16.msra.mxu0 %v2017
    %3065 = vmatprep.subr.bf16.mxu0 %v2026
    %3066 = vmatpush1.bf16.msra.mxu0 %v2025
    %3067 = vmatprep.subr.bf16.mxu0 %v2034
    %3068 = vmatpush1.bf16.msra.mxu0 %v2033
    %3069 = vmatprep.subr.bf16.mxu0 %v2042
    %3070 = vmatpush1.bf16.msra.mxu0 %v2041
    %3071 = vmatprep.subr.bf16.mxu0 %v2050
    %3072 = vmatpush1.bf16.msra.mxu0 %v2049
    %3073 = vmatprep.subr.bf16.mxu0 %v2058
    %3074 = vmatpush1.bf16.msra.mxu0 %v2057
    %3075 = vmatprep.subr.bf16.mxu0 %v2066
    %3076 = vmatpush1.bf16.msra.mxu0 %v2065
    %3077 = vmatprep.subr.bf16.mxu0 %v2074
    %3078 = vmatpush1.bf16.msra.mxu0 %v2073
    %3079 = vmatprep.subr.bf16.mxu0 %v2082
    %3080 = vmatpush1.bf16.msra.mxu0 %v2081
    %3081 = vmatprep.subr.bf16.mxu0 %v2090
    %3082 = vmatpush1.bf16.msra.mxu0 %v2089
    %3083 = vmatprep.subr.bf16.mxu0 %v2098
    %3084 = vmatpush1.bf16.msra.mxu0 %v2097
    %3085 = vmatprep.subr.bf16.mxu0 %v2106
    %3086 = vmatpush1.bf16.msra.mxu0 %v2105
    %3087 = vmatprep.subr.bf16.mxu0 %v2114
    %3088 = vmatpush1.bf16.msra.mxu0 %v2113
    %3089 = vmatprep.subr.bf16.mxu0 %v2122
    %3090 = vmatpush1.bf16.msra.mxu0 %v2121
    %3091 = vmatprep.mubr.bf16.mxu0 %v642
    %3092 = vmatmul.mubr.bf16.gmra.mrb[0].mxu0 %v641
    %v3093 = vpop.f32.mrb[0].mxu0
    %v3094 = vadd.f32 %v601, %v3093
    %v3095 = vpop.f32.mrb[0].mxu0
    %v3096 = vadd.f32 %v605, %v3095
    %v3097 = vpop.f32.mrb[0].mxu0
    %v3098 = vpop.f32.mrb[0].mxu0
    %3099 = vdwg.mxu0
    %3100 = vmatprep.subr.bf16.mxu0 %v2130
    %3101 = vmatpush1.bf16.msra.mxu0 %v2129
    %3102 = vmatprep.subr.bf16.mxu0 %v2138
    %3103 = vmatpush1.bf16.msra.mxu0 %v2137
    %3104 = vmatprep.subr.bf16.mxu0 %v2146
    %3105 = vmatpush1.bf16.msra.mxu0 %v2145
    %3106 = vmatprep.subr.bf16.mxu0 %v2154
    %3107 = vmatpush1.bf16.msra.mxu0 %v2153
    %3108 = vmatprep.subr.bf16.mxu0 %v2162
    %3109 = vmatpush1.bf16.msra.mxu0 %v2161
    %3110 = vmatprep.subr.bf16.mxu0 %v2170
    %3111 = vmatpush1.bf16.msra.mxu0 %v2169
    %3112 = vmatprep.subr.bf16.mxu0 %v2178
    %3113 = vmatpush1.bf16.msra.mxu0 %v2177
    %3114 = vmatprep.subr.bf16.mxu0 %v2186
    %3115 = vmatpush1.bf16.msra.mxu0 %v2185
    %3116 = vmatprep.subr.bf16.mxu0 %v2194
    %3117 = vmatpush1.bf16.msra.mxu0 %v2193
    %3118 = vmatprep.subr.bf16.mxu0 %v2202
    %3119 = vmatpush1.bf16.msra.mxu0 %v2201
    %3120 = vmatprep.subr.bf16.mxu0 %v2210
    %3121 = vmatpush1.bf16.msra.mxu0 %v2209
    %3122 = vmatprep.subr.bf16.mxu0 %v2218
    %3123 = vmatpush1.bf16.msra.mxu0 %v2217
    %3124 = vmatprep.subr.bf16.mxu0 %v2226
    %3125 = vmatpush1.bf16.msra.mxu0 %v2225
    %3126 = vmatprep.subr.bf16.mxu0 %v2234
    %3127 = vmatpush1.bf16.msra.mxu0 %v2233
    %3128 = vmatprep.subr.bf16.mxu0 %v2242
    %3129 = vmatpush1.bf16.msra.mxu0 %v2241
    %3130 = vmatprep.subr.bf16.mxu0 %v2250
    %3131 = vmatpush1.bf16.msra.mxu0 %v2249
    %3132 = vmatprep.mubr.bf16.mxu0 %v644
    %3133 = vmatmul.mubr.bf16.gmra.mrb[0].mxu0 %v643
    %v3134 = vpop.f32.mrb[0].mxu0
    %v3135 = vadd.f32 %v3094, %v3134
    %v3136 = vpop.f32.mrb[0].mxu0
    %v3137 = vadd.f32 %v3096, %v3136
    %v3138 = vpop.f32.mrb[0].mxu0
    %v3139 = vpop.f32.mrb[0].mxu0
    %3140 = vdwg.mxu0
    %3141 = vmatprep.subr.bf16.mxu0 %v2258
    %3142 = vmatpush1.bf16.msra.mxu0 %v2257
    %3143 = vmatprep.subr.bf16.mxu0 %v2266
    %3144 = vmatpush1.bf16.msra.mxu0 %v2265
    %3145 = vmatprep.subr.bf16.mxu0 %v2274
    %3146 = vmatpush1.bf16.msra.mxu0 %v2273
    %3147 = vmatprep.subr.bf16.mxu0 %v2282
    %3148 = vmatpush1.bf16.msra.mxu0 %v2281
    %3149 = vmatprep.subr.bf16.mxu0 %v2290
    %3150 = vmatpush1.bf16.msra.mxu0 %v2289
    %3151 = vmatprep.subr.bf16.mxu0 %v2298
    %3152 = vmatpush1.bf16.msra.mxu0 %v2297
    %3153 = vmatprep.subr.bf16.mxu0 %v2306
    %3154 = vmatpush1.bf16.msra.mxu0 %v2305
    %3155 = vmatprep.subr.bf16.mxu0 %v2314
    %3156 = vmatpush1.bf16.msra.mxu0 %v2313
    %3157 = vmatprep.subr.bf16.mxu0 %v2322
    %3158 = vmatpush1.bf16.msra.mxu0 %v2321
    %3159 = vmatprep.subr.bf16.mxu0 %v2330
    %3160 = vmatpush1.bf16.msra.mxu0 %v2329
    %3161 = vmatprep.subr.bf16.mxu0 %v2338
    %3162 = vmatpush1.bf16.msra.mxu0 %v2337
    %3163 = vmatprep.subr.bf16.mxu0 %v2346
    %3164 = vmatpush1.bf16.msra.mxu0 %v2345
    %3165 = vmatprep.subr.bf16.mxu0 %v2354
    %3166 = vmatpush1.bf16.msra.mxu0 %v2353
    %3167 = vmatprep.subr.bf16.mxu0 %v2362
    %3168 = vmatpush1.bf16.msra.mxu0 %v2361
    %3169 = vmatprep.subr.bf16.mxu0 %v2370
    %3170 = vmatpush1.bf16.msra.mxu0 %v2369
    %3171 = vmatprep.subr.bf16.mxu0 %v2378
    %3172 = vmatpush1.bf16.msra.mxu0 %v2377
    %3173 = vmatprep.mubr.bf16.mxu0 %v646
    %3174 = vmatmul.mubr.bf16.gmra.mrb[0].mxu0 %v645
    %v3175 = vpop.f32.mrb[0].mxu0
    %v3176 = vadd.f32 %v3135, %v3175
    %v3177 = vpop.f32.mrb[0].mxu0
    %v3178 = vadd.f32 %v3137, %v3177
    %v3179 = vpop.f32.mrb[0].mxu0
    %v3180 = vpop.f32.mrb[0].mxu0
    %3181 = vdwg.mxu0
    %3182 = vmatprep.subr.bf16.mxu0 %v2386
    %3183 = vmatpush1.bf16.msra.mxu0 %v2385
    %3184 = vmatprep.subr.bf16.mxu0 %v2394
    %3185 = vmatpush1.bf16.msra.mxu0 %v2393
    %3186 = vmatprep.subr.bf16.mxu0 %v2402
    %3187 = vmatpush1.bf16.msra.mxu0 %v2401
    %3188 = vmatprep.subr.bf16.mxu0 %v2410
    %3189 = vmatpush1.bf16.msra.mxu0 %v2409
    %3190 = vmatprep.subr.bf16.mxu0 %v2418
    %3191 = vmatpush1.bf16.msra.mxu0 %v2417
    %3192 = vmatprep.subr.bf16.mxu0 %v2426
    %3193 = vmatpush1.bf16.msra.mxu0 %v2425
    %3194 = vmatprep.subr.bf16.mxu0 %v2434
    %3195 = vmatpush1.bf16.msra.mxu0 %v2433
    %3196 = vmatprep.subr.bf16.mxu0 %v2442
    %3197 = vmatpush1.bf16.msra.mxu0 %v2441
    %3198 = vmatprep.subr.bf16.mxu0 0
    %3199 = vmatpush1.bf16.msra.mxu0 0
    %3200 = vmatprep.subr.bf16.mxu0 0
    %3201 = vmatpush1.bf16.msra.mxu0 0
    %3202 = vmatprep.subr.bf16.mxu0 0
    %3203 = vmatpush1.bf16.msra.mxu0 0
    %3204 = vmatprep.subr.bf16.mxu0 0
    %3205 = vmatpush1.bf16.msra.mxu0 0
    %3206 = vmatprep.subr.bf16.mxu0 0
    %3207 = vmatpush1.bf16.msra.mxu0 0
    %3208 = vmatprep.subr.bf16.mxu0 0
    %3209 = vmatpush1.bf16.msra.mxu0 0
    %3210 = vmatprep.subr.bf16.mxu0 0
    %3211 = vmatpush1.bf16.msra.mxu0 0
    %3212 = vmatprep.subr.bf16.mxu0 0
    %3213 = vmatpush1.bf16.msra.mxu0 0
    %3214 = vmatprep.mubr.bf16.mxu0 0
    %3215 = vmatmul.mubr.bf16.gmra.mrb[0].mxu0 %v647
    %v3216 = vpop.f32.mrb[0].mxu0
    %v3217 = vadd.f32 %v3176, %v3216
    %v3218 = vpop.f32.mrb[0].mxu0
    %v3219 = vadd.f32 %v3178, %v3218
    %v3220 = vpop.f32.mrb[0].mxu0
    %v3221 = vpop.f32.mrb[0].mxu0
    %3222 = vdwg.mxu0
    %3223 = vmatprep.subr.bf16.mxu0 %v2004
    %3224 = vmatpush1.bf16.msra.mxu0 %v2003
    %3225 = vmatprep.subr.bf16.mxu0 %v2012
    %3226 = vmatpush1.bf16.msra.mxu0 %v2011
    %3227 = vmatprep.subr.bf16.mxu0 %v2020
    %3228 = vmatpush1.bf16.msra.mxu0 %v2019
    %3229 = vmatprep.subr.bf16.mxu0 %v2028
    %3230 = vmatpush1.bf16.msra.mxu0 %v2027
    %3231 = vmatprep.subr.bf16.mxu0 %v2036
    %3232 = vmatpush1.bf16.msra.mxu0 %v2035
    %3233 = vmatprep.subr.bf16.mxu0 %v2044
    %3234 = vmatpush1.bf16.msra.mxu0 %v2043
    %3235 = vmatprep.subr.bf16.mxu0 %v2052
    %3236 = vmatpush1.bf16.msra.mxu0 %v2051
    %3237 = vmatprep.subr.bf16.mxu0 %v2060
    %3238 = vmatpush1.bf16.msra.mxu0 %v2059
    %3239 = vmatprep.subr.bf16.mxu0 %v2068
    %3240 = vmatpush1.bf16.msra.mxu0 %v2067
    %3241 = vmatprep.subr.bf16.mxu0 %v2076
    %3242 = vmatpush1.bf16.msra.mxu0 %v2075
    %3243 = vmatprep.subr.bf16.mxu0 %v2084
    %3244 = vmatpush1.bf16.msra.mxu0 %v2083
    %3245 = vmatprep.subr.bf16.mxu0 %v2092
    %3246 = vmatpush1.bf16.msra.mxu0 %v2091
    %3247 = vmatprep.subr.bf16.mxu0 %v2100
    %3248 = vmatpush1.bf16.msra.mxu0 %v2099
    %3249 = vmatprep.subr.bf16.mxu0 %v2108
    %3250 = vmatpush1.bf16.msra.mxu0 %v2107
    %3251 = vmatprep.subr.bf16.mxu0 %v2116
    %3252 = vmatpush1.bf16.msra.mxu0 %v2115
    %3253 = vmatprep.subr.bf16.mxu0 %v2124
    %3254 = vmatpush1.bf16.msra.mxu0 %v2123
    %3255 = vmatprep.mubr.bf16.mxu0 %v642
    %3256 = vmatmul.mubr.bf16.gmra.mrb[0].mxu0 %v641
    %v3257 = vpop.f32.mrb[0].mxu0
    %v3258 = vadd.f32 %v609, %v3257
    %v3259 = vpop.f32.mrb[0].mxu0
    %v3260 = vadd.f32 %v613, %v3259
    %v3261 = vpop.f32.mrb[0].mxu0
    %v3262 = vpop.f32.mrb[0].mxu0
    %3263 = vdwg.mxu0
    %3264 = vmatprep.subr.bf16.mxu0 %v2132
    %3265 = vmatpush1.bf16.msra.mxu0 %v2131
    %3266 = vmatprep.subr.bf16.mxu0 %v2140
    %3267 = vmatpush1.bf16.msra.mxu0 %v2139
    %3268 = vmatprep.subr.bf16.mxu0 %v2148
    %3269 = vmatpush1.bf16.msra.mxu0 %v2147
    %3270 = vmatprep.subr.bf16.mxu0 %v2156
    %3271 = vmatpush1.bf16.msra.mxu0 %v2155
    %3272 = vmatprep.subr.bf16.mxu0 %v2164
    %3273 = vmatpush1.bf16.msra.mxu0 %v2163
    %3274 = vmatprep.subr.bf16.mxu0 %v2172
    %3275 = vmatpush1.bf16.msra.mxu0 %v2171
    %3276 = vmatprep.subr.bf16.mxu0 %v2180
    %3277 = vmatpush1.bf16.msra.mxu0 %v2179
    %3278 = vmatprep.subr.bf16.mxu0 %v2188
    %3279 = vmatpush1.bf16.msra.mxu0 %v2187
    %3280 = vmatprep.subr.bf16.mxu0 %v2196
    %3281 = vmatpush1.bf16.msra.mxu0 %v2195
    %3282 = vmatprep.subr.bf16.mxu0 %v2204
    %3283 = vmatpush1.bf16.msra.mxu0 %v2203
    %3284 = vmatprep.subr.bf16.mxu0 %v2212
    %3285 = vmatpush1.bf16.msra.mxu0 %v2211
    %3286 = vmatprep.subr.bf16.mxu0 %v2220
    %3287 = vmatpush1.bf16.msra.mxu0 %v2219
    %3288 = vmatprep.subr.bf16.mxu0 %v2228
    %3289 = vmatpush1.bf16.msra.mxu0 %v2227
    %3290 = vmatprep.subr.bf16.mxu0 %v2236
    %3291 = vmatpush1.bf16.msra.mxu0 %v2235
    %3292 = vmatprep.subr.bf16.mxu0 %v2244
    %3293 = vmatpush1.bf16.msra.mxu0 %v2243
    %3294 = vmatprep.subr.bf16.mxu0 %v2252
    %3295 = vmatpush1.bf16.msra.mxu0 %v2251
    %3296 = vmatprep.mubr.bf16.mxu0 %v644
    %3297 = vmatmul.mubr.bf16.gmra.mrb[0].mxu0 %v643
    %v3298 = vpop.f32.mrb[0].mxu0
    %v3299 = vadd.f32 %v3258, %v3298
    %v3300 = vpop.f32.mrb[0].mxu0
    %v3301 = vadd.f32 %v3260, %v3300
    %v3302 = vpop.f32.mrb[0].mxu0
    %v3303 = vpop.f32.mrb[0].mxu0
    %3304 = vdwg.mxu0
    %3305 = vmatprep.subr.bf16.mxu0 %v2260
    %3306 = vmatpush1.bf16.msra.mxu0 %v2259
    %3307 = vmatprep.subr.bf16.mxu0 %v2268
    %3308 = vmatpush1.bf16.msra.mxu0 %v2267
    %3309 = vmatprep.subr.bf16.mxu0 %v2276
    %3310 = vmatpush1.bf16.msra.mxu0 %v2275
    %3311 = vmatprep.subr.bf16.mxu0 %v2284
    %3312 = vmatpush1.bf16.msra.mxu0 %v2283
    %3313 = vmatprep.subr.bf16.mxu0 %v2292
    %3314 = vmatpush1.bf16.msra.mxu0 %v2291
    %3315 = vmatprep.subr.bf16.mxu0 %v2300
    %3316 = vmatpush1.bf16.msra.mxu0 %v2299
    %3317 = vmatprep.subr.bf16.mxu0 %v2308
    %3318 = vmatpush1.bf16.msra.mxu0 %v2307
    %3319 = vmatprep.subr.bf16.mxu0 %v2316
    %3320 = vmatpush1.bf16.msra.mxu0 %v2315
    %3321 = vmatprep.subr.bf16.mxu0 %v2324
    %3322 = vmatpush1.bf16.msra.mxu0 %v2323
    %3323 = vmatprep.subr.bf16.mxu0 %v2332
    %3324 = vmatpush1.bf16.msra.mxu0 %v2331
    %3325 = vmatprep.subr.bf16.mxu0 %v2340
    %3326 = vmatpush1.bf16.msra.mxu0 %v2339
    %3327 = vmatprep.subr.bf16.mxu0 %v2348
    %3328 = vmatpush1.bf16.msra.mxu0 %v2347
    %3329 = vmatprep.subr.bf16.mxu0 %v2356
    %3330 = vmatpush1.bf16.msra.mxu0 %v2355
    %3331 = vmatprep.subr.bf16.mxu0 %v2364
    %3332 = vmatpush1.bf16.msra.mxu0 %v2363
    %3333 = vmatprep.subr.bf16.mxu0 %v2372
    %3334 = vmatpush1.bf16.msra.mxu0 %v2371
    %3335 = vmatprep.subr.bf16.mxu0 %v2380
    %3336 = vmatpush1.bf16.msra.mxu0 %v2379
    %3337 = vmatprep.mubr.bf16.mxu0 %v646
    %3338 = vmatmul.mubr.bf16.gmra.mrb[0].mxu0 %v645
    %v3339 = vpop.f32.mrb[0].mxu0
    %v3340 = vadd.f32 %v3299, %v3339
    %v3341 = vpop.f32.mrb[0].mxu0
    %v3342 = vadd.f32 %v3301, %v3341
    %v3343 = vpop.f32.mrb[0].mxu0
    %v3344 = vpop.f32.mrb[0].mxu0
    %3345 = vdwg.mxu0
    %3346 = vmatprep.subr.bf16.mxu0 %v2388
    %3347 = vmatpush1.bf16.msra.mxu0 %v2387
    %3348 = vmatprep.subr.bf16.mxu0 %v2396
    %3349 = vmatpush1.bf16.msra.mxu0 %v2395
    %3350 = vmatprep.subr.bf16.mxu0 %v2404
    %3351 = vmatpush1.bf16.msra.mxu0 %v2403
    %3352 = vmatprep.subr.bf16.mxu0 %v2412
    %3353 = vmatpush1.bf16.msra.mxu0 %v2411
    %3354 = vmatprep.subr.bf16.mxu0 %v2420
    %3355 = vmatpush1.bf16.msra.mxu0 %v2419
    %3356 = vmatprep.subr.bf16.mxu0 %v2428
    %3357 = vmatpush1.bf16.msra.mxu0 %v2427
    %3358 = vmatprep.subr.bf16.mxu0 %v2436
    %3359 = vmatpush1.bf16.msra.mxu0 %v2435
    %3360 = vmatprep.subr.bf16.mxu0 %v2444
    %3361 = vmatpush1.bf16.msra.mxu0 %v2443
    %3362 = vmatprep.subr.bf16.mxu0 0
    %3363 = vmatpush1.bf16.msra.mxu0 0
    %3364 = vmatprep.subr.bf16.mxu0 0
    %3365 = vmatpush1.bf16.msra.mxu0 0
    %3366 = vmatprep.subr.bf16.mxu0 0
    %3367 = vmatpush1.bf16.msra.mxu0 0
    %3368 = vmatprep.subr.bf16.mxu0 0
    %3369 = vmatpush1.bf16.msra.mxu0 0
    %3370 = vmatprep.subr.bf16.mxu0 0
    %3371 = vmatpush1.bf16.msra.mxu0 0
    %3372 = vmatprep.subr.bf16.mxu0 0
    %3373 = vmatpush1.bf16.msra.mxu0 0
    %3374 = vmatprep.subr.bf16.mxu0 0
    %3375 = vmatpush1.bf16.msra.mxu0 0
    %3376 = vmatprep.subr.bf16.mxu0 0
    %3377 = vmatpush1.bf16.msra.mxu0 0
    %3378 = vmatprep.mubr.bf16.mxu0 0
    %3379 = vmatmul.mubr.bf16.gmra.mrb[0].mxu0 %v647
    %v3380 = vpop.f32.mrb[0].mxu0
    %v3381 = vadd.f32 %v3340, %v3380
    %v3382 = vpop.f32.mrb[0].mxu0
    %v3383 = vadd.f32 %v3342, %v3382
    %v3384 = vpop.f32.mrb[0].mxu0
    %v3385 = vpop.f32.mrb[0].mxu0
    %3386 = vdwg.mxu0
    %3387 = vmatprep.subr.bf16.mxu0 %v2006
    %3388 = vmatpush1.bf16.msra.mxu0 %v2005
    %3389 = vmatprep.subr.bf16.mxu0 %v2014
    %3390 = vmatpush1.bf16.msra.mxu0 %v2013
    %3391 = vmatprep.subr.bf16.mxu0 %v2022
    %3392 = vmatpush1.bf16.msra.mxu0 %v2021
    %3393 = vmatprep.subr.bf16.mxu0 %v2030
    %3394 = vmatpush1.bf16.msra.mxu0 %v2029
    %3395 = vmatprep.subr.bf16.mxu0 %v2038
    %3396 = vmatpush1.bf16.msra.mxu0 %v2037
    %3397 = vmatprep.subr.bf16.mxu0 %v2046
    %3398 = vmatpush1.bf16.msra.mxu0 %v2045
    %3399 = vmatprep.subr.bf16.mxu0 %v2054
    %3400 = vmatpush1.bf16.msra.mxu0 %v2053
    %3401 = vmatprep.subr.bf16.mxu0 %v2062
    %3402 = vmatpush1.bf16.msra.mxu0 %v2061
    %3403 = vmatprep.subr.bf16.mxu0 %v2070
    %3404 = vmatpush1.bf16.msra.mxu0 %v2069
    %3405 = vmatprep.subr.bf16.mxu0 %v2078
    %3406 = vmatpush1.bf16.msra.mxu0 %v2077
    %3407 = vmatprep.subr.bf16.mxu0 %v2086
    %3408 = vmatpush1.bf16.msra.mxu0 %v2085
    %3409 = vmatprep.subr.bf16.mxu0 %v2094
    %3410 = vmatpush1.bf16.msra.mxu0 %v2093
    %3411 = vmatprep.subr.bf16.mxu0 %v2102
    %3412 = vmatpush1.bf16.msra.mxu0 %v2101
    %3413 = vmatprep.subr.bf16.mxu0 %v2110
    %3414 = vmatpush1.bf16.msra.mxu0 %v2109
    %3415 = vmatprep.subr.bf16.mxu0 %v2118
    %3416 = vmatpush1.bf16.msra.mxu0 %v2117
    %3417 = vmatprep.subr.bf16.mxu0 %v2126
    %3418 = vmatpush1.bf16.msra.mxu0 %v2125
    %3419 = vmatprep.mubr.bf16.mxu0 %v642
    %3420 = vmatmul.mubr.bf16.gmra.mrb[0].mxu0 %v641
    %v3421 = vpop.f32.mrb[0].mxu0
    %v3422 = vadd.f32 %v617, %v3421
    %v3423 = vpop.f32.mrb[0].mxu0
    %v3424 = vadd.f32 %v621, %v3423
    %v3425 = vpop.f32.mrb[0].mxu0
    %v3426 = vpop.f32.mrb[0].mxu0
    %3427 = vdwg.mxu0
    %3428 = vmatprep.subr.bf16.mxu0 %v2134
    %3429 = vmatpush1.bf16.msra.mxu0 %v2133
    %3430 = vmatprep.subr.bf16.mxu0 %v2142
    %3431 = vmatpush1.bf16.msra.mxu0 %v2141
    %3432 = vmatprep.subr.bf16.mxu0 %v2150
    %3433 = vmatpush1.bf16.msra.mxu0 %v2149
    %3434 = vmatprep.subr.bf16.mxu0 %v2158
    %3435 = vmatpush1.bf16.msra.mxu0 %v2157
    %3436 = vmatprep.subr.bf16.mxu0 %v2166
    %3437 = vmatpush1.bf16.msra.mxu0 %v2165
    %3438 = vmatprep.subr.bf16.mxu0 %v2174
    %3439 = vmatpush1.bf16.msra.mxu0 %v2173
    %3440 = vmatprep.subr.bf16.mxu0 %v2182
    %3441 = vmatpush1.bf16.msra.mxu0 %v2181
    %3442 = vmatprep.subr.bf16.mxu0 %v2190
    %3443 = vmatpush1.bf16.msra.mxu0 %v2189
    %3444 = vmatprep.subr.bf16.mxu0 %v2198
    %3445 = vmatpush1.bf16.msra.mxu0 %v2197
    %3446 = vmatprep.subr.bf16.mxu0 %v2206
    %3447 = vmatpush1.bf16.msra.mxu0 %v2205
    %3448 = vmatprep.subr.bf16.mxu0 %v2214
    %3449 = vmatpush1.bf16.msra.mxu0 %v2213
    %3450 = vmatprep.subr.bf16.mxu0 %v2222
    %3451 = vmatpush1.bf16.msra.mxu0 %v2221
    %3452 = vmatprep.subr.bf16.mxu0 %v2230
    %3453 = vmatpush1.bf16.msra.mxu0 %v2229
    %3454 = vmatprep.subr.bf16.mxu0 %v2238
    %3455 = vmatpush1.bf16.msra.mxu0 %v2237
    %3456 = vmatprep.subr.bf16.mxu0 %v2246
    %3457 = vmatpush1.bf16.msra.mxu0 %v2245
    %3458 = vmatprep.subr.bf16.mxu0 %v2254
    %3459 = vmatpush1.bf16.msra.mxu0 %v2253
    %3460 = vmatprep.mubr.bf16.mxu0 %v644
    %3461 = vmatmul.mubr.bf16.gmra.mrb[0].mxu0 %v643
    %v3462 = vpop.f32.mrb[0].mxu0
    %v3463 = vadd.f32 %v3422, %v3462
    %v3464 = vpop.f32.mrb[0].mxu0
    %v3465 = vadd.f32 %v3424, %v3464
    %v3466 = vpop.f32.mrb[0].mxu0
    %v3467 = vpop.f32.mrb[0].mxu0
    %3468 = vdwg.mxu0
    %3469 = vmatprep.subr.bf16.mxu0 %v2262
    %3470 = vmatpush1.bf16.msra.mxu0 %v2261
    %3471 = vmatprep.subr.bf16.mxu0 %v2270
    %3472 = vmatpush1.bf16.msra.mxu0 %v2269
    %3473 = vmatprep.subr.bf16.mxu0 %v2278
    %3474 = vmatpush1.bf16.msra.mxu0 %v2277
    %3475 = vmatprep.subr.bf16.mxu0 %v2286
    %3476 = vmatpush1.bf16.msra.mxu0 %v2285
    %3477 = vmatprep.subr.bf16.mxu0 %v2294
    %3478 = vmatpush1.bf16.msra.mxu0 %v2293
    %3479 = vmatprep.subr.bf16.mxu0 %v2302
    %3480 = vmatpush1.bf16.msra.mxu0 %v2301
    %3481 = vmatprep.subr.bf16.mxu0 %v2310
    %3482 = vmatpush1.bf16.msra.mxu0 %v2309
    %3483 = vmatprep.subr.bf16.mxu0 %v2318
    %3484 = vmatpush1.bf16.msra.mxu0 %v2317
    %3485 = vmatprep.subr.bf16.mxu0 %v2326
    %3486 = vmatpush1.bf16.msra.mxu0 %v2325
    %3487 = vmatprep.subr.bf16.mxu0 %v2334
    %3488 = vmatpush1.bf16.msra.mxu0 %v2333
    %3489 = vmatprep.subr.bf16.mxu0 %v2342
    %3490 = vmatpush1.bf16.msra.mxu0 %v2341
    %3491 = vmatprep.subr.bf16.mxu0 %v2350
    %3492 = vmatpush1.bf16.msra.mxu0 %v2349
    %3493 = vmatprep.subr.bf16.mxu0 %v2358
    %3494 = vmatpush1.bf16.msra.mxu0 %v2357
    %3495 = vmatprep.subr.bf16.mxu0 %v2366
    %3496 = vmatpush1.bf16.msra.mxu0 %v2365
    %3497 = vmatprep.subr.bf16.mxu0 %v2374
    %3498 = vmatpush1.bf16.msra.mxu0 %v2373
    %3499 = vmatprep.subr.bf16.mxu0 %v2382
    %3500 = vmatpush1.bf16.msra.mxu0 %v2381
    %3501 = vmatprep.mubr.bf16.mxu0 %v646
    %3502 = vmatmul.mubr.bf16.gmra.mrb[0].mxu0 %v645
    %v3503 = vpop.f32.mrb[0].mxu0
    %v3504 = vadd.f32 %v3463, %v3503
    %v3505 = vpop.f32.mrb[0].mxu0
    %v3506 = vadd.f32 %v3465, %v3505
    %v3507 = vpop.f32.mrb[0].mxu0
    %v3508 = vpop.f32.mrb[0].mxu0
    %3509 = vdwg.mxu0
    %3510 = vmatprep.subr.bf16.mxu0 %v2390
    %3511 = vmatpush1.bf16.msra.mxu0 %v2389
    %3512 = vmatprep.subr.bf16.mxu0 %v2398
    %3513 = vmatpush1.bf16.msra.mxu0 %v2397
    %3514 = vmatprep.subr.bf16.mxu0 %v2406
    %3515 = vmatpush1.bf16.msra.mxu0 %v2405
    %3516 = vmatprep.subr.bf16.mxu0 %v2414
    %3517 = vmatpush1.bf16.msra.mxu0 %v2413
    %3518 = vmatprep.subr.bf16.mxu0 %v2422
    %3519 = vmatpush1.bf16.msra.mxu0 %v2421
    %3520 = vmatprep.subr.bf16.mxu0 %v2430
    %3521 = vmatpush1.bf16.msra.mxu0 %v2429
    %3522 = vmatprep.subr.bf16.mxu0 %v2438
    %3523 = vmatpush1.bf16.msra.mxu0 %v2437
    %3524 = vmatprep.subr.bf16.mxu0 %v2446
    %3525 = vmatpush1.bf16.msra.mxu0 %v2445
    %3526 = vmatprep.subr.bf16.mxu0 0
    %3527 = vmatpush1.bf16.msra.mxu0 0
    %3528 = vmatprep.subr.bf16.mxu0 0
    %3529 = vmatpush1.bf16.msra.mxu0 0
    %3530 = vmatprep.subr.bf16.mxu0 0
    %3531 = vmatpush1.bf16.msra.mxu0 0
    %3532 = vmatprep.subr.bf16.mxu0 0
    %3533 = vmatpush1.bf16.msra.mxu0 0
    %3534 = vmatprep.subr.bf16.mxu0 0
    %3535 = vmatpush1.bf16.msra.mxu0 0
    %3536 = vmatprep.subr.bf16.mxu0 0
    %3537 = vmatpush1.bf16.msra.mxu0 0
    %3538 = vmatprep.subr.bf16.mxu0 0
    %3539 = vmatpush1.bf16.msra.mxu0 0
    %3540 = vmatprep.subr.bf16.mxu0 0
    %3541 = vmatpush1.bf16.msra.mxu0 0
    %3542 = vmatprep.mubr.bf16.mxu0 0
    %3543 = vmatmul.mubr.bf16.gmra.mrb[0].mxu0 %v647
    %v3544 = vpop.f32.mrb[0].mxu0
    %v3545 = vadd.f32 %v3504, %v3544
    %v3546 = vpop.f32.mrb[0].mxu0
    %v3547 = vadd.f32 %v3506, %v3546
    %v3548 = vpop.f32.mrb[0].mxu0
    %v3549 = vpop.f32.mrb[0].mxu0
    %3550 = vdwg.mxu0
    %vm3551 = vcmp.gt.f32.partialorder %v3053, 0.0
    %vm3552 = vcmp.gt.f32.partialorder %v3055, 0.0
    %vm3553 = vcmp.gt.f32.partialorder %v3217, 0.0
    %vm3554 = vcmp.gt.f32.partialorder %v3219, 0.0
    %vm3555 = vcmp.gt.f32.partialorder %v3381, 0.0
    %vm3556 = vcmp.gt.f32.partialorder %v3383, 0.0
    %vm3557 = vcmp.gt.f32.partialorder %v3545, 0.0
    %vm3558 = vcmp.gt.f32.partialorder %v3547, 0.0
    %v3559 = vmul.f32 %v3053, 0.2
    %v3560 = vmul.f32 %v3055, 0.2
    %v3561 = vmul.f32 %v3217, 0.2
    %v3562 = vmul.f32 %v3219, 0.2
    %v3563 = vmul.f32 %v3381, 0.2
    %v3564 = vmul.f32 %v3383, 0.2
    %v3565 = vmul.f32 %v3545, 0.2
    %v3566 = vmul.f32 %v3547, 0.2
    %v3567 = vsel %vm3551, %v3053, %v3559
    %v3568 = vsel %vm3552, %v3055, %v3560
    %v3569 = vsel %vm3553, %v3217, %v3561
    %v3570 = vsel %vm3554, %v3219, %v3562
    %v3571 = vsel %vm3555, %v3381, %v3563
    %v3572 = vsel %vm3556, %v3383, %v3564
    %v3573 = vsel %vm3557, %v3545, %v3565
    %v3574 = vsel %vm3558, %v3547, %v3566
    %v3575 = vpack.c.bf16 %v3567, %v3567
    %v3576 = vpack.c.bf16 %v3568, %v3568
    %v3577 = vpack.c.bf16 %v3569, %v3569
    %v3578 = vpack.c.bf16 %v3570, %v3570
    %v3579 = vpack.c.bf16 %v3571, %v3571
    %v3580 = vpack.c.bf16 %v3572, %v3572
    %v3581 = vpack.c.bf16 %v3573, %v3573
    %v3582 = vpack.c.bf16 %v3574, %v3574
    %v3583 = vld [vmem:[#allocation6] sm:$0xff]
    %v3584 = vld [vmem:[#allocation6 + $0x8] sm:$0xff]
    %v3585 = vld [vmem:[#allocation6 + $0x10] sm:$0xff]
    %v3586 = vld [vmem:[#allocation6 + $0x18] sm:$0xff]
    %v3587 = vld [vmem:[#allocation6 + $0x20] sm:$0xff]
    %v3588 = vld [vmem:[#allocation6 + $0x28] sm:$0xff]
    %v3589 = vld [vmem:[#allocation6 + $0x30] sm:$0xff]
    %v3590 = vld [vmem:[#allocation6 + $0x38] sm:$0xff]
    %v3591 = vld [vmem:[#allocation6 + $0x40] sm:$0xff]
    %v3592 = vld [vmem:[#allocation6 + $0x48] sm:$0xff]
    %v3593 = vld [vmem:[#allocation6 + $0x50] sm:$0xff]
    %v3594 = vld [vmem:[#allocation6 + $0x58] sm:$0xff]
    %v3595 = vld [vmem:[#allocation6 + $0x60] sm:$0xff]
    %v3596 = vld [vmem:[#allocation6 + $0x68] sm:$0xff]
    %v3597 = vld [vmem:[#allocation6 + $0x70] sm:$0xff]
    %v3598 = vld [vmem:[#allocation6 + $0x78] sm:$0xff]
    %v3599 = vld [vmem:[#allocation6 + $0x80] sm:$0xff]
    %v3600 = vld [vmem:[#allocation6 + $0x88] sm:$0xff]
    %v3601 = vld [vmem:[#allocation6 + $0x90] sm:$0xff]
    %v3602 = vld [vmem:[#allocation6 + $0x98] sm:$0xff]
    %v3603 = vld [vmem:[#allocation6 + $0xa0] sm:$0xff]
    %v3604 = vld [vmem:[#allocation6 + $0xa8] sm:$0xff]
    %v3605 = vld [vmem:[#allocation6 + $0xb0] sm:$0xff]
    %v3606 = vld [vmem:[#allocation6 + $0xb8] sm:$0xff]
    %v3607 = vld [vmem:[#allocation6 + $0xc0] sm:$0xff]
    %v3608 = vld [vmem:[#allocation6 + $0xc8] sm:$0xff]
    %v3609 = vld [vmem:[#allocation6 + $0xd0] sm:$0xff]
    %v3610 = vld [vmem:[#allocation6 + $0xd8] sm:$0xff]
    %v3611 = vld [vmem:[#allocation6 + $0xe0] sm:$0xff]
    %v3612 = vld [vmem:[#allocation6 + $0xe8] sm:$0xff]
    %v3613 = vld [vmem:[#allocation6 + $0xf0] sm:$0xff]
    %v3614 = vld [vmem:[#allocation6 + $0xf8] sm:$0xff]
    %v3615 = vld [vmem:[#allocation6 + $0x100] sm:$0xff]
    %v3616 = vld [vmem:[#allocation6 + $0x108] sm:$0xff]
    %v3617 = vld [vmem:[#allocation6 + $0x110] sm:$0xff]
    %v3618 = vld [vmem:[#allocation6 + $0x118] sm:$0xff]
    %v3619 = vld [vmem:[#allocation6 + $0x120] sm:$0xff]
    %v3620 = vld [vmem:[#allocation6 + $0x128] sm:$0xff]
    %v3621 = vld [vmem:[#allocation6 + $0x130] sm:$0xff]
    %v3622 = vld [vmem:[#allocation6 + $0x138] sm:$0xff]
    %v3623 = vld [vmem:[#allocation6 + $0x140] sm:$0xff]
    %v3624 = vld [vmem:[#allocation6 + $0x148] sm:$0xff]
    %v3625 = vld [vmem:[#allocation6 + $0x150] sm:$0xff]
    %v3626 = vld [vmem:[#allocation6 + $0x158] sm:$0xff]
    %v3627 = vld [vmem:[#allocation6 + $0x160] sm:$0xff]
    %v3628 = vld [vmem:[#allocation6 + $0x168] sm:$0xff]
    %v3629 = vld [vmem:[#allocation6 + $0x170] sm:$0xff]
    %v3630 = vld [vmem:[#allocation6 + $0x178] sm:$0xff]
    %v3631 = vld [vmem:[#allocation6 + $0x180] sm:$0xff]
    %v3632 = vld [vmem:[#allocation6 + $0x188] sm:$0xff]
    %v3633 = vld [vmem:[#allocation6 + $0x190] sm:$0xff]
    %v3634 = vld [vmem:[#allocation6 + $0x198] sm:$0xff]
    %v3635 = vld [vmem:[#allocation6 + $0x1a0] sm:$0xff]
    %v3636 = vld [vmem:[#allocation6 + $0x1a8] sm:$0xff]
    %v3637 = vld [vmem:[#allocation6 + $0x1b0] sm:$0xff]
    %v3638 = vld [vmem:[#allocation6 + $0x1b8] sm:$0xff]
    %v3639 = vld [vmem:[#allocation6 + $0x1c0] sm:$0xff]
    %v3640 = vld [vmem:[#allocation6 + $0x1c8] sm:$0xff]
    %v3641 = vld [vmem:[#allocation6 + $0x1d0] sm:$0xff]
    %v3642 = vld [vmem:[#allocation6 + $0x1d8] sm:$0xff]
    %v3643 = vld [vmem:[#allocation6 + $0x1e0] sm:$0xff]
    %v3644 = vld [vmem:[#allocation6 + $0x1e8] sm:$0xff]
    %v3645 = vld [vmem:[#allocation6 + $0x1f0] sm:$0xff]
    %v3646 = vld [vmem:[#allocation6 + $0x1f8] sm:$0xff]
    %v3647 = vld [vmem:[#allocation6 + $0x200] sm:$0xff]
    %v3648 = vld [vmem:[#allocation6 + $0x208] sm:$0xff]
    %v3649 = vld [vmem:[#allocation6 + $0x210] sm:$0xff]
    %v3650 = vld [vmem:[#allocation6 + $0x218] sm:$0xff]
    %v3651 = vld [vmem:[#allocation6 + $0x220] sm:$0xff]
    %v3652 = vld [vmem:[#allocation6 + $0x228] sm:$0xff]
    %v3653 = vld [vmem:[#allocation6 + $0x230] sm:$0xff]
    %v3654 = vld [vmem:[#allocation6 + $0x238] sm:$0xff]
    %v3655 = vld [vmem:[#allocation6 + $0x240] sm:$0xff]
    %v3656 = vld [vmem:[#allocation6 + $0x248] sm:$0xff]
    %v3657 = vld [vmem:[#allocation6 + $0x250] sm:$0xff]
    %v3658 = vld [vmem:[#allocation6 + $0x258] sm:$0xff]
    %v3659 = vld [vmem:[#allocation6 + $0x260] sm:$0xff]
    %v3660 = vld [vmem:[#allocation6 + $0x268] sm:$0xff]
    %v3661 = vld [vmem:[#allocation6 + $0x270] sm:$0xff]
    %v3662 = vld [vmem:[#allocation6 + $0x278] sm:$0xff]
    %v3663 = vld [vmem:[#allocation6 + $0x280] sm:$0xff]
    %v3664 = vld [vmem:[#allocation6 + $0x288] sm:$0xff]
    %v3665 = vld [vmem:[#allocation6 + $0x290] sm:$0xff]
    %v3666 = vld [vmem:[#allocation6 + $0x298] sm:$0xff]
    %v3667 = vld [vmem:[#allocation6 + $0x2a0] sm:$0xff]
    %v3668 = vld [vmem:[#allocation6 + $0x2a8] sm:$0xff]
    %v3669 = vld [vmem:[#allocation6 + $0x2b0] sm:$0xff]
    %v3670 = vld [vmem:[#allocation6 + $0x2b8] sm:$0xff]
    %v3671 = vld [vmem:[#allocation6 + $0x2c0] sm:$0xff]
    %v3672 = vld [vmem:[#allocation6 + $0x2c8] sm:$0xff]
    %v3673 = vld [vmem:[#allocation6 + $0x2d0] sm:$0xff]
    %v3674 = vld [vmem:[#allocation6 + $0x2d8] sm:$0xff]
    %v3675 = vld [vmem:[#allocation6 + $0x2e0] sm:$0xff]
    %v3676 = vld [vmem:[#allocation6 + $0x2e8] sm:$0xff]
    %v3677 = vld [vmem:[#allocation6 + $0x2f0] sm:$0xff]
    %v3678 = vld [vmem:[#allocation6 + $0x2f8] sm:$0xff]
    %v3679 = vld [vmem:[#allocation6 + $0x300] sm:$0xff]
    %v3680 = vld [vmem:[#allocation6 + $0x308] sm:$0xff]
    %v3681 = vld [vmem:[#allocation6 + $0x310] sm:$0xff]
    %v3682 = vld [vmem:[#allocation6 + $0x318] sm:$0xff]
    %v3683 = vld [vmem:[#allocation6 + $0x320] sm:$0xff]
    %v3684 = vld [vmem:[#allocation6 + $0x328] sm:$0xff]
    %v3685 = vld [vmem:[#allocation6 + $0x330] sm:$0xff]
    %v3686 = vld [vmem:[#allocation6 + $0x338] sm:$0xff]
    %v3687 = vld [vmem:[#allocation6 + $0x340] sm:$0xff]
    %v3688 = vld [vmem:[#allocation6 + $0x348] sm:$0xff]
    %v3689 = vld [vmem:[#allocation6 + $0x350] sm:$0xff]
    %v3690 = vld [vmem:[#allocation6 + $0x358] sm:$0xff]
    %v3691 = vld [vmem:[#allocation6 + $0x360] sm:$0xff]
    %v3692 = vld [vmem:[#allocation6 + $0x368] sm:$0xff]
    %v3693 = vld [vmem:[#allocation6 + $0x370] sm:$0xff]
    %v3694 = vld [vmem:[#allocation6 + $0x378] sm:$0xff]
    %v3695 = vld [vmem:[#allocation6 + $0x380] sm:$0xff]
    %v3696 = vld [vmem:[#allocation6 + $0x388] sm:$0xff]
    %v3697 = vld [vmem:[#allocation6 + $0x390] sm:$0xff]
    %v3698 = vld [vmem:[#allocation6 + $0x398] sm:$0xff]
    %v3699 = vld [vmem:[#allocation6 + $0x3a0] sm:$0xff]
    %v3700 = vld [vmem:[#allocation6 + $0x3a8] sm:$0xff]
    %v3701 = vld [vmem:[#allocation6 + $0x3b0] sm:$0xff]
    %v3702 = vld [vmem:[#allocation6 + $0x3b8] sm:$0xff]
    %v3703 = vld [vmem:[#allocation6 + $0x3c0] sm:$0xff]
    %v3704 = vld [vmem:[#allocation6 + $0x3c8] sm:$0xff]
    %v3705 = vld [vmem:[#allocation6 + $0x3d0] sm:$0xff]
    %v3706 = vld [vmem:[#allocation6 + $0x3d8] sm:$0xff]
    %v3707 = vld [vmem:[#allocation6 + $0x3e0] sm:$0xff]
    %v3708 = vld [vmem:[#allocation6 + $0x3e8] sm:$0xff]
    %v3709 = vld [vmem:[#allocation6 + $0x3f0] sm:$0xff]
    %v3710 = vld [vmem:[#allocation6 + $0x3f8] sm:$0xff]
    %v3711 = vld [vmem:[#allocation6 + $0x400] sm:$0xff]
    %v3712 = vld [vmem:[#allocation6 + $0x408] sm:$0xff]
    %v3713 = vld [vmem:[#allocation6 + $0x410] sm:$0xff]
    %v3714 = vld [vmem:[#allocation6 + $0x418] sm:$0xff]
    %v3715 = vld [vmem:[#allocation6 + $0x420] sm:$0xff]
    %v3716 = vld [vmem:[#allocation6 + $0x428] sm:$0xff]
    %v3717 = vld [vmem:[#allocation6 + $0x430] sm:$0xff]
    %v3718 = vld [vmem:[#allocation6 + $0x438] sm:$0xff]
    %v3719 = vld [vmem:[#allocation6 + $0x440] sm:$0xff]
    %v3720 = vld [vmem:[#allocation6 + $0x448] sm:$0xff]
    %v3721 = vld [vmem:[#allocation6 + $0x450] sm:$0xff]
    %v3722 = vld [vmem:[#allocation6 + $0x458] sm:$0xff]
    %v3723 = vld [vmem:[#allocation6 + $0x460] sm:$0xff]
    %v3724 = vld [vmem:[#allocation6 + $0x468] sm:$0xff]
    %v3725 = vld [vmem:[#allocation6 + $0x470] sm:$0xff]
    %v3726 = vld [vmem:[#allocation6 + $0x478] sm:$0xff]
    %v3727 = vld [vmem:[#allocation6 + $0x480] sm:$0xff]
    %v3728 = vld [vmem:[#allocation6 + $0x488] sm:$0xff]
    %v3729 = vld [vmem:[#allocation6 + $0x490] sm:$0xff]
    %v3730 = vld [vmem:[#allocation6 + $0x498] sm:$0xff]
    %v3731 = vld [vmem:[#allocation6 + $0x4a0] sm:$0xff]
    %v3732 = vld [vmem:[#allocation6 + $0x4a8] sm:$0xff]
    %v3733 = vld [vmem:[#allocation6 + $0x4b0] sm:$0xff]
    %v3734 = vld [vmem:[#allocation6 + $0x4b8] sm:$0xff]
    %v3735 = vld [vmem:[#allocation6 + $0x4c0] sm:$0xff]
    %v3736 = vld [vmem:[#allocation6 + $0x4c8] sm:$0xff]
    %v3737 = vld [vmem:[#allocation6 + $0x4d0] sm:$0xff]
    %v3738 = vld [vmem:[#allocation6 + $0x4d8] sm:$0xff]
    %v3739 = vld [vmem:[#allocation6 + $0x4e0] sm:$0xff]
    %v3740 = vld [vmem:[#allocation6 + $0x4e8] sm:$0xff]
    %v3741 = vld [vmem:[#allocation6 + $0x4f0] sm:$0xff]
    %v3742 = vld [vmem:[#allocation6 + $0x4f8] sm:$0xff]
    %v3743 = vld [vmem:[#allocation6 + $0x500] sm:$0xff]
    %v3744 = vld [vmem:[#allocation6 + $0x508] sm:$0xff]
    %v3745 = vld [vmem:[#allocation6 + $0x510] sm:$0xff]
    %v3746 = vld [vmem:[#allocation6 + $0x518] sm:$0xff]
    %v3747 = vld [vmem:[#allocation6 + $0x520] sm:$0xff]
    %v3748 = vld [vmem:[#allocation6 + $0x528] sm:$0xff]
    %v3749 = vld [vmem:[#allocation6 + $0x530] sm:$0xff]
    %v3750 = vld [vmem:[#allocation6 + $0x538] sm:$0xff]
    %v3751 = vld [vmem:[#allocation6 + $0x540] sm:$0xff]
    %v3752 = vld [vmem:[#allocation6 + $0x548] sm:$0xff]
    %v3753 = vld [vmem:[#allocation6 + $0x550] sm:$0xff]
    %v3754 = vld [vmem:[#allocation6 + $0x558] sm:$0xff]
    %v3755 = vld [vmem:[#allocation6 + $0x560] sm:$0xff]
    %v3756 = vld [vmem:[#allocation6 + $0x568] sm:$0xff]
    %v3757 = vld [vmem:[#allocation6 + $0x570] sm:$0xff]
    %v3758 = vld [vmem:[#allocation6 + $0x578] sm:$0xff]
    %v3759 = vld [vmem:[#allocation6 + $0x580] sm:$0xff]
    %v3760 = vld [vmem:[#allocation6 + $0x588] sm:$0xff]
    %v3761 = vld [vmem:[#allocation6 + $0x590] sm:$0xff]
    %v3762 = vld [vmem:[#allocation6 + $0x598] sm:$0xff]
    %v3763 = vld [vmem:[#allocation6 + $0x5a0] sm:$0xff]
    %v3764 = vld [vmem:[#allocation6 + $0x5a8] sm:$0xff]
    %v3765 = vld [vmem:[#allocation6 + $0x5b0] sm:$0xff]
    %v3766 = vld [vmem:[#allocation6 + $0x5b8] sm:$0xff]
    %v3767 = vld [vmem:[#allocation6 + $0x5c0] sm:$0xff]
    %v3768 = vld [vmem:[#allocation6 + $0x5c8] sm:$0xff]
    %v3769 = vld [vmem:[#allocation6 + $0x5d0] sm:$0xff]
    %v3770 = vld [vmem:[#allocation6 + $0x5d8] sm:$0xff]
    %v3771 = vld [vmem:[#allocation6 + $0x5e0] sm:$0xff]
    %v3772 = vld [vmem:[#allocation6 + $0x5e8] sm:$0xff]
    %v3773 = vld [vmem:[#allocation6 + $0x5f0] sm:$0xff]
    %v3774 = vld [vmem:[#allocation6 + $0x5f8] sm:$0xff]
    %v3775 = vld [vmem:[#allocation6 + $0x600] sm:$0xff]
    %v3776 = vld [vmem:[#allocation6 + $0x608] sm:$0xff]
    %v3777 = vld [vmem:[#allocation6 + $0x610] sm:$0xff]
    %v3778 = vld [vmem:[#allocation6 + $0x618] sm:$0xff]
    %v3779 = vld [vmem:[#allocation6 + $0x620] sm:$0xff]
    %v3780 = vld [vmem:[#allocation6 + $0x628] sm:$0xff]
    %v3781 = vld [vmem:[#allocation6 + $0x630] sm:$0xff]
    %v3782 = vld [vmem:[#allocation6 + $0x638] sm:$0xff]
    %v3783 = vld [vmem:[#allocation6 + $0x640] sm:$0xff]
    %v3784 = vld [vmem:[#allocation6 + $0x648] sm:$0xff]
    %v3785 = vld [vmem:[#allocation6 + $0x650] sm:$0xff]
    %v3786 = vld [vmem:[#allocation6 + $0x658] sm:$0xff]
    %v3787 = vld [vmem:[#allocation6 + $0x660] sm:$0xff]
    %v3788 = vld [vmem:[#allocation6 + $0x668] sm:$0xff]
    %v3789 = vld [vmem:[#allocation6 + $0x670] sm:$0xff]
    %v3790 = vld [vmem:[#allocation6 + $0x678] sm:$0xff]
    %v3791 = vld [vmem:[#allocation6 + $0x680] sm:$0xff]
    %v3792 = vld [vmem:[#allocation6 + $0x688] sm:$0xff]
    %v3793 = vld [vmem:[#allocation6 + $0x690] sm:$0xff]
    %v3794 = vld [vmem:[#allocation6 + $0x698] sm:$0xff]
    %v3795 = vld [vmem:[#allocation6 + $0x6a0] sm:$0xff]
    %v3796 = vld [vmem:[#allocation6 + $0x6a8] sm:$0xff]
    %v3797 = vld [vmem:[#allocation6 + $0x6b0] sm:$0xff]
    %v3798 = vld [vmem:[#allocation6 + $0x6b8] sm:$0xff]
    %v3799 = vld [vmem:[#allocation6 + $0x6c0] sm:$0xff]
    %v3800 = vld [vmem:[#allocation6 + $0x6c8] sm:$0xff]
    %v3801 = vld [vmem:[#allocation6 + $0x6d0] sm:$0xff]
    %v3802 = vld [vmem:[#allocation6 + $0x6d8] sm:$0xff]
    %v3803 = vld [vmem:[#allocation6 + $0x6e0] sm:$0xff]
    %v3804 = vld [vmem:[#allocation6 + $0x6e8] sm:$0xff]
    %v3805 = vld [vmem:[#allocation6 + $0x6f0] sm:$0xff]
    %v3806 = vld [vmem:[#allocation6 + $0x6f8] sm:$0xff]
    %v3807 = vld [vmem:[#allocation6 + $0x700] sm:$0xff]
    %v3808 = vld [vmem:[#allocation6 + $0x708] sm:$0xff]
    %v3809 = vld [vmem:[#allocation6 + $0x710] sm:$0xff]
    %v3810 = vld [vmem:[#allocation6 + $0x718] sm:$0xff]
    %v3811 = vld [vmem:[#allocation6 + $0x720] sm:$0xff]
    %v3812 = vld [vmem:[#allocation6 + $0x728] sm:$0xff]
    %v3813 = vld [vmem:[#allocation6 + $0x730] sm:$0xff]
    %v3814 = vld [vmem:[#allocation6 + $0x738] sm:$0xff]
    %v3815 = vld [vmem:[#allocation6 + $0x740] sm:$0xff]
    %v3816 = vld [vmem:[#allocation6 + $0x748] sm:$0xff]
    %v3817 = vld [vmem:[#allocation6 + $0x750] sm:$0xff]
    %v3818 = vld [vmem:[#allocation6 + $0x758] sm:$0xff]
    %v3819 = vld [vmem:[#allocation6 + $0x760] sm:$0xff]
    %v3820 = vld [vmem:[#allocation6 + $0x768] sm:$0xff]
    %v3821 = vld [vmem:[#allocation6 + $0x770] sm:$0xff]
    %v3822 = vld [vmem:[#allocation6 + $0x778] sm:$0xff]
    %v3823 = vld [vmem:[#allocation6 + $0x780] sm:$0xff]
    %v3824 = vld [vmem:[#allocation6 + $0x788] sm:$0xff]
    %v3825 = vld [vmem:[#allocation6 + $0x790] sm:$0xff]
    %v3826 = vld [vmem:[#allocation6 + $0x798] sm:$0xff]
    %v3827 = vld [vmem:[#allocation6 + $0x7a0] sm:$0xff]
    %v3828 = vld [vmem:[#allocation6 + $0x7a8] sm:$0xff]
    %v3829 = vld [vmem:[#allocation6 + $0x7b0] sm:$0xff]
    %v3830 = vld [vmem:[#allocation6 + $0x7b8] sm:$0xff]
    %v3831 = vld [vmem:[#allocation6 + $0x7c0] sm:$0xff]
    %v3832 = vld [vmem:[#allocation6 + $0x7c8] sm:$0xff]
    %v3833 = vld [vmem:[#allocation6 + $0x7d0] sm:$0xff]
    %v3834 = vld [vmem:[#allocation6 + $0x7d8] sm:$0xff]
    %v3835 = vld [vmem:[#allocation6 + $0x7e0] sm:$0xff]
    %v3836 = vld [vmem:[#allocation6 + $0x7e8] sm:$0xff]
    %v3837 = vld [vmem:[#allocation6 + $0x7f0] sm:$0xff]
    %v3838 = vld [vmem:[#allocation6 + $0x7f8] sm:$0xff]
    %v3839 = vld [vmem:[#allocation7] sm:$0xf]
    %v3841 = vlaneseq
    %v3842 = vshrl.u32 %v3841, 7
    %v3843 = vsub.s32 0, %v3842
    %v3844 = vrot.slane %v3839, %v3843
    %v3845 = vlaneseq
    %v3846 = vshrl.u32 %v3845, 7
    %v3847 = vsub.s32 1, %v3846
    %v3848 = vrot.slane %v3839, %v3847
    %v3849 = vlaneseq
    %v3850 = vshrl.u32 %v3849, 7
    %v3851 = vsub.s32 2, %v3850
    %v3852 = vrot.slane %v3839, %v3851
    %v3853 = vlaneseq
    %v3854 = vshrl.u32 %v3853, 7
    %v3855 = vsub.s32 3, %v3854
    %v3856 = vrot.slane %v3839, %v3855
    %v4117 = vunpack.c.l.b16 %v3583
    %v4118 = vunpack.c.h.b16 %v3583
    %v4119 = vunpack.c.l.b16 %v3584
    %v4120 = vunpack.c.h.b16 %v3584
    %v4121 = vunpack.c.l.b16 %v3585
    %v4122 = vunpack.c.h.b16 %v3585
    %v4123 = vunpack.c.l.b16 %v3586
    %v4124 = vunpack.c.h.b16 %v3586
    %v4125 = vunpack.c.l.b16 %v3587
    %v4126 = vunpack.c.h.b16 %v3587
    %v4127 = vunpack.c.l.b16 %v3588
    %v4128 = vunpack.c.h.b16 %v3588
    %v4129 = vunpack.c.l.b16 %v3589
    %v4130 = vunpack.c.h.b16 %v3589
    %v4131 = vunpack.c.l.b16 %v3590
    %v4132 = vunpack.c.h.b16 %v3590
    %v4133 = vunpack.c.l.b16 %v3591
    %v4134 = vunpack.c.h.b16 %v3591
    %v4135 = vunpack.c.l.b16 %v3592
    %v4136 = vunpack.c.h.b16 %v3592
    %v4137 = vunpack.c.l.b16 %v3593
    %v4138 = vunpack.c.h.b16 %v3593
    %v4139 = vunpack.c.l.b16 %v3594
    %v4140 = vunpack.c.h.b16 %v3594
    %v4141 = vunpack.c.l.b16 %v3595
    %v4142 = vunpack.c.h.b16 %v3595
    %v4143 = vunpack.c.l.b16 %v3596
    %v4144 = vunpack.c.h.b16 %v3596
    %v4145 = vunpack.c.l.b16 %v3597
    %v4146 = vunpack.c.h.b16 %v3597
    %v4147 = vunpack.c.l.b16 %v3598
    %v4148 = vunpack.c.h.b16 %v3598
    %v4149 = vunpack.c.l.b16 %v3599
    %v4150 = vunpack.c.h.b16 %v3599
    %v4151 = vunpack.c.l.b16 %v3600
    %v4152 = vunpack.c.h.b16 %v3600
    %v4153 = vunpack.c.l.b16 %v3601
    %v4154 = vunpack.c.h.b16 %v3601
    %v4155 = vunpack.c.l.b16 %v3602
    %v4156 = vunpack.c.h.b16 %v3602
    %v4157 = vunpack.c.l.b16 %v3603
    %v4158 = vunpack.c.h.b16 %v3603
    %v4159 = vunpack.c.l.b16 %v3604
    %v4160 = vunpack.c.h.b16 %v3604
    %v4161 = vunpack.c.l.b16 %v3605
    %v4162 = vunpack.c.h.b16 %v3605
    %v4163 = vunpack.c.l.b16 %v3606
    %v4164 = vunpack.c.h.b16 %v3606
    %v4165 = vunpack.c.l.b16 %v3607
    %v4166 = vunpack.c.h.b16 %v3607
    %v4167 = vunpack.c.l.b16 %v3608
    %v4168 = vunpack.c.h.b16 %v3608
    %v4169 = vunpack.c.l.b16 %v3609
    %v4170 = vunpack.c.h.b16 %v3609
    %v4171 = vunpack.c.l.b16 %v3610
    %v4172 = vunpack.c.h.b16 %v3610
    %v4173 = vunpack.c.l.b16 %v3611
    %v4174 = vunpack.c.h.b16 %v3611
    %v4175 = vunpack.c.l.b16 %v3612
    %v4176 = vunpack.c.h.b16 %v3612
    %v4177 = vunpack.c.l.b16 %v3613
    %v4178 = vunpack.c.h.b16 %v3613
    %v4179 = vunpack.c.l.b16 %v3614
    %v4180 = vunpack.c.h.b16 %v3614
    %v4181 = vunpack.c.l.b16 %v3615
    %v4182 = vunpack.c.h.b16 %v3615
    %v4183 = vunpack.c.l.b16 %v3616
    %v4184 = vunpack.c.h.b16 %v3616
    %v4185 = vunpack.c.l.b16 %v3617
    %v4186 = vunpack.c.h.b16 %v3617
    %v4187 = vunpack.c.l.b16 %v3618
    %v4188 = vunpack.c.h.b16 %v3618
    %v4189 = vunpack.c.l.b16 %v3619
    %v4190 = vunpack.c.h.b16 %v3619
    %v4191 = vunpack.c.l.b16 %v3620
    %v4192 = vunpack.c.h.b16 %v3620
    %v4193 = vunpack.c.l.b16 %v3621
    %v4194 = vunpack.c.h.b16 %v3621
    %v4195 = vunpack.c.l.b16 %v3622
    %v4196 = vunpack.c.h.b16 %v3622
    %v4197 = vunpack.c.l.b16 %v3623
    %v4198 = vunpack.c.h.b16 %v3623
    %v4199 = vunpack.c.l.b16 %v3624
    %v4200 = vunpack.c.h.b16 %v3624
    %v4201 = vunpack.c.l.b16 %v3625
    %v4202 = vunpack.c.h.b16 %v3625
    %v4203 = vunpack.c.l.b16 %v3626
    %v4204 = vunpack.c.h.b16 %v3626
    %v4205 = vunpack.c.l.b16 %v3627
    %v4206 = vunpack.c.h.b16 %v3627
    %v4207 = vunpack.c.l.b16 %v3628
    %v4208 = vunpack.c.h.b16 %v3628
    %v4209 = vunpack.c.l.b16 %v3629
    %v4210 = vunpack.c.h.b16 %v3629
    %v4211 = vunpack.c.l.b16 %v3630
    %v4212 = vunpack.c.h.b16 %v3630
    %v4213 = vunpack.c.l.b16 %v3631
    %v4214 = vunpack.c.h.b16 %v3631
    %v4215 = vunpack.c.l.b16 %v3632
    %v4216 = vunpack.c.h.b16 %v3632
    %v4217 = vunpack.c.l.b16 %v3633
    %v4218 = vunpack.c.h.b16 %v3633
    %v4219 = vunpack.c.l.b16 %v3634
    %v4220 = vunpack.c.h.b16 %v3634
    %v4221 = vunpack.c.l.b16 %v3635
    %v4222 = vunpack.c.h.b16 %v3635
    %v4223 = vunpack.c.l.b16 %v3636
    %v4224 = vunpack.c.h.b16 %v3636
    %v4225 = vunpack.c.l.b16 %v3637
    %v4226 = vunpack.c.h.b16 %v3637
    %v4227 = vunpack.c.l.b16 %v3638
    %v4228 = vunpack.c.h.b16 %v3638
    %v4229 = vunpack.c.l.b16 %v3639
    %v4230 = vunpack.c.h.b16 %v3639
    %v4231 = vunpack.c.l.b16 %v3640
    %v4232 = vunpack.c.h.b16 %v3640
    %v4233 = vunpack.c.l.b16 %v3641
    %v4234 = vunpack.c.h.b16 %v3641
    %v4235 = vunpack.c.l.b16 %v3642
    %v4236 = vunpack.c.h.b16 %v3642
    %v4237 = vunpack.c.l.b16 %v3643
    %v4238 = vunpack.c.h.b16 %v3643
    %v4239 = vunpack.c.l.b16 %v3644
    %v4240 = vunpack.c.h.b16 %v3644
    %v4241 = vunpack.c.l.b16 %v3645
    %v4242 = vunpack.c.h.b16 %v3645
    %v4243 = vunpack.c.l.b16 %v3646
    %v4244 = vunpack.c.h.b16 %v3646
    %v4245 = vunpack.c.l.b16 %v3647
    %v4246 = vunpack.c.h.b16 %v3647
    %v4247 = vunpack.c.l.b16 %v3648
    %v4248 = vunpack.c.h.b16 %v3648
    %v4249 = vunpack.c.l.b16 %v3649
    %v4250 = vunpack.c.h.b16 %v3649
    %v4251 = vunpack.c.l.b16 %v3650
    %v4252 = vunpack.c.h.b16 %v3650
    %v4253 = vunpack.c.l.b16 %v3651
    %v4254 = vunpack.c.h.b16 %v3651
    %v4255 = vunpack.c.l.b16 %v3652
    %v4256 = vunpack.c.h.b16 %v3652
    %v4257 = vunpack.c.l.b16 %v3653
    %v4258 = vunpack.c.h.b16 %v3653
    %v4259 = vunpack.c.l.b16 %v3654
    %v4260 = vunpack.c.h.b16 %v3654
    %v4261 = vunpack.c.l.b16 %v3655
    %v4262 = vunpack.c.h.b16 %v3655
    %v4263 = vunpack.c.l.b16 %v3656
    %v4264 = vunpack.c.h.b16 %v3656
    %v4265 = vunpack.c.l.b16 %v3657
    %v4266 = vunpack.c.h.b16 %v3657
    %v4267 = vunpack.c.l.b16 %v3658
    %v4268 = vunpack.c.h.b16 %v3658
    %v4269 = vunpack.c.l.b16 %v3659
    %v4270 = vunpack.c.h.b16 %v3659
    %v4271 = vunpack.c.l.b16 %v3660
    %v4272 = vunpack.c.h.b16 %v3660
    %v4273 = vunpack.c.l.b16 %v3661
    %v4274 = vunpack.c.h.b16 %v3661
    %v4275 = vunpack.c.l.b16 %v3662
    %v4276 = vunpack.c.h.b16 %v3662
    %v4277 = vunpack.c.l.b16 %v3663
    %v4278 = vunpack.c.h.b16 %v3663
    %v4279 = vunpack.c.l.b16 %v3664
    %v4280 = vunpack.c.h.b16 %v3664
    %v4281 = vunpack.c.l.b16 %v3665
    %v4282 = vunpack.c.h.b16 %v3665
    %v4283 = vunpack.c.l.b16 %v3666
    %v4284 = vunpack.c.h.b16 %v3666
    %v4285 = vunpack.c.l.b16 %v3667
    %v4286 = vunpack.c.h.b16 %v3667
    %v4287 = vunpack.c.l.b16 %v3668
    %v4288 = vunpack.c.h.b16 %v3668
    %v4289 = vunpack.c.l.b16 %v3669
    %v4290 = vunpack.c.h.b16 %v3669
    %v4291 = vunpack.c.l.b16 %v3670
    %v4292 = vunpack.c.h.b16 %v3670
    %v4293 = vunpack.c.l.b16 %v3671
    %v4294 = vunpack.c.h.b16 %v3671
    %v4295 = vunpack.c.l.b16 %v3672
    %v4296 = vunpack.c.h.b16 %v3672
    %v4297 = vunpack.c.l.b16 %v3673
    %v4298 = vunpack.c.h.b16 %v3673
    %v4299 = vunpack.c.l.b16 %v3674
    %v4300 = vunpack.c.h.b16 %v3674
    %v4301 = vunpack.c.l.b16 %v3675
    %v4302 = vunpack.c.h.b16 %v3675
    %v4303 = vunpack.c.l.b16 %v3676
    %v4304 = vunpack.c.h.b16 %v3676
    %v4305 = vunpack.c.l.b16 %v3677
    %v4306 = vunpack.c.h.b16 %v3677
    %v4307 = vunpack.c.l.b16 %v3678
    %v4308 = vunpack.c.h.b16 %v3678
    %v4309 = vunpack.c.l.b16 %v3679
    %v4310 = vunpack.c.h.b16 %v3679
    %v4311 = vunpack.c.l.b16 %v3680
    %v4312 = vunpack.c.h.b16 %v3680
    %v4313 = vunpack.c.l.b16 %v3681
    %v4314 = vunpack.c.h.b16 %v3681
    %v4315 = vunpack.c.l.b16 %v3682
    %v4316 = vunpack.c.h.b16 %v3682
    %v4317 = vunpack.c.l.b16 %v3683
    %v4318 = vunpack.c.h.b16 %v3683
    %v4319 = vunpack.c.l.b16 %v3684
    %v4320 = vunpack.c.h.b16 %v3684
    %v4321 = vunpack.c.l.b16 %v3685
    %v4322 = vunpack.c.h.b16 %v3685
    %v4323 = vunpack.c.l.b16 %v3686
    %v4324 = vunpack.c.h.b16 %v3686
    %v4325 = vunpack.c.l.b16 %v3687
    %v4326 = vunpack.c.h.b16 %v3687
    %v4327 = vunpack.c.l.b16 %v3688
    %v4328 = vunpack.c.h.b16 %v3688
    %v4329 = vunpack.c.l.b16 %v3689
    %v4330 = vunpack.c.h.b16 %v3689
    %v4331 = vunpack.c.l.b16 %v3690
    %v4332 = vunpack.c.h.b16 %v3690
    %v4333 = vunpack.c.l.b16 %v3691
    %v4334 = vunpack.c.h.b16 %v3691
    %v4335 = vunpack.c.l.b16 %v3692
    %v4336 = vunpack.c.h.b16 %v3692
    %v4337 = vunpack.c.l.b16 %v3693
    %v4338 = vunpack.c.h.b16 %v3693
    %v4339 = vunpack.c.l.b16 %v3694
    %v4340 = vunpack.c.h.b16 %v3694
    %v4341 = vunpack.c.l.b16 %v3695
    %v4342 = vunpack.c.h.b16 %v3695
    %v4343 = vunpack.c.l.b16 %v3696
    %v4344 = vunpack.c.h.b16 %v3696
    %v4345 = vunpack.c.l.b16 %v3697
    %v4346 = vunpack.c.h.b16 %v3697
    %v4347 = vunpack.c.l.b16 %v3698
    %v4348 = vunpack.c.h.b16 %v3698
    %v4349 = vunpack.c.l.b16 %v3699
    %v4350 = vunpack.c.h.b16 %v3699
    %v4351 = vunpack.c.l.b16 %v3700
    %v4352 = vunpack.c.h.b16 %v3700
    %v4353 = vunpack.c.l.b16 %v3701
    %v4354 = vunpack.c.h.b16 %v3701
    %v4355 = vunpack.c.l.b16 %v3702
    %v4356 = vunpack.c.h.b16 %v3702
    %v4357 = vunpack.c.l.b16 %v3703
    %v4358 = vunpack.c.h.b16 %v3703
    %v4359 = vunpack.c.l.b16 %v3704
    %v4360 = vunpack.c.h.b16 %v3704
    %v4361 = vunpack.c.l.b16 %v3705
    %v4362 = vunpack.c.h.b16 %v3705
    %v4363 = vunpack.c.l.b16 %v3706
    %v4364 = vunpack.c.h.b16 %v3706
    %v4365 = vunpack.c.l.b16 %v3707
    %v4366 = vunpack.c.h.b16 %v3707
    %v4367 = vunpack.c.l.b16 %v3708
    %v4368 = vunpack.c.h.b16 %v3708
    %v4369 = vunpack.c.l.b16 %v3709
    %v4370 = vunpack.c.h.b16 %v3709
    %v4371 = vunpack.c.l.b16 %v3710
    %v4372 = vunpack.c.h.b16 %v3710
    %v4373 = vunpack.c.l.b16 %v3711
    %v4374 = vunpack.c.h.b16 %v3711
    %v4375 = vunpack.c.l.b16 %v3712
    %v4376 = vunpack.c.h.b16 %v3712
    %v4377 = vunpack.c.l.b16 %v3713
    %v4378 = vunpack.c.h.b16 %v3713
    %v4379 = vunpack.c.l.b16 %v3714
    %v4380 = vunpack.c.h.b16 %v3714
    %v4381 = vunpack.c.l.b16 %v3715
    %v4382 = vunpack.c.h.b16 %v3715
    %v4383 = vunpack.c.l.b16 %v3716
    %v4384 = vunpack.c.h.b16 %v3716
    %v4385 = vunpack.c.l.b16 %v3717
    %v4386 = vunpack.c.h.b16 %v3717
    %v4387 = vunpack.c.l.b16 %v3718
    %v4388 = vunpack.c.h.b16 %v3718
    %v4389 = vunpack.c.l.b16 %v3719
    %v4390 = vunpack.c.h.b16 %v3719
    %v4391 = vunpack.c.l.b16 %v3720
    %v4392 = vunpack.c.h.b16 %v3720
    %v4393 = vunpack.c.l.b16 %v3721
    %v4394 = vunpack.c.h.b16 %v3721
    %v4395 = vunpack.c.l.b16 %v3722
    %v4396 = vunpack.c.h.b16 %v3722
    %v4397 = vunpack.c.l.b16 %v3723
    %v4398 = vunpack.c.h.b16 %v3723
    %v4399 = vunpack.c.l.b16 %v3724
    %v4400 = vunpack.c.h.b16 %v3724
    %v4401 = vunpack.c.l.b16 %v3725
    %v4402 = vunpack.c.h.b16 %v3725
    %v4403 = vunpack.c.l.b16 %v3726
    %v4404 = vunpack.c.h.b16 %v3726
    %v4405 = vunpack.c.l.b16 %v3727
    %v4406 = vunpack.c.h.b16 %v3727
    %v4407 = vunpack.c.l.b16 %v3728
    %v4408 = vunpack.c.h.b16 %v3728
    %v4409 = vunpack.c.l.b16 %v3729
    %v4410 = vunpack.c.h.b16 %v3729
    %v4411 = vunpack.c.l.b16 %v3730
    %v4412 = vunpack.c.h.b16 %v3730
    %v4413 = vunpack.c.l.b16 %v3731
    %v4414 = vunpack.c.h.b16 %v3731
    %v4415 = vunpack.c.l.b16 %v3732
    %v4416 = vunpack.c.h.b16 %v3732
    %v4417 = vunpack.c.l.b16 %v3733
    %v4418 = vunpack.c.h.b16 %v3733
    %v4419 = vunpack.c.l.b16 %v3734
    %v4420 = vunpack.c.h.b16 %v3734
    %v4421 = vunpack.c.l.b16 %v3735
    %v4422 = vunpack.c.h.b16 %v3735
    %v4423 = vunpack.c.l.b16 %v3736
    %v4424 = vunpack.c.h.b16 %v3736
    %v4425 = vunpack.c.l.b16 %v3737
    %v4426 = vunpack.c.h.b16 %v3737
    %v4427 = vunpack.c.l.b16 %v3738
    %v4428 = vunpack.c.h.b16 %v3738
    %v4429 = vunpack.c.l.b16 %v3739
    %v4430 = vunpack.c.h.b16 %v3739
    %v4431 = vunpack.c.l.b16 %v3740
    %v4432 = vunpack.c.h.b16 %v3740
    %v4433 = vunpack.c.l.b16 %v3741
    %v4434 = vunpack.c.h.b16 %v3741
    %v4435 = vunpack.c.l.b16 %v3742
    %v4436 = vunpack.c.h.b16 %v3742
    %v4437 = vunpack.c.l.b16 %v3743
    %v4438 = vunpack.c.h.b16 %v3743
    %v4439 = vunpack.c.l.b16 %v3744
    %v4440 = vunpack.c.h.b16 %v3744
    %v4441 = vunpack.c.l.b16 %v3745
    %v4442 = vunpack.c.h.b16 %v3745
    %v4443 = vunpack.c.l.b16 %v3746
    %v4444 = vunpack.c.h.b16 %v3746
    %v4445 = vunpack.c.l.b16 %v3747
    %v4446 = vunpack.c.h.b16 %v3747
    %v4447 = vunpack.c.l.b16 %v3748
    %v4448 = vunpack.c.h.b16 %v3748
    %v4449 = vunpack.c.l.b16 %v3749
    %v4450 = vunpack.c.h.b16 %v3749
    %v4451 = vunpack.c.l.b16 %v3750
    %v4452 = vunpack.c.h.b16 %v3750
    %v4453 = vunpack.c.l.b16 %v3751
    %v4454 = vunpack.c.h.b16 %v3751
    %v4455 = vunpack.c.l.b16 %v3752
    %v4456 = vunpack.c.h.b16 %v3752
    %v4457 = vunpack.c.l.b16 %v3753
    %v4458 = vunpack.c.h.b16 %v3753
    %v4459 = vunpack.c.l.b16 %v3754
    %v4460 = vunpack.c.h.b16 %v3754
    %v4461 = vunpack.c.l.b16 %v3755
    %v4462 = vunpack.c.h.b16 %v3755
    %v4463 = vunpack.c.l.b16 %v3756
    %v4464 = vunpack.c.h.b16 %v3756
    %v4465 = vunpack.c.l.b16 %v3757
    %v4466 = vunpack.c.h.b16 %v3757
    %v4467 = vunpack.c.l.b16 %v3758
    %v4468 = vunpack.c.h.b16 %v3758
    %v4469 = vunpack.c.l.b16 %v3759
    %v4470 = vunpack.c.h.b16 %v3759
    %v4471 = vunpack.c.l.b16 %v3760
    %v4472 = vunpack.c.h.b16 %v3760
    %v4473 = vunpack.c.l.b16 %v3761
    %v4474 = vunpack.c.h.b16 %v3761
    %v4475 = vunpack.c.l.b16 %v3762
    %v4476 = vunpack.c.h.b16 %v3762
    %v4477 = vunpack.c.l.b16 %v3763
    %v4478 = vunpack.c.h.b16 %v3763
    %v4479 = vunpack.c.l.b16 %v3764
    %v4480 = vunpack.c.h.b16 %v3764
    %v4481 = vunpack.c.l.b16 %v3765
    %v4482 = vunpack.c.h.b16 %v3765
    %v4483 = vunpack.c.l.b16 %v3766
    %v4484 = vunpack.c.h.b16 %v3766
    %v4485 = vunpack.c.l.b16 %v3767
    %v4486 = vunpack.c.h.b16 %v3767
    %v4487 = vunpack.c.l.b16 %v3768
    %v4488 = vunpack.c.h.b16 %v3768
    %v4489 = vunpack.c.l.b16 %v3769
    %v4490 = vunpack.c.h.b16 %v3769
    %v4491 = vunpack.c.l.b16 %v3770
    %v4492 = vunpack.c.h.b16 %v3770
    %v4493 = vunpack.c.l.b16 %v3771
    %v4494 = vunpack.c.h.b16 %v3771
    %v4495 = vunpack.c.l.b16 %v3772
    %v4496 = vunpack.c.h.b16 %v3772
    %v4497 = vunpack.c.l.b16 %v3773
    %v4498 = vunpack.c.h.b16 %v3773
    %v4499 = vunpack.c.l.b16 %v3774
    %v4500 = vunpack.c.h.b16 %v3774
    %v4501 = vunpack.c.l.b16 %v3775
    %v4502 = vunpack.c.h.b16 %v3775
    %v4503 = vunpack.c.l.b16 %v3776
    %v4504 = vunpack.c.h.b16 %v3776
    %v4505 = vunpack.c.l.b16 %v3777
    %v4506 = vunpack.c.h.b16 %v3777
    %v4507 = vunpack.c.l.b16 %v3778
    %v4508 = vunpack.c.h.b16 %v3778
    %v4509 = vunpack.c.l.b16 %v3779
    %v4510 = vunpack.c.h.b16 %v3779
    %v4511 = vunpack.c.l.b16 %v3780
    %v4512 = vunpack.c.h.b16 %v3780
    %v4513 = vunpack.c.l.b16 %v3781
    %v4514 = vunpack.c.h.b16 %v3781
    %v4515 = vunpack.c.l.b16 %v3782
    %v4516 = vunpack.c.h.b16 %v3782
    %v4517 = vunpack.c.l.b16 %v3783
    %v4518 = vunpack.c.h.b16 %v3783
    %v4519 = vunpack.c.l.b16 %v3784
    %v4520 = vunpack.c.h.b16 %v3784
    %v4521 = vunpack.c.l.b16 %v3785
    %v4522 = vunpack.c.h.b16 %v3785
    %v4523 = vunpack.c.l.b16 %v3786
    %v4524 = vunpack.c.h.b16 %v3786
    %v4525 = vunpack.c.l.b16 %v3787
    %v4526 = vunpack.c.h.b16 %v3787
    %v4527 = vunpack.c.l.b16 %v3788
    %v4528 = vunpack.c.h.b16 %v3788
    %v4529 = vunpack.c.l.b16 %v3789
    %v4530 = vunpack.c.h.b16 %v3789
    %v4531 = vunpack.c.l.b16 %v3790
    %v4532 = vunpack.c.h.b16 %v3790
    %v4533 = vunpack.c.l.b16 %v3791
    %v4534 = vunpack.c.h.b16 %v3791
    %v4535 = vunpack.c.l.b16 %v3792
    %v4536 = vunpack.c.h.b16 %v3792
    %v4537 = vunpack.c.l.b16 %v3793
    %v4538 = vunpack.c.h.b16 %v3793
    %v4539 = vunpack.c.l.b16 %v3794
    %v4540 = vunpack.c.h.b16 %v3794
    %v4541 = vunpack.c.l.b16 %v3795
    %v4542 = vunpack.c.h.b16 %v3795
    %v4543 = vunpack.c.l.b16 %v3796
    %v4544 = vunpack.c.h.b16 %v3796
    %v4545 = vunpack.c.l.b16 %v3797
    %v4546 = vunpack.c.h.b16 %v3797
    %v4547 = vunpack.c.l.b16 %v3798
    %v4548 = vunpack.c.h.b16 %v3798
    %v4549 = vunpack.c.l.b16 %v3799
    %v4550 = vunpack.c.h.b16 %v3799
    %v4551 = vunpack.c.l.b16 %v3800
    %v4552 = vunpack.c.h.b16 %v3800
    %v4553 = vunpack.c.l.b16 %v3801
    %v4554 = vunpack.c.h.b16 %v3801
    %v4555 = vunpack.c.l.b16 %v3802
    %v4556 = vunpack.c.h.b16 %v3802
    %v4557 = vunpack.c.l.b16 %v3803
    %v4558 = vunpack.c.h.b16 %v3803
    %v4559 = vunpack.c.l.b16 %v3804
    %v4560 = vunpack.c.h.b16 %v3804
    %v4561 = vunpack.c.l.b16 %v3805
    %v4562 = vunpack.c.h.b16 %v3805
    %v4563 = vunpack.c.l.b16 %v3806
    %v4564 = vunpack.c.h.b16 %v3806
    %v4565 = vunpack.c.l.b16 %v3807
    %v4566 = vunpack.c.h.b16 %v3807
    %v4567 = vunpack.c.l.b16 %v3808
    %v4568 = vunpack.c.h.b16 %v3808
    %v4569 = vunpack.c.l.b16 %v3809
    %v4570 = vunpack.c.h.b16 %v3809
    %v4571 = vunpack.c.l.b16 %v3810
    %v4572 = vunpack.c.h.b16 %v3810
    %v4573 = vunpack.c.l.b16 %v3811
    %v4574 = vunpack.c.h.b16 %v3811
    %v4575 = vunpack.c.l.b16 %v3812
    %v4576 = vunpack.c.h.b16 %v3812
    %v4577 = vunpack.c.l.b16 %v3813
    %v4578 = vunpack.c.h.b16 %v3813
    %v4579 = vunpack.c.l.b16 %v3814
    %v4580 = vunpack.c.h.b16 %v3814
    %v4581 = vunpack.c.l.b16 %v3815
    %v4582 = vunpack.c.h.b16 %v3815
    %v4583 = vunpack.c.l.b16 %v3816
    %v4584 = vunpack.c.h.b16 %v3816
    %v4585 = vunpack.c.l.b16 %v3817
    %v4586 = vunpack.c.h.b16 %v3817
    %v4587 = vunpack.c.l.b16 %v3818
    %v4588 = vunpack.c.h.b16 %v3818
    %v4589 = vunpack.c.l.b16 %v3819
    %v4590 = vunpack.c.h.b16 %v3819
    %v4591 = vunpack.c.l.b16 %v3820
    %v4592 = vunpack.c.h.b16 %v3820
    %v4593 = vunpack.c.l.b16 %v3821
    %v4594 = vunpack.c.h.b16 %v3821
    %v4595 = vunpack.c.l.b16 %v3822
    %v4596 = vunpack.c.h.b16 %v3822
    %v4597 = vunpack.c.l.b16 %v3823
    %v4598 = vunpack.c.h.b16 %v3823
    %v4599 = vunpack.c.l.b16 %v3824
    %v4600 = vunpack.c.h.b16 %v3824
    %v4601 = vunpack.c.l.b16 %v3825
    %v4602 = vunpack.c.h.b16 %v3825
    %v4603 = vunpack.c.l.b16 %v3826
    %v4604 = vunpack.c.h.b16 %v3826
    %v4605 = vunpack.c.l.b16 %v3827
    %v4606 = vunpack.c.h.b16 %v3827
    %v4607 = vunpack.c.l.b16 %v3828
    %v4608 = vunpack.c.h.b16 %v3828
    %v4609 = vunpack.c.l.b16 %v3829
    %v4610 = vunpack.c.h.b16 %v3829
    %v4611 = vunpack.c.l.b16 %v3830
    %v4612 = vunpack.c.h.b16 %v3830
    %v4613 = vunpack.c.l.b16 %v3831
    %v4614 = vunpack.c.h.b16 %v3831
    %v4615 = vunpack.c.l.b16 %v3832
    %v4616 = vunpack.c.h.b16 %v3832
    %v4617 = vunpack.c.l.b16 %v3833
    %v4618 = vunpack.c.h.b16 %v3833
    %v4619 = vunpack.c.l.b16 %v3834
    %v4620 = vunpack.c.h.b16 %v3834
    %v4621 = vunpack.c.l.b16 %v3835
    %v4622 = vunpack.c.h.b16 %v3835
    %v4623 = vunpack.c.l.b16 %v3836
    %v4624 = vunpack.c.h.b16 %v3836
    %v4625 = vunpack.c.l.b16 %v3837
    %v4626 = vunpack.c.h.b16 %v3837
    %v4627 = vunpack.c.l.b16 %v3838
    %v4628 = vunpack.c.h.b16 %v3838
    %v4629 = vpack.c.b16 %v4121, %v4117
    %v4630 = vpack.c.b16 %v4122, %v4118
    %v4631 = vpack.c.b16 %v4123, %v4119
    %v4632 = vpack.c.b16 %v4124, %v4120
    %v4633 = vpack.c.b16 %v4129, %v4125
    %v4634 = vpack.c.b16 %v4130, %v4126
    %v4635 = vpack.c.b16 %v4131, %v4127
    %v4636 = vpack.c.b16 %v4132, %v4128
    %v4637 = vpack.c.b16 %v4137, %v4133
    %v4638 = vpack.c.b16 %v4138, %v4134
    %v4639 = vpack.c.b16 %v4139, %v4135
    %v4640 = vpack.c.b16 %v4140, %v4136
    %v4641 = vpack.c.b16 %v4145, %v4141
    %v4642 = vpack.c.b16 %v4146, %v4142
    %v4643 = vpack.c.b16 %v4147, %v4143
    %v4644 = vpack.c.b16 %v4148, %v4144
    %v4645 = vpack.c.b16 %v4153, %v4149
    %v4646 = vpack.c.b16 %v4154, %v4150
    %v4647 = vpack.c.b16 %v4155, %v4151
    %v4648 = vpack.c.b16 %v4156, %v4152
    %v4649 = vpack.c.b16 %v4161, %v4157
    %v4650 = vpack.c.b16 %v4162, %v4158
    %v4651 = vpack.c.b16 %v4163, %v4159
    %v4652 = vpack.c.b16 %v4164, %v4160
    %v4653 = vpack.c.b16 %v4169, %v4165
    %v4654 = vpack.c.b16 %v4170, %v4166
    %v4655 = vpack.c.b16 %v4171, %v4167
    %v4656 = vpack.c.b16 %v4172, %v4168
    %v4657 = vpack.c.b16 %v4177, %v4173
    %v4658 = vpack.c.b16 %v4178, %v4174
    %v4659 = vpack.c.b16 %v4179, %v4175
    %v4660 = vpack.c.b16 %v4180, %v4176
    %v4661 = vpack.c.b16 %v4185, %v4181
    %v4662 = vpack.c.b16 %v4186, %v4182
    %v4663 = vpack.c.b16 %v4187, %v4183
    %v4664 = vpack.c.b16 %v4188, %v4184
    %v4665 = vpack.c.b16 %v4193, %v4189
    %v4666 = vpack.c.b16 %v4194, %v4190
    %v4667 = vpack.c.b16 %v4195, %v4191
    %v4668 = vpack.c.b16 %v4196, %v4192
    %v4669 = vpack.c.b16 %v4201, %v4197
    %v4670 = vpack.c.b16 %v4202, %v4198
    %v4671 = vpack.c.b16 %v4203, %v4199
    %v4672 = vpack.c.b16 %v4204, %v4200
    %v4673 = vpack.c.b16 %v4209, %v4205
    %v4674 = vpack.c.b16 %v4210, %v4206
    %v4675 = vpack.c.b16 %v4211, %v4207
    %v4676 = vpack.c.b16 %v4212, %v4208
    %v4677 = vpack.c.b16 %v4217, %v4213
    %v4678 = vpack.c.b16 %v4218, %v4214
    %v4679 = vpack.c.b16 %v4219, %v4215
    %v4680 = vpack.c.b16 %v4220, %v4216
    %v4681 = vpack.c.b16 %v4225, %v4221
    %v4682 = vpack.c.b16 %v4226, %v4222
    %v4683 = vpack.c.b16 %v4227, %v4223
    %v4684 = vpack.c.b16 %v4228, %v4224
    %v4685 = vpack.c.b16 %v4233, %v4229
    %v4686 = vpack.c.b16 %v4234, %v4230
    %v4687 = vpack.c.b16 %v4235, %v4231
    %v4688 = vpack.c.b16 %v4236, %v4232
    %v4689 = vpack.c.b16 %v4241, %v4237
    %v4690 = vpack.c.b16 %v4242, %v4238
    %v4691 = vpack.c.b16 %v4243, %v4239
    %v4692 = vpack.c.b16 %v4244, %v4240
    %v4693 = vpack.c.b16 %v4249, %v4245
    %v4694 = vpack.c.b16 %v4250, %v4246
    %v4695 = vpack.c.b16 %v4251, %v4247
    %v4696 = vpack.c.b16 %v4252, %v4248
    %v4697 = vpack.c.b16 %v4257, %v4253
    %v4698 = vpack.c.b16 %v4258, %v4254
    %v4699 = vpack.c.b16 %v4259, %v4255
    %v4700 = vpack.c.b16 %v4260, %v4256
    %v4701 = vpack.c.b16 %v4265, %v4261
    %v4702 = vpack.c.b16 %v4266, %v4262
    %v4703 = vpack.c.b16 %v4267, %v4263
    %v4704 = vpack.c.b16 %v4268, %v4264
    %v4705 = vpack.c.b16 %v4273, %v4269
    %v4706 = vpack.c.b16 %v4274, %v4270
    %v4707 = vpack.c.b16 %v4275, %v4271
    %v4708 = vpack.c.b16 %v4276, %v4272
    %v4709 = vpack.c.b16 %v4281, %v4277
    %v4710 = vpack.c.b16 %v4282, %v4278
    %v4711 = vpack.c.b16 %v4283, %v4279
    %v4712 = vpack.c.b16 %v4284, %v4280
    %v4713 = vpack.c.b16 %v4289, %v4285
    %v4714 = vpack.c.b16 %v4290, %v4286
    %v4715 = vpack.c.b16 %v4291, %v4287
    %v4716 = vpack.c.b16 %v4292, %v4288
    %v4717 = vpack.c.b16 %v4297, %v4293
    %v4718 = vpack.c.b16 %v4298, %v4294
    %v4719 = vpack.c.b16 %v4299, %v4295
    %v4720 = vpack.c.b16 %v4300, %v4296
    %v4721 = vpack.c.b16 %v4305, %v4301
    %v4722 = vpack.c.b16 %v4306, %v4302
    %v4723 = vpack.c.b16 %v4307, %v4303
    %v4724 = vpack.c.b16 %v4308, %v4304
    %v4725 = vpack.c.b16 %v4313, %v4309
    %v4726 = vpack.c.b16 %v4314, %v4310
    %v4727 = vpack.c.b16 %v4315, %v4311
    %v4728 = vpack.c.b16 %v4316, %v4312
    %v4729 = vpack.c.b16 %v4321, %v4317
    %v4730 = vpack.c.b16 %v4322, %v4318
    %v4731 = vpack.c.b16 %v4323, %v4319
    %v4732 = vpack.c.b16 %v4324, %v4320
    %v4733 = vpack.c.b16 %v4329, %v4325
    %v4734 = vpack.c.b16 %v4330, %v4326
    %v4735 = vpack.c.b16 %v4331, %v4327
    %v4736 = vpack.c.b16 %v4332, %v4328
    %v4737 = vpack.c.b16 %v4337, %v4333
    %v4738 = vpack.c.b16 %v4338, %v4334
    %v4739 = vpack.c.b16 %v4339, %v4335
    %v4740 = vpack.c.b16 %v4340, %v4336
    %v4741 = vpack.c.b16 %v4345, %v4341
    %v4742 = vpack.c.b16 %v4346, %v4342
    %v4743 = vpack.c.b16 %v4347, %v4343
    %v4744 = vpack.c.b16 %v4348, %v4344
    %v4745 = vpack.c.b16 %v4353, %v4349
    %v4746 = vpack.c.b16 %v4354, %v4350
    %v4747 = vpack.c.b16 %v4355, %v4351
    %v4748 = vpack.c.b16 %v4356, %v4352
    %v4749 = vpack.c.b16 %v4361, %v4357
    %v4750 = vpack.c.b16 %v4362, %v4358
    %v4751 = vpack.c.b16 %v4363, %v4359
    %v4752 = vpack.c.b16 %v4364, %v4360
    %v4753 = vpack.c.b16 %v4369, %v4365
    %v4754 = vpack.c.b16 %v4370, %v4366
    %v4755 = vpack.c.b16 %v4371, %v4367
    %v4756 = vpack.c.b16 %v4372, %v4368
    %v4757 = vpack.c.b16 %v4377, %v4373
    %v4758 = vpack.c.b16 %v4378, %v4374
    %v4759 = vpack.c.b16 %v4379, %v4375
    %v4760 = vpack.c.b16 %v4380, %v4376
    %v4761 = vpack.c.b16 %v4385, %v4381
    %v4762 = vpack.c.b16 %v4386, %v4382
    %v4763 = vpack.c.b16 %v4387, %v4383
    %v4764 = vpack.c.b16 %v4388, %v4384
    %v4765 = vpack.c.b16 %v4393, %v4389
    %v4766 = vpack.c.b16 %v4394, %v4390
    %v4767 = vpack.c.b16 %v4395, %v4391
    %v4768 = vpack.c.b16 %v4396, %v4392
    %v4769 = vpack.c.b16 %v4401, %v4397
    %v4770 = vpack.c.b16 %v4402, %v4398
    %v4771 = vpack.c.b16 %v4403, %v4399
    %v4772 = vpack.c.b16 %v4404, %v4400
    %v4773 = vpack.c.b16 %v4409, %v4405
    %v4774 = vpack.c.b16 %v4410, %v4406
    %v4775 = vpack.c.b16 %v4411, %v4407
    %v4776 = vpack.c.b16 %v4412, %v4408
    %v4777 = vpack.c.b16 %v4417, %v4413
    %v4778 = vpack.c.b16 %v4418, %v4414
    %v4779 = vpack.c.b16 %v4419, %v4415
    %v4780 = vpack.c.b16 %v4420, %v4416
    %v4781 = vpack.c.b16 %v4425, %v4421
    %v4782 = vpack.c.b16 %v4426, %v4422
    %v4783 = vpack.c.b16 %v4427, %v4423
    %v4784 = vpack.c.b16 %v4428, %v4424
    %v4785 = vpack.c.b16 %v4433, %v4429
    %v4786 = vpack.c.b16 %v4434, %v4430
    %v4787 = vpack.c.b16 %v4435, %v4431
    %v4788 = vpack.c.b16 %v4436, %v4432
    %v4789 = vpack.c.b16 %v4441, %v4437
    %v4790 = vpack.c.b16 %v4442, %v4438
    %v4791 = vpack.c.b16 %v4443, %v4439
    %v4792 = vpack.c.b16 %v4444, %v4440
    %v4793 = vpack.c.b16 %v4449, %v4445
    %v4794 = vpack.c.b16 %v4450, %v4446
    %v4795 = vpack.c.b16 %v4451, %v4447
    %v4796 = vpack.c.b16 %v4452, %v4448
    %v4797 = vpack.c.b16 %v4457, %v4453
    %v4798 = vpack.c.b16 %v4458, %v4454
    %v4799 = vpack.c.b16 %v4459, %v4455
    %v4800 = vpack.c.b16 %v4460, %v4456
    %v4801 = vpack.c.b16 %v4465, %v4461
    %v4802 = vpack.c.b16 %v4466, %v4462
    %v4803 = vpack.c.b16 %v4467, %v4463
    %v4804 = vpack.c.b16 %v4468, %v4464
    %v4805 = vpack.c.b16 %v4473, %v4469
    %v4806 = vpack.c.b16 %v4474, %v4470
    %v4807 = vpack.c.b16 %v4475, %v4471
    %v4808 = vpack.c.b16 %v4476, %v4472
    %v4809 = vpack.c.b16 %v4481, %v4477
    %v4810 = vpack.c.b16 %v4482, %v4478
    %v4811 = vpack.c.b16 %v4483, %v4479
    %v4812 = vpack.c.b16 %v4484, %v4480
    %v4813 = vpack.c.b16 %v4489, %v4485
    %v4814 = vpack.c.b16 %v4490, %v4486
    %v4815 = vpack.c.b16 %v4491, %v4487
    %v4816 = vpack.c.b16 %v4492, %v4488
    %v4817 = vpack.c.b16 %v4497, %v4493
    %v4818 = vpack.c.b16 %v4498, %v4494
    %v4819 = vpack.c.b16 %v4499, %v4495
    %v4820 = vpack.c.b16 %v4500, %v4496
    %v4821 = vpack.c.b16 %v4505, %v4501
    %v4822 = vpack.c.b16 %v4506, %v4502
    %v4823 = vpack.c.b16 %v4507, %v4503
    %v4824 = vpack.c.b16 %v4508, %v4504
    %v4825 = vpack.c.b16 %v4513, %v4509
    %v4826 = vpack.c.b16 %v4514, %v4510
    %v4827 = vpack.c.b16 %v4515, %v4511
    %v4828 = vpack.c.b16 %v4516, %v4512
    %v4829 = vpack.c.b16 %v4521, %v4517
    %v4830 = vpack.c.b16 %v4522, %v4518
    %v4831 = vpack.c.b16 %v4523, %v4519
    %v4832 = vpack.c.b16 %v4524, %v4520
    %v4833 = vpack.c.b16 %v4529, %v4525
    %v4834 = vpack.c.b16 %v4530, %v4526
    %v4835 = vpack.c.b16 %v4531, %v4527
    %v4836 = vpack.c.b16 %v4532, %v4528
    %v4837 = vpack.c.b16 %v4537, %v4533
    %v4838 = vpack.c.b16 %v4538, %v4534
    %v4839 = vpack.c.b16 %v4539, %v4535
    %v4840 = vpack.c.b16 %v4540, %v4536
    %v4841 = vpack.c.b16 %v4545, %v4541
    %v4842 = vpack.c.b16 %v4546, %v4542
    %v4843 = vpack.c.b16 %v4547, %v4543
    %v4844 = vpack.c.b16 %v4548, %v4544
    %v4845 = vpack.c.b16 %v4553, %v4549
    %v4846 = vpack.c.b16 %v4554, %v4550
    %v4847 = vpack.c.b16 %v4555, %v4551
    %v4848 = vpack.c.b16 %v4556, %v4552
    %v4849 = vpack.c.b16 %v4561, %v4557
    %v4850 = vpack.c.b16 %v4562, %v4558
    %v4851 = vpack.c.b16 %v4563, %v4559
    %v4852 = vpack.c.b16 %v4564, %v4560
    %v4853 = vpack.c.b16 %v4569, %v4565
    %v4854 = vpack.c.b16 %v4570, %v4566
    %v4855 = vpack.c.b16 %v4571, %v4567
    %v4856 = vpack.c.b16 %v4572, %v4568
    %v4857 = vpack.c.b16 %v4577, %v4573
    %v4858 = vpack.c.b16 %v4578, %v4574
    %v4859 = vpack.c.b16 %v4579, %v4575
    %v4860 = vpack.c.b16 %v4580, %v4576
    %v4861 = vpack.c.b16 %v4585, %v4581
    %v4862 = vpack.c.b16 %v4586, %v4582
    %v4863 = vpack.c.b16 %v4587, %v4583
    %v4864 = vpack.c.b16 %v4588, %v4584
    %v4865 = vpack.c.b16 %v4593, %v4589
    %v4866 = vpack.c.b16 %v4594, %v4590
    %v4867 = vpack.c.b16 %v4595, %v4591
    %v4868 = vpack.c.b16 %v4596, %v4592
    %v4869 = vpack.c.b16 %v4601, %v4597
    %v4870 = vpack.c.b16 %v4602, %v4598
    %v4871 = vpack.c.b16 %v4603, %v4599
    %v4872 = vpack.c.b16 %v4604, %v4600
    %v4873 = vpack.c.b16 %v4609, %v4605
    %v4874 = vpack.c.b16 %v4610, %v4606
    %v4875 = vpack.c.b16 %v4611, %v4607
    %v4876 = vpack.c.b16 %v4612, %v4608
    %v4877 = vpack.c.b16 %v4617, %v4613
    %v4878 = vpack.c.b16 %v4618, %v4614
    %v4879 = vpack.c.b16 %v4619, %v4615
    %v4880 = vpack.c.b16 %v4620, %v4616
    %v4881 = vpack.c.b16 %v4625, %v4621
    %v4882 = vpack.c.b16 %v4626, %v4622
    %v4883 = vpack.c.b16 %v4627, %v4623
    %v4884 = vpack.c.b16 %v4628, %v4624
    %5141 = vmatprep.subr.bf16.mxu0 %v4630
    %5142 = vmatpush1.bf16.msra.mxu0 %v4629
    %5143 = vmatprep.subr.bf16.mxu0 %v4634
    %5144 = vmatpush1.bf16.msra.mxu0 %v4633
    %5145 = vmatprep.subr.bf16.mxu0 %v4638
    %5146 = vmatpush1.bf16.msra.mxu0 %v4637
    %5147 = vmatprep.subr.bf16.mxu0 %v4642
    %5148 = vmatpush1.bf16.msra.mxu0 %v4641
    %5149 = vmatprep.subr.bf16.mxu0 %v4646
    %5150 = vmatpush1.bf16.msra.mxu0 %v4645
    %5151 = vmatprep.subr.bf16.mxu0 %v4650
    %5152 = vmatpush1.bf16.msra.mxu0 %v4649
    %5153 = vmatprep.subr.bf16.mxu0 %v4654
    %5154 = vmatpush1.bf16.msra.mxu0 %v4653
    %5155 = vmatprep.subr.bf16.mxu0 %v4658
    %5156 = vmatpush1.bf16.msra.mxu0 %v4657
    %5157 = vmatprep.subr.bf16.mxu0 %v4662
    %5158 = vmatpush1.bf16.msra.mxu0 %v4661
    %5159 = vmatprep.subr.bf16.mxu0 %v4666
    %5160 = vmatpush1.bf16.msra.mxu0 %v4665
    %5161 = vmatprep.subr.bf16.mxu0 %v4670
    %5162 = vmatpush1.bf16.msra.mxu0 %v4669
    %5163 = vmatprep.subr.bf16.mxu0 %v4674
    %5164 = vmatpush1.bf16.msra.mxu0 %v4673
    %5165 = vmatprep.subr.bf16.mxu0 %v4678
    %5166 = vmatpush1.bf16.msra.mxu0 %v4677
    %5167 = vmatprep.subr.bf16.mxu0 %v4682
    %5168 = vmatpush1.bf16.msra.mxu0 %v4681
    %5169 = vmatprep.subr.bf16.mxu0 %v4686
    %5170 = vmatpush1.bf16.msra.mxu0 %v4685
    %5171 = vmatprep.subr.bf16.mxu0 %v4690
    %5172 = vmatpush1.bf16.msra.mxu0 %v4689
    %5173 = vmatprep.mubr.bf16.mxu0 %v3576
    %5174 = vmatmul.mubr.bf16.gmra.mrb[0].mxu0 %v3575
    %v5175 = vpop.f32.mrb[0].mxu0
    %v5176 = vadd.f32 %v3844, %v5175
    %v5177 = vpop.f32.mrb[0].mxu0
    %v5178 = vadd.f32 %v3848, %v5177
    %v5179 = vpop.f32.mrb[0].mxu0
    %v5180 = vpop.f32.mrb[0].mxu0
    %5181 = vdwg.mxu0
    %5182 = vmatprep.subr.bf16.mxu0 %v4694
    %5183 = vmatpush1.bf16.msra.mxu0 %v4693
    %5184 = vmatprep.subr.bf16.mxu0 %v4698
    %5185 = vmatpush1.bf16.msra.mxu0 %v4697
    %5186 = vmatprep.subr.bf16.mxu0 %v4702
    %5187 = vmatpush1.bf16.msra.mxu0 %v4701
    %5188 = vmatprep.subr.bf16.mxu0 %v4706
    %5189 = vmatpush1.bf16.msra.mxu0 %v4705
    %5190 = vmatprep.subr.bf16.mxu0 %v4710
    %5191 = vmatpush1.bf16.msra.mxu0 %v4709
    %5192 = vmatprep.subr.bf16.mxu0 %v4714
    %5193 = vmatpush1.bf16.msra.mxu0 %v4713
    %5194 = vmatprep.subr.bf16.mxu0 %v4718
    %5195 = vmatpush1.bf16.msra.mxu0 %v4717
    %5196 = vmatprep.subr.bf16.mxu0 %v4722
    %5197 = vmatpush1.bf16.msra.mxu0 %v4721
    %5198 = vmatprep.subr.bf16.mxu0 %v4726
    %5199 = vmatpush1.bf16.msra.mxu0 %v4725
    %5200 = vmatprep.subr.bf16.mxu0 %v4730
    %5201 = vmatpush1.bf16.msra.mxu0 %v4729
    %5202 = vmatprep.subr.bf16.mxu0 %v4734
    %5203 = vmatpush1.bf16.msra.mxu0 %v4733
    %5204 = vmatprep.subr.bf16.mxu0 %v4738
    %5205 = vmatpush1.bf16.msra.mxu0 %v4737
    %5206 = vmatprep.subr.bf16.mxu0 %v4742
    %5207 = vmatpush1.bf16.msra.mxu0 %v4741
    %5208 = vmatprep.subr.bf16.mxu0 %v4746
    %5209 = vmatpush1.bf16.msra.mxu0 %v4745
    %5210 = vmatprep.subr.bf16.mxu0 %v4750
    %5211 = vmatpush1.bf16.msra.mxu0 %v4749
    %5212 = vmatprep.subr.bf16.mxu0 %v4754
    %5213 = vmatpush1.bf16.msra.mxu0 %v4753
    %5214 = vmatprep.mubr.bf16.mxu0 %v3578
    %5215 = vmatmul.mubr.bf16.gmra.mrb[0].mxu0 %v3577
    %v5216 = vpop.f32.mrb[0].mxu0
    %v5217 = vadd.f32 %v5176, %v5216
    %v5218 = vpop.f32.mrb[0].mxu0
    %v5219 = vadd.f32 %v5178, %v5218
    %v5220 = vpop.f32.mrb[0].mxu0
    %v5221 = vpop.f32.mrb[0].mxu0
    %5222 = vdwg.mxu0
    %5223 = vmatprep.subr.bf16.mxu0 %v4758
    %5224 = vmatpush1.bf16.msra.mxu0 %v4757
    %5225 = vmatprep.subr.bf16.mxu0 %v4762
    %5226 = vmatpush1.bf16.msra.mxu0 %v4761
    %5227 = vmatprep.subr.bf16.mxu0 %v4766
    %5228 = vmatpush1.bf16.msra.mxu0 %v4765
    %5229 = vmatprep.subr.bf16.mxu0 %v4770
    %5230 = vmatpush1.bf16.msra.mxu0 %v4769
    %5231 = vmatprep.subr.bf16.mxu0 %v4774
    %5232 = vmatpush1.bf16.msra.mxu0 %v4773
    %5233 = vmatprep.subr.bf16.mxu0 %v4778
    %5234 = vmatpush1.bf16.msra.mxu0 %v4777
    %5235 = vmatprep.subr.bf16.mxu0 %v4782
    %5236 = vmatpush1.bf16.msra.mxu0 %v4781
    %5237 = vmatprep.subr.bf16.mxu0 %v4786
    %5238 = vmatpush1.bf16.msra.mxu0 %v4785
    %5239 = vmatprep.subr.bf16.mxu0 %v4790
    %5240 = vmatpush1.bf16.msra.mxu0 %v4789
    %5241 = vmatprep.subr.bf16.mxu0 %v4794
    %5242 = vmatpush1.bf16.msra.mxu0 %v4793
    %5243 = vmatprep.subr.bf16.mxu0 %v4798
    %5244 = vmatpush1.bf16.msra.mxu0 %v4797
    %5245 = vmatprep.subr.bf16.mxu0 %v4802
    %5246 = vmatpush1.bf16.msra.mxu0 %v4801
    %5247 = vmatprep.subr.bf16.mxu0 %v4806
    %5248 = vmatpush1.bf16.msra.mxu0 %v4805
    %5249 = vmatprep.subr.bf16.mxu0 %v4810
    %5250 = vmatpush1.bf16.msra.mxu0 %v4809
    %5251 = vmatprep.subr.bf16.mxu0 %v4814
    %5252 = vmatpush1.bf16.msra.mxu0 %v4813
    %5253 = vmatprep.subr.bf16.mxu0 %v4818
    %5254 = vmatpush1.bf16.msra.mxu0 %v4817
    %5255 = vmatprep.mubr.bf16.mxu0 %v3580
    %5256 = vmatmul.mubr.bf16.gmra.mrb[0].mxu0 %v3579
    %v5257 = vpop.f32.mrb[0].mxu0
    %v5258 = vadd.f32 %v5217, %v5257
    %v5259 = vpop.f32.mrb[0].mxu0
    %v5260 = vadd.f32 %v5219, %v5259
    %v5261 = vpop.f32.mrb[0].mxu0
    %v5262 = vpop.f32.mrb[0].mxu0
    %5263 = vdwg.mxu0
    %5264 = vmatprep.subr.bf16.mxu0 %v4822
    %5265 = vmatpush1.bf16.msra.mxu0 %v4821
    %5266 = vmatprep.subr.bf16.mxu0 %v4826
    %5267 = vmatpush1.bf16.msra.mxu0 %v4825
    %5268 = vmatprep.subr.bf16.mxu0 %v4830
    %5269 = vmatpush1.bf16.msra.mxu0 %v4829
    %5270 = vmatprep.subr.bf16.mxu0 %v4834
    %5271 = vmatpush1.bf16.msra.mxu0 %v4833
    %5272 = vmatprep.subr.bf16.mxu0 %v4838
    %5273 = vmatpush1.bf16.msra.mxu0 %v4837
    %5274 = vmatprep.subr.bf16.mxu0 %v4842
    %5275 = vmatpush1.bf16.msra.mxu0 %v4841
    %5276 = vmatprep.subr.bf16.mxu0 %v4846
    %5277 = vmatpush1.bf16.msra.mxu0 %v4845
    %5278 = vmatprep.subr.bf16.mxu0 %v4850
    %5279 = vmatpush1.bf16.msra.mxu0 %v4849
    %5280 = vmatprep.subr.bf16.mxu0 %v4854
    %5281 = vmatpush1.bf16.msra.mxu0 %v4853
    %5282 = vmatprep.subr.bf16.mxu0 %v4858
    %5283 = vmatpush1.bf16.msra.mxu0 %v4857
    %5284 = vmatprep.subr.bf16.mxu0 %v4862
    %5285 = vmatpush1.bf16.msra.mxu0 %v4861
    %5286 = vmatprep.subr.bf16.mxu0 %v4866
    %5287 = vmatpush1.bf16.msra.mxu0 %v4865
    %5288 = vmatprep.subr.bf16.mxu0 %v4870
    %5289 = vmatpush1.bf16.msra.mxu0 %v4869
    %5290 = vmatprep.subr.bf16.mxu0 %v4874
    %5291 = vmatpush1.bf16.msra.mxu0 %v4873
    %5292 = vmatprep.subr.bf16.mxu0 %v4878
    %5293 = vmatpush1.bf16.msra.mxu0 %v4877
    %5294 = vmatprep.subr.bf16.mxu0 %v4882
    %5295 = vmatpush1.bf16.msra.mxu0 %v4881
    %5296 = vmatprep.mubr.bf16.mxu0 %v3582
    %5297 = vmatmul.mubr.bf16.gmra.mrb[0].mxu0 %v3581
    %v5298 = vpop.f32.mrb[0].mxu0
    %v5299 = vadd.f32 %v5258, %v5298
    %v5300 = vpop.f32.mrb[0].mxu0
    %v5301 = vadd.f32 %v5260, %v5300
    %v5302 = vpop.f32.mrb[0].mxu0
    %v5303 = vpop.f32.mrb[0].mxu0
    %5304 = vdwg.mxu0
    %5305 = vmatprep.subr.bf16.mxu0 %v4632
    %5306 = vmatpush1.bf16.msra.mxu0 %v4631
    %5307 = vmatprep.subr.bf16.mxu0 %v4636
    %5308 = vmatpush1.bf16.msra.mxu0 %v4635
    %5309 = vmatprep.subr.bf16.mxu0 %v4640
    %5310 = vmatpush1.bf16.msra.mxu0 %v4639
    %5311 = vmatprep.subr.bf16.mxu0 %v4644
    %5312 = vmatpush1.bf16.msra.mxu0 %v4643
    %5313 = vmatprep.subr.bf16.mxu0 %v4648
    %5314 = vmatpush1.bf16.msra.mxu0 %v4647
    %5315 = vmatprep.subr.bf16.mxu0 %v4652
    %5316 = vmatpush1.bf16.msra.mxu0 %v4651
    %5317 = vmatprep.subr.bf16.mxu0 %v4656
    %5318 = vmatpush1.bf16.msra.mxu0 %v4655
    %5319 = vmatprep.subr.bf16.mxu0 %v4660
    %5320 = vmatpush1.bf16.msra.mxu0 %v4659
    %5321 = vmatprep.subr.bf16.mxu0 %v4664
    %5322 = vmatpush1.bf16.msra.mxu0 %v4663
    %5323 = vmatprep.subr.bf16.mxu0 %v4668
    %5324 = vmatpush1.bf16.msra.mxu0 %v4667
    %5325 = vmatprep.subr.bf16.mxu0 %v4672
    %5326 = vmatpush1.bf16.msra.mxu0 %v4671
    %5327 = vmatprep.subr.bf16.mxu0 %v4676
    %5328 = vmatpush1.bf16.msra.mxu0 %v4675
    %5329 = vmatprep.subr.bf16.mxu0 %v4680
    %5330 = vmatpush1.bf16.msra.mxu0 %v4679
    %5331 = vmatprep.subr.bf16.mxu0 %v4684
    %5332 = vmatpush1.bf16.msra.mxu0 %v4683
    %5333 = vmatprep.subr.bf16.mxu0 %v4688
    %5334 = vmatpush1.bf16.msra.mxu0 %v4687
    %5335 = vmatprep.subr.bf16.mxu0 %v4692
    %5336 = vmatpush1.bf16.msra.mxu0 %v4691
    %5337 = vmatprep.mubr.bf16.mxu0 %v3576
    %5338 = vmatmul.mubr.bf16.gmra.mrb[0].mxu0 %v3575
    %v5339 = vpop.f32.mrb[0].mxu0
    %v5340 = vadd.f32 %v3852, %v5339
    %v5341 = vpop.f32.mrb[0].mxu0
    %v5342 = vadd.f32 %v3856, %v5341
    %v5343 = vpop.f32.mrb[0].mxu0
    %v5344 = vpop.f32.mrb[0].mxu0
    %5345 = vdwg.mxu0
    %5346 = vmatprep.subr.bf16.mxu0 %v4696
    %5347 = vmatpush1.bf16.msra.mxu0 %v4695
    %5348 = vmatprep.subr.bf16.mxu0 %v4700
    %5349 = vmatpush1.bf16.msra.mxu0 %v4699
    %5350 = vmatprep.subr.bf16.mxu0 %v4704
    %5351 = vmatpush1.bf16.msra.mxu0 %v4703
    %5352 = vmatprep.subr.bf16.mxu0 %v4708
    %5353 = vmatpush1.bf16.msra.mxu0 %v4707
    %5354 = vmatprep.subr.bf16.mxu0 %v4712
    %5355 = vmatpush1.bf16.msra.mxu0 %v4711
    %5356 = vmatprep.subr.bf16.mxu0 %v4716
    %5357 = vmatpush1.bf16.msra.mxu0 %v4715
    %5358 = vmatprep.subr.bf16.mxu0 %v4720
    %5359 = vmatpush1.bf16.msra.mxu0 %v4719
    %5360 = vmatprep.subr.bf16.mxu0 %v4724
    %5361 = vmatpush1.bf16.msra.mxu0 %v4723
    %5362 = vmatprep.subr.bf16.mxu0 %v4728
    %5363 = vmatpush1.bf16.msra.mxu0 %v4727
    %5364 = vmatprep.subr.bf16.mxu0 %v4732
    %5365 = vmatpush1.bf16.msra.mxu0 %v4731
    %5366 = vmatprep.subr.bf16.mxu0 %v4736
    %5367 = vmatpush1.bf16.msra.mxu0 %v4735
    %5368 = vmatprep.subr.bf16.mxu0 %v4740
    %5369 = vmatpush1.bf16.msra.mxu0 %v4739
    %5370 = vmatprep.subr.bf16.mxu0 %v4744
    %5371 = vmatpush1.bf16.msra.mxu0 %v4743
    %5372 = vmatprep.subr.bf16.mxu0 %v4748
    %5373 = vmatpush1.bf16.msra.mxu0 %v4747
    %5374 = vmatprep.subr.bf16.mxu0 %v4752
    %5375 = vmatpush1.bf16.msra.mxu0 %v4751
    %5376 = vmatprep.subr.bf16.mxu0 %v4756
    %5377 = vmatpush1.bf16.msra.mxu0 %v4755
    %5378 = vmatprep.mubr.bf16.mxu0 %v3578
    %5379 = vmatmul.mubr.bf16.gmra.mrb[0].mxu0 %v3577
    %v5380 = vpop.f32.mrb[0].mxu0
    %v5381 = vadd.f32 %v5340, %v5380
    %v5382 = vpop.f32.mrb[0].mxu0
    %v5383 = vadd.f32 %v5342, %v5382
    %v5384 = vpop.f32.mrb[0].mxu0
    %v5385 = vpop.f32.mrb[0].mxu0
    %5386 = vdwg.mxu0
    %5387 = vmatprep.subr.bf16.mxu0 %v4760
    %5388 = vmatpush1.bf16.msra.mxu0 %v4759
    %5389 = vmatprep.subr.bf16.mxu0 %v4764
    %5390 = vmatpush1.bf16.msra.mxu0 %v4763
    %5391 = vmatprep.subr.bf16.mxu0 %v4768
    %5392 = vmatpush1.bf16.msra.mxu0 %v4767
    %5393 = vmatprep.subr.bf16.mxu0 %v4772
    %5394 = vmatpush1.bf16.msra.mxu0 %v4771
    %5395 = vmatprep.subr.bf16.mxu0 %v4776
    %5396 = vmatpush1.bf16.msra.mxu0 %v4775
    %5397 = vmatprep.subr.bf16.mxu0 %v4780
    %5398 = vmatpush1.bf16.msra.mxu0 %v4779
    %5399 = vmatprep.subr.bf16.mxu0 %v4784
    %5400 = vmatpush1.bf16.msra.mxu0 %v4783
    %5401 = vmatprep.subr.bf16.mxu0 %v4788
    %5402 = vmatpush1.bf16.msra.mxu0 %v4787
    %5403 = vmatprep.subr.bf16.mxu0 %v4792
    %5404 = vmatpush1.bf16.msra.mxu0 %v4791
    %5405 = vmatprep.subr.bf16.mxu0 %v4796
    %5406 = vmatpush1.bf16.msra.mxu0 %v4795
    %5407 = vmatprep.subr.bf16.mxu0 %v4800
    %5408 = vmatpush1.bf16.msra.mxu0 %v4799
    %5409 = vmatprep.subr.bf16.mxu0 %v4804
    %5410 = vmatpush1.bf16.msra.mxu0 %v4803
    %5411 = vmatprep.subr.bf16.mxu0 %v4808
    %5412 = vmatpush1.bf16.msra.mxu0 %v4807
    %5413 = vmatprep.subr.bf16.mxu0 %v4812
    %5414 = vmatpush1.bf16.msra.mxu0 %v4811
    %5415 = vmatprep.subr.bf16.mxu0 %v4816
    %5416 = vmatpush1.bf16.msra.mxu0 %v4815
    %5417 = vmatprep.subr.bf16.mxu0 %v4820
    %5418 = vmatpush1.bf16.msra.mxu0 %v4819
    %5419 = vmatprep.mubr.bf16.mxu0 %v3580
    %5420 = vmatmul.mubr.bf16.gmra.mrb[0].mxu0 %v3579
    %v5421 = vpop.f32.mrb[0].mxu0
    %v5422 = vadd.f32 %v5381, %v5421
    %v5423 = vpop.f32.mrb[0].mxu0
    %v5424 = vadd.f32 %v5383, %v5423
    %v5425 = vpop.f32.mrb[0].mxu0
    %v5426 = vpop.f32.mrb[0].mxu0
    %5427 = vdwg.mxu0
    %5428 = vmatprep.subr.bf16.mxu0 %v4824
    %5429 = vmatpush1.bf16.msra.mxu0 %v4823
    %5430 = vmatprep.subr.bf16.mxu0 %v4828
    %5431 = vmatpush1.bf16.msra.mxu0 %v4827
    %5432 = vmatprep.subr.bf16.mxu0 %v4832
    %5433 = vmatpush1.bf16.msra.mxu0 %v4831
    %5434 = vmatprep.subr.bf16.mxu0 %v4836
    %5435 = vmatpush1.bf16.msra.mxu0 %v4835
    %5436 = vmatprep.subr.bf16.mxu0 %v4840
    %5437 = vmatpush1.bf16.msra.mxu0 %v4839
    %5438 = vmatprep.subr.bf16.mxu0 %v4844
    %5439 = vmatpush1.bf16.msra.mxu0 %v4843
    %5440 = vmatprep.subr.bf16.mxu0 %v4848
    %5441 = vmatpush1.bf16.msra.mxu0 %v4847
    %5442 = vmatprep.subr.bf16.mxu0 %v4852
    %5443 = vmatpush1.bf16.msra.mxu0 %v4851
    %5444 = vmatprep.subr.bf16.mxu0 %v4856
    %5445 = vmatpush1.bf16.msra.mxu0 %v4855
    %5446 = vmatprep.subr.bf16.mxu0 %v4860
    %5447 = vmatpush1.bf16.msra.mxu0 %v4859
    %5448 = vmatprep.subr.bf16.mxu0 %v4864
    %5449 = vmatpush1.bf16.msra.mxu0 %v4863
    %5450 = vmatprep.subr.bf16.mxu0 %v4868
    %5451 = vmatpush1.bf16.msra.mxu0 %v4867
    %5452 = vmatprep.subr.bf16.mxu0 %v4872
    %5453 = vmatpush1.bf16.msra.mxu0 %v4871
    %5454 = vmatprep.subr.bf16.mxu0 %v4876
    %5455 = vmatpush1.bf16.msra.mxu0 %v4875
    %5456 = vmatprep.subr.bf16.mxu0 %v4880
    %5457 = vmatpush1.bf16.msra.mxu0 %v4879
    %5458 = vmatprep.subr.bf16.mxu0 %v4884
    %5459 = vmatpush1.bf16.msra.mxu0 %v4883
    %5460 = vmatprep.mubr.bf16.mxu0 %v3582
    %5461 = vmatmul.mubr.bf16.gmra.mrb[0].mxu0 %v3581
    %v5462 = vpop.f32.mrb[0].mxu0
    %v5463 = vadd.f32 %v5422, %v5462
    %v5464 = vpop.f32.mrb[0].mxu0
    %v5465 = vadd.f32 %v5424, %v5464
    %v5466 = vpop.f32.mrb[0].mxu0
    %v5467 = vpop.f32.mrb[0].mxu0
    %5468 = vdwg.mxu0
    %vm5469 = vcmp.gt.f32.partialorder %v5299, 0.0
    %vm5470 = vcmp.gt.f32.partialorder %v5301, 0.0
    %vm5471 = vcmp.gt.f32.partialorder %v5463, 0.0
    %vm5472 = vcmp.gt.f32.partialorder %v5465, 0.0
    %v5473 = vmul.f32 %v5299, 0.2
    %v5474 = vmul.f32 %v5301, 0.2
    %v5475 = vmul.f32 %v5463, 0.2
    %v5476 = vmul.f32 %v5465, 0.2
    %v5477 = vsel %vm5469, %v5299, %v5473
    %v5478 = vsel %vm5470, %v5301, %v5474
    %v5479 = vsel %vm5471, %v5463, %v5475
    %v5480 = vsel %vm5472, %v5465, %v5476
    %v5481 = vpack.c.bf16 %v5477, %v5477
    %v5482 = vpack.c.bf16 %v5478, %v5478
    %v5483 = vpack.c.bf16 %v5479, %v5479
    %v5484 = vpack.c.bf16 %v5480, %v5480
    %v5485 = vld [vmem:[#allocation9] sm:$0xff]
    %v5486 = vld [vmem:[#allocation9 + $0x8] sm:$0xff]
    %v5487 = vld [vmem:[#allocation9 + $0x10] sm:$0xff]
    %v5488 = vld [vmem:[#allocation9 + $0x18] sm:$0xff]
    %v5489 = vld [vmem:[#allocation9 + $0x20] sm:$0xff]
    %v5490 = vld [vmem:[#allocation9 + $0x28] sm:$0xff]
    %v5491 = vld [vmem:[#allocation9 + $0x30] sm:$0xff]
    %v5492 = vld [vmem:[#allocation9 + $0x38] sm:$0xff]
    %v5493 = vld [vmem:[#allocation9 + $0x40] sm:$0xff]
    %v5494 = vld [vmem:[#allocation9 + $0x48] sm:$0xff]
    %v5495 = vld [vmem:[#allocation9 + $0x50] sm:$0xff]
    %v5496 = vld [vmem:[#allocation9 + $0x58] sm:$0xff]
    %v5497 = vld [vmem:[#allocation9 + $0x60] sm:$0xff]
    %v5498 = vld [vmem:[#allocation9 + $0x68] sm:$0xff]
    %v5499 = vld [vmem:[#allocation9 + $0x70] sm:$0xff]
    %v5500 = vld [vmem:[#allocation9 + $0x78] sm:$0xff]
    %v5501 = vld [vmem:[#allocation9 + $0x80] sm:$0xff]
    %v5502 = vld [vmem:[#allocation9 + $0x88] sm:$0xff]
    %v5503 = vld [vmem:[#allocation9 + $0x90] sm:$0xff]
    %v5504 = vld [vmem:[#allocation9 + $0x98] sm:$0xff]
    %v5505 = vld [vmem:[#allocation9 + $0xa0] sm:$0xff]
    %v5506 = vld [vmem:[#allocation9 + $0xa8] sm:$0xff]
    %v5507 = vld [vmem:[#allocation9 + $0xb0] sm:$0xff]
    %v5508 = vld [vmem:[#allocation9 + $0xb8] sm:$0xff]
    %v5509 = vld [vmem:[#allocation9 + $0xc0] sm:$0xff]
    %v5510 = vld [vmem:[#allocation9 + $0xc8] sm:$0xff]
    %v5511 = vld [vmem:[#allocation9 + $0xd0] sm:$0xff]
    %v5512 = vld [vmem:[#allocation9 + $0xd8] sm:$0xff]
    %v5513 = vld [vmem:[#allocation9 + $0xe0] sm:$0xff]
    %v5514 = vld [vmem:[#allocation9 + $0xe8] sm:$0xff]
    %v5515 = vld [vmem:[#allocation9 + $0xf0] sm:$0xff]
    %v5516 = vld [vmem:[#allocation9 + $0xf8] sm:$0xff]
    %v5517 = vld [vmem:[#allocation9 + $0x100] sm:$0xff]
    %v5518 = vld [vmem:[#allocation9 + $0x108] sm:$0xff]
    %v5519 = vld [vmem:[#allocation9 + $0x110] sm:$0xff]
    %v5520 = vld [vmem:[#allocation9 + $0x118] sm:$0xff]
    %v5521 = vld [vmem:[#allocation9 + $0x120] sm:$0xff]
    %v5522 = vld [vmem:[#allocation9 + $0x128] sm:$0xff]
    %v5523 = vld [vmem:[#allocation9 + $0x130] sm:$0xff]
    %v5524 = vld [vmem:[#allocation9 + $0x138] sm:$0xff]
    %v5525 = vld [vmem:[#allocation9 + $0x140] sm:$0xff]
    %v5526 = vld [vmem:[#allocation9 + $0x148] sm:$0xff]
    %v5527 = vld [vmem:[#allocation9 + $0x150] sm:$0xff]
    %v5528 = vld [vmem:[#allocation9 + $0x158] sm:$0xff]
    %v5529 = vld [vmem:[#allocation9 + $0x160] sm:$0xff]
    %v5530 = vld [vmem:[#allocation9 + $0x168] sm:$0xff]
    %v5531 = vld [vmem:[#allocation9 + $0x170] sm:$0xff]
    %v5532 = vld [vmem:[#allocation9 + $0x178] sm:$0xff]
    %v5533 = vld [vmem:[#allocation9 + $0x180] sm:$0xff]
    %v5534 = vld [vmem:[#allocation9 + $0x188] sm:$0xff]
    %v5535 = vld [vmem:[#allocation9 + $0x190] sm:$0xff]
    %v5536 = vld [vmem:[#allocation9 + $0x198] sm:$0xff]
    %v5537 = vld [vmem:[#allocation9 + $0x1a0] sm:$0xff]
    %v5538 = vld [vmem:[#allocation9 + $0x1a8] sm:$0xff]
    %v5539 = vld [vmem:[#allocation9 + $0x1b0] sm:$0xff]
    %v5540 = vld [vmem:[#allocation9 + $0x1b8] sm:$0xff]
    %v5541 = vld [vmem:[#allocation9 + $0x1c0] sm:$0xff]
    %v5542 = vld [vmem:[#allocation9 + $0x1c8] sm:$0xff]
    %v5543 = vld [vmem:[#allocation9 + $0x1d0] sm:$0xff]
    %v5544 = vld [vmem:[#allocation9 + $0x1d8] sm:$0xff]
    %v5545 = vld [vmem:[#allocation9 + $0x1e0] sm:$0xff]
    %v5546 = vld [vmem:[#allocation9 + $0x1e8] sm:$0xff]
    %v5547 = vld [vmem:[#allocation9 + $0x1f0] sm:$0xff]
    %v5548 = vld [vmem:[#allocation9 + $0x1f8] sm:$0xff]
    %v5549 = vld [vmem:[#allocation10] sm:$0x3]
    %v5551 = vlaneseq
    %v5552 = vshrl.u32 %v5551, 7
    %v5553 = vsub.s32 0, %v5552
    %v5554 = vrot.slane %v5549, %v5553
    %v5555 = vlaneseq
    %v5556 = vshrl.u32 %v5555, 7
    %v5557 = vsub.s32 1, %v5556
    %v5558 = vrot.slane %v5549, %v5557
    %v5625 = vunpack.c.l.b16 %v5485
    %v5626 = vunpack.c.h.b16 %v5485
    %v5627 = vunpack.c.l.b16 %v5486
    %v5628 = vunpack.c.h.b16 %v5486
    %v5629 = vunpack.c.l.b16 %v5487
    %v5630 = vunpack.c.h.b16 %v5487
    %v5631 = vunpack.c.l.b16 %v5488
    %v5632 = vunpack.c.h.b16 %v5488
    %v5633 = vunpack.c.l.b16 %v5489
    %v5634 = vunpack.c.h.b16 %v5489
    %v5635 = vunpack.c.l.b16 %v5490
    %v5636 = vunpack.c.h.b16 %v5490
    %v5637 = vunpack.c.l.b16 %v5491
    %v5638 = vunpack.c.h.b16 %v5491
    %v5639 = vunpack.c.l.b16 %v5492
    %v5640 = vunpack.c.h.b16 %v5492
    %v5641 = vunpack.c.l.b16 %v5493
    %v5642 = vunpack.c.h.b16 %v5493
    %v5643 = vunpack.c.l.b16 %v5494
    %v5644 = vunpack.c.h.b16 %v5494
    %v5645 = vunpack.c.l.b16 %v5495
    %v5646 = vunpack.c.h.b16 %v5495
    %v5647 = vunpack.c.l.b16 %v5496
    %v5648 = vunpack.c.h.b16 %v5496
    %v5649 = vunpack.c.l.b16 %v5497
    %v5650 = vunpack.c.h.b16 %v5497
    %v5651 = vunpack.c.l.b16 %v5498
    %v5652 = vunpack.c.h.b16 %v5498
    %v5653 = vunpack.c.l.b16 %v5499
    %v5654 = vunpack.c.h.b16 %v5499
    %v5655 = vunpack.c.l.b16 %v5500
    %v5656 = vunpack.c.h.b16 %v5500
    %v5657 = vunpack.c.l.b16 %v5501
    %v5658 = vunpack.c.h.b16 %v5501
    %v5659 = vunpack.c.l.b16 %v5502
    %v5660 = vunpack.c.h.b16 %v5502
    %v5661 = vunpack.c.l.b16 %v5503
    %v5662 = vunpack.c.h.b16 %v5503
    %v5663 = vunpack.c.l.b16 %v5504
    %v5664 = vunpack.c.h.b16 %v5504
    %v5665 = vunpack.c.l.b16 %v5505
    %v5666 = vunpack.c.h.b16 %v5505
    %v5667 = vunpack.c.l.b16 %v5506
    %v5668 = vunpack.c.h.b16 %v5506
    %v5669 = vunpack.c.l.b16 %v5507
    %v5670 = vunpack.c.h.b16 %v5507
    %v5671 = vunpack.c.l.b16 %v5508
    %v5672 = vunpack.c.h.b16 %v5508
    %v5673 = vunpack.c.l.b16 %v5509
    %v5674 = vunpack.c.h.b16 %v5509
    %v5675 = vunpack.c.l.b16 %v5510
    %v5676 = vunpack.c.h.b16 %v5510
    %v5677 = vunpack.c.l.b16 %v5511
    %v5678 = vunpack.c.h.b16 %v5511
    %v5679 = vunpack.c.l.b16 %v5512
    %v5680 = vunpack.c.h.b16 %v5512
    %v5681 = vunpack.c.l.b16 %v5513
    %v5682 = vunpack.c.h.b16 %v5513
    %v5683 = vunpack.c.l.b16 %v5514
    %v5684 = vunpack.c.h.b16 %v5514
    %v5685 = vunpack.c.l.b16 %v5515
    %v5686 = vunpack.c.h.b16 %v5515
    %v5687 = vunpack.c.l.b16 %v5516
    %v5688 = vunpack.c.h.b16 %v5516
    %v5689 = vunpack.c.l.b16 %v5517
    %v5690 = vunpack.c.h.b16 %v5517
    %v5691 = vunpack.c.l.b16 %v5518
    %v5692 = vunpack.c.h.b16 %v5518
    %v5693 = vunpack.c.l.b16 %v5519
    %v5694 = vunpack.c.h.b16 %v5519
    %v5695 = vunpack.c.l.b16 %v5520
    %v5696 = vunpack.c.h.b16 %v5520
    %v5697 = vunpack.c.l.b16 %v5521
    %v5698 = vunpack.c.h.b16 %v5521
    %v5699 = vunpack.c.l.b16 %v5522
    %v5700 = vunpack.c.h.b16 %v5522
    %v5701 = vunpack.c.l.b16 %v5523
    %v5702 = vunpack.c.h.b16 %v5523
    %v5703 = vunpack.c.l.b16 %v5524
    %v5704 = vunpack.c.h.b16 %v5524
    %v5705 = vunpack.c.l.b16 %v5525
    %v5706 = vunpack.c.h.b16 %v5525
    %v5707 = vunpack.c.l.b16 %v5526
    %v5708 = vunpack.c.h.b16 %v5526
    %v5709 = vunpack.c.l.b16 %v5527
    %v5710 = vunpack.c.h.b16 %v5527
    %v5711 = vunpack.c.l.b16 %v5528
    %v5712 = vunpack.c.h.b16 %v5528
    %v5713 = vunpack.c.l.b16 %v5529
    %v5714 = vunpack.c.h.b16 %v5529
    %v5715 = vunpack.c.l.b16 %v5530
    %v5716 = vunpack.c.h.b16 %v5530
    %v5717 = vunpack.c.l.b16 %v5531
    %v5718 = vunpack.c.h.b16 %v5531
    %v5719 = vunpack.c.l.b16 %v5532
    %v5720 = vunpack.c.h.b16 %v5532
    %v5721 = vunpack.c.l.b16 %v5533
    %v5722 = vunpack.c.h.b16 %v5533
    %v5723 = vunpack.c.l.b16 %v5534
    %v5724 = vunpack.c.h.b16 %v5534
    %v5725 = vunpack.c.l.b16 %v5535
    %v5726 = vunpack.c.h.b16 %v5535
    %v5727 = vunpack.c.l.b16 %v5536
    %v5728 = vunpack.c.h.b16 %v5536
    %v5729 = vunpack.c.l.b16 %v5537
    %v5730 = vunpack.c.h.b16 %v5537
    %v5731 = vunpack.c.l.b16 %v5538
    %v5732 = vunpack.c.h.b16 %v5538
    %v5733 = vunpack.c.l.b16 %v5539
    %v5734 = vunpack.c.h.b16 %v5539
    %v5735 = vunpack.c.l.b16 %v5540
    %v5736 = vunpack.c.h.b16 %v5540
    %v5737 = vunpack.c.l.b16 %v5541
    %v5738 = vunpack.c.h.b16 %v5541
    %v5739 = vunpack.c.l.b16 %v5542
    %v5740 = vunpack.c.h.b16 %v5542
    %v5741 = vunpack.c.l.b16 %v5543
    %v5742 = vunpack.c.h.b16 %v5543
    %v5743 = vunpack.c.l.b16 %v5544
    %v5744 = vunpack.c.h.b16 %v5544
    %v5745 = vunpack.c.l.b16 %v5545
    %v5746 = vunpack.c.h.b16 %v5545
    %v5747 = vunpack.c.l.b16 %v5546
    %v5748 = vunpack.c.h.b16 %v5546
    %v5749 = vunpack.c.l.b16 %v5547
    %v5750 = vunpack.c.h.b16 %v5547
    %v5751 = vunpack.c.l.b16 %v5548
    %v5752 = vunpack.c.h.b16 %v5548
    %v5753 = vpack.c.b16 %v5627, %v5625
    %v5754 = vpack.c.b16 %v5628, %v5626
    %v5755 = vpack.c.b16 %v5631, %v5629
    %v5756 = vpack.c.b16 %v5632, %v5630
    %v5757 = vpack.c.b16 %v5635, %v5633
    %v5758 = vpack.c.b16 %v5636, %v5634
    %v5759 = vpack.c.b16 %v5639, %v5637
    %v5760 = vpack.c.b16 %v5640, %v5638
    %v5761 = vpack.c.b16 %v5643, %v5641
    %v5762 = vpack.c.b16 %v5644, %v5642
    %v5763 = vpack.c.b16 %v5647, %v5645
    %v5764 = vpack.c.b16 %v5648, %v5646
    %v5765 = vpack.c.b16 %v5651, %v5649
    %v5766 = vpack.c.b16 %v5652, %v5650
    %v5767 = vpack.c.b16 %v5655, %v5653
    %v5768 = vpack.c.b16 %v5656, %v5654
    %v5769 = vpack.c.b16 %v5659, %v5657
    %v5770 = vpack.c.b16 %v5660, %v5658
    %v5771 = vpack.c.b16 %v5663, %v5661
    %v5772 = vpack.c.b16 %v5664, %v5662
    %v5773 = vpack.c.b16 %v5667, %v5665
    %v5774 = vpack.c.b16 %v5668, %v5666
    %v5775 = vpack.c.b16 %v5671, %v5669
    %v5776 = vpack.c.b16 %v5672, %v5670
    %v5777 = vpack.c.b16 %v5675, %v5673
    %v5778 = vpack.c.b16 %v5676, %v5674
    %v5779 = vpack.c.b16 %v5679, %v5677
    %v5780 = vpack.c.b16 %v5680, %v5678
    %v5781 = vpack.c.b16 %v5683, %v5681
    %v5782 = vpack.c.b16 %v5684, %v5682
    %v5783 = vpack.c.b16 %v5687, %v5685
    %v5784 = vpack.c.b16 %v5688, %v5686
    %v5785 = vpack.c.b16 %v5691, %v5689
    %v5786 = vpack.c.b16 %v5692, %v5690
    %v5787 = vpack.c.b16 %v5695, %v5693
    %v5788 = vpack.c.b16 %v5696, %v5694
    %v5789 = vpack.c.b16 %v5699, %v5697
    %v5790 = vpack.c.b16 %v5700, %v5698
    %v5791 = vpack.c.b16 %v5703, %v5701
    %v5792 = vpack.c.b16 %v5704, %v5702
    %v5793 = vpack.c.b16 %v5707, %v5705
    %v5794 = vpack.c.b16 %v5708, %v5706
    %v5795 = vpack.c.b16 %v5711, %v5709
    %v5796 = vpack.c.b16 %v5712, %v5710
    %v5797 = vpack.c.b16 %v5715, %v5713
    %v5798 = vpack.c.b16 %v5716, %v5714
    %v5799 = vpack.c.b16 %v5719, %v5717
    %v5800 = vpack.c.b16 %v5720, %v5718
    %v5801 = vpack.c.b16 %v5723, %v5721
    %v5802 = vpack.c.b16 %v5724, %v5722
    %v5803 = vpack.c.b16 %v5727, %v5725
    %v5804 = vpack.c.b16 %v5728, %v5726
    %v5805 = vpack.c.b16 %v5731, %v5729
    %v5806 = vpack.c.b16 %v5732, %v5730
    %v5807 = vpack.c.b16 %v5735, %v5733
    %v5808 = vpack.c.b16 %v5736, %v5734
    %v5809 = vpack.c.b16 %v5739, %v5737
    %v5810 = vpack.c.b16 %v5740, %v5738
    %v5811 = vpack.c.b16 %v5743, %v5741
    %v5812 = vpack.c.b16 %v5744, %v5742
    %v5813 = vpack.c.b16 %v5747, %v5745
    %v5814 = vpack.c.b16 %v5748, %v5746
    %v5815 = vpack.c.b16 %v5751, %v5749
    %v5816 = vpack.c.b16 %v5752, %v5750
    %5881 = vmatprep.subr.bf16.mxu0 %v5754
    %5882 = vmatpush1.bf16.msra.mxu0 %v5753
    %5883 = vmatprep.subr.bf16.mxu0 %v5756
    %5884 = vmatpush1.bf16.msra.mxu0 %v5755
    %5885 = vmatprep.subr.bf16.mxu0 %v5758
    %5886 = vmatpush1.bf16.msra.mxu0 %v5757
    %5887 = vmatprep.subr.bf16.mxu0 %v5760
    %5888 = vmatpush1.bf16.msra.mxu0 %v5759
    %5889 = vmatprep.subr.bf16.mxu0 %v5762
    %5890 = vmatpush1.bf16.msra.mxu0 %v5761
    %5891 = vmatprep.subr.bf16.mxu0 %v5764
    %5892 = vmatpush1.bf16.msra.mxu0 %v5763
    %5893 = vmatprep.subr.bf16.mxu0 %v5766
    %5894 = vmatpush1.bf16.msra.mxu0 %v5765
    %5895 = vmatprep.subr.bf16.mxu0 %v5768
    %5896 = vmatpush1.bf16.msra.mxu0 %v5767
    %5897 = vmatprep.subr.bf16.mxu0 %v5770
    %5898 = vmatpush1.bf16.msra.mxu0 %v5769
    %5899 = vmatprep.subr.bf16.mxu0 %v5772
    %5900 = vmatpush1.bf16.msra.mxu0 %v5771
    %5901 = vmatprep.subr.bf16.mxu0 %v5774
    %5902 = vmatpush1.bf16.msra.mxu0 %v5773
    %5903 = vmatprep.subr.bf16.mxu0 %v5776
    %5904 = vmatpush1.bf16.msra.mxu0 %v5775
    %5905 = vmatprep.subr.bf16.mxu0 %v5778
    %5906 = vmatpush1.bf16.msra.mxu0 %v5777
    %5907 = vmatprep.subr.bf16.mxu0 %v5780
    %5908 = vmatpush1.bf16.msra.mxu0 %v5779
    %5909 = vmatprep.subr.bf16.mxu0 %v5782
    %5910 = vmatpush1.bf16.msra.mxu0 %v5781
    %5911 = vmatprep.subr.bf16.mxu0 %v5784
    %5912 = vmatpush1.bf16.msra.mxu0 %v5783
    %5913 = vmatprep.mubr.bf16.mxu0 %v5482
    %5914 = vmatmul.mubr.bf16.gmra.mrb[0].mxu0 %v5481
    %v5915 = vpop.f32.mrb[0].mxu0
    %v5916 = vadd.f32 %v5554, %v5915
    %v5917 = vpop.f32.mrb[0].mxu0
    %v5918 = vadd.f32 %v5558, %v5917
    %v5919 = vpop.f32.mrb[0].mxu0
    %v5920 = vpop.f32.mrb[0].mxu0
    %5921 = vdwg.mxu0
    %5922 = vmatprep.subr.bf16.mxu0 %v5786
    %5923 = vmatpush1.bf16.msra.mxu0 %v5785
    %5924 = vmatprep.subr.bf16.mxu0 %v5788
    %5925 = vmatpush1.bf16.msra.mxu0 %v5787
    %5926 = vmatprep.subr.bf16.mxu0 %v5790
    %5927 = vmatpush1.bf16.msra.mxu0 %v5789
    %5928 = vmatprep.subr.bf16.mxu0 %v5792
    %5929 = vmatpush1.bf16.msra.mxu0 %v5791
    %5930 = vmatprep.subr.bf16.mxu0 %v5794
    %5931 = vmatpush1.bf16.msra.mxu0 %v5793
    %5932 = vmatprep.subr.bf16.mxu0 %v5796
    %5933 = vmatpush1.bf16.msra.mxu0 %v5795
    %5934 = vmatprep.subr.bf16.mxu0 %v5798
    %5935 = vmatpush1.bf16.msra.mxu0 %v5797
    %5936 = vmatprep.subr.bf16.mxu0 %v5800
    %5937 = vmatpush1.bf16.msra.mxu0 %v5799
    %5938 = vmatprep.subr.bf16.mxu0 %v5802
    %5939 = vmatpush1.bf16.msra.mxu0 %v5801
    %5940 = vmatprep.subr.bf16.mxu0 %v5804
    %5941 = vmatpush1.bf16.msra.mxu0 %v5803
    %5942 = vmatprep.subr.bf16.mxu0 %v5806
    %5943 = vmatpush1.bf16.msra.mxu0 %v5805
    %5944 = vmatprep.subr.bf16.mxu0 %v5808
    %5945 = vmatpush1.bf16.msra.mxu0 %v5807
    %5946 = vmatprep.subr.bf16.mxu0 %v5810
    %5947 = vmatpush1.bf16.msra.mxu0 %v5809
    %5948 = vmatprep.subr.bf16.mxu0 %v5812
    %5949 = vmatpush1.bf16.msra.mxu0 %v5811
    %5950 = vmatprep.subr.bf16.mxu0 %v5814
    %5951 = vmatpush1.bf16.msra.mxu0 %v5813
    %5952 = vmatprep.subr.bf16.mxu0 %v5816
    %5953 = vmatpush1.bf16.msra.mxu0 %v5815
    %5954 = vmatprep.mubr.bf16.mxu0 %v5484
    %5955 = vmatmul.mubr.bf16.gmra.mrb[0].mxu0 %v5483
    %v5956 = vpop.f32.mrb[0].mxu0
    %v5957 = vadd.f32 %v5916, %v5956
    %v5958 = vpop.f32.mrb[0].mxu0
    %v5959 = vadd.f32 %v5918, %v5958
    %v5960 = vpop.f32.mrb[0].mxu0
    %v5961 = vpop.f32.mrb[0].mxu0
    %5962 = vdwg.mxu0
    %vm5963 = vcmp.gt.f32.partialorder %v5957, 0.0
    %vm5964 = vcmp.gt.f32.partialorder %v5959, 0.0
    %v5965 = vmul.f32 %v5957, 0.2
    %v5966 = vmul.f32 %v5959, 0.2
    %v5967 = vsel %vm5963, %v5957, %v5965
    %v5968 = vsel %vm5964, %v5959, %v5966
    %5969 = vst [vmem:[%s9] sm:$0xff] %v5967
    %5970 = vst [vmem:[%s9 + $0x8] sm:$0xff] %v5968
    %v5971 = vpack.c.bf16 %v5967, %v5967
    %v5972 = vpack.c.bf16 %v5968, %v5968
    %v5973 = vld [vmem:[#allocation12] sm:$0xf]
    %v5974 = vld [vmem:[#allocation12 + $0x4] sm:$0xf]
    %v5975 = vld [vmem:[#allocation12 + $0x8] sm:$0xf]
    %v5976 = vld [vmem:[#allocation12 + $0xc] sm:$0xf]
    %v5977 = vld [vmem:[#allocation12 + $0x10] sm:$0xf]
    %v5978 = vld [vmem:[#allocation12 + $0x14] sm:$0xf]
    %v5979 = vld [vmem:[#allocation12 + $0x18] sm:$0xf]
    %v5980 = vld [vmem:[#allocation12 + $0x1c] sm:$0xf]
    %v5981 = vld [vmem:[#allocation12 + $0x20] sm:$0xf]
    %v5982 = vld [vmem:[#allocation12 + $0x24] sm:$0xf]
    %v5983 = vld [vmem:[#allocation12 + $0x28] sm:$0xf]
    %v5984 = vld [vmem:[#allocation12 + $0x2c] sm:$0xf]
    %v5985 = vld [vmem:[#allocation12 + $0x30] sm:$0xf]
    %v5986 = vld [vmem:[#allocation12 + $0x34] sm:$0xf]
    %v5987 = vld [vmem:[#allocation12 + $0x38] sm:$0xf]
    %v5988 = vld [vmem:[#allocation12 + $0x3c] sm:$0xf]
    %v5989 = vld [vmem:[#allocation12 + $0x40] sm:$0xf]
    %v5990 = vld [vmem:[#allocation12 + $0x44] sm:$0xf]
    %v5991 = vld [vmem:[#allocation12 + $0x48] sm:$0xf]
    %v5992 = vld [vmem:[#allocation12 + $0x4c] sm:$0xf]
    %v5993 = vld [vmem:[#allocation12 + $0x50] sm:$0xf]
    %v5994 = vld [vmem:[#allocation12 + $0x54] sm:$0xf]
    %v5995 = vld [vmem:[#allocation12 + $0x58] sm:$0xf]
    %v5996 = vld [vmem:[#allocation12 + $0x5c] sm:$0xf]
    %v5997 = vld [vmem:[#allocation12 + $0x60] sm:$0xf]
    %v5998 = vld [vmem:[#allocation12 + $0x64] sm:$0xf]
    %v5999 = vld [vmem:[#allocation12 + $0x68] sm:$0xf]
    %v6000 = vld [vmem:[#allocation12 + $0x6c] sm:$0xf]
    %v6001 = vld [vmem:[#allocation12 + $0x70] sm:$0xf]
    %v6002 = vld [vmem:[#allocation12 + $0x74] sm:$0xf]
    %v6003 = vld [vmem:[#allocation12 + $0x78] sm:$0xf]
    %v6004 = vld [vmem:[#allocation12 + $0x7c] sm:$0xf]
    %v6005 = vld [vmem:[#allocation13] sm:$0x1]
    %v6007 = vlaneseq
    %v6008 = vshrl.u32 %v6007, 7
    %v6009 = vsub.s32 0, %v6008
    %v6010 = vrot.slane %v6005, %v6009
    %v6044 = vunpack.c.l.b16 %v5973
    %v6045 = vunpack.c.l.b16 %v5974
    %v6046 = vunpack.c.l.b16 %v5975
    %v6047 = vunpack.c.l.b16 %v5976
    %v6048 = vunpack.c.l.b16 %v5977
    %v6049 = vunpack.c.l.b16 %v5978
    %v6050 = vunpack.c.l.b16 %v5979
    %v6051 = vunpack.c.l.b16 %v5980
    %v6052 = vunpack.c.l.b16 %v5981
    %v6053 = vunpack.c.l.b16 %v5982
    %v6054 = vunpack.c.l.b16 %v5983
    %v6055 = vunpack.c.l.b16 %v5984
    %v6056 = vunpack.c.l.b16 %v5985
    %v6057 = vunpack.c.l.b16 %v5986
    %v6058 = vunpack.c.l.b16 %v5987
    %v6059 = vunpack.c.l.b16 %v5988
    %v6060 = vunpack.c.l.b16 %v5989
    %v6061 = vunpack.c.l.b16 %v5990
    %v6062 = vunpack.c.l.b16 %v5991
    %v6063 = vunpack.c.l.b16 %v5992
    %v6064 = vunpack.c.l.b16 %v5993
    %v6065 = vunpack.c.l.b16 %v5994
    %v6066 = vunpack.c.l.b16 %v5995
    %v6067 = vunpack.c.l.b16 %v5996
    %v6068 = vunpack.c.l.b16 %v5997
    %v6069 = vunpack.c.l.b16 %v5998
    %v6070 = vunpack.c.l.b16 %v5999
    %v6071 = vunpack.c.l.b16 %v6000
    %v6072 = vunpack.c.l.b16 %v6001
    %v6073 = vunpack.c.l.b16 %v6002
    %v6074 = vunpack.c.l.b16 %v6003
    %v6075 = vunpack.c.l.b16 %v6004
    %v6076 = vpack.c.b16 %v6045, %v6044
    %v6077 = vpack.c.b16 %v6047, %v6046
    %v6078 = vpack.c.b16 %v6049, %v6048
    %v6079 = vpack.c.b16 %v6051, %v6050
    %v6080 = vpack.c.b16 %v6053, %v6052
    %v6081 = vpack.c.b16 %v6055, %v6054
    %v6082 = vpack.c.b16 %v6057, %v6056
    %v6083 = vpack.c.b16 %v6059, %v6058
    %v6084 = vpack.c.b16 %v6061, %v6060
    %v6085 = vpack.c.b16 %v6063, %v6062
    %v6086 = vpack.c.b16 %v6065, %v6064
    %v6087 = vpack.c.b16 %v6067, %v6066
    %v6088 = vpack.c.b16 %v6069, %v6068
    %v6089 = vpack.c.b16 %v6071, %v6070
    %v6090 = vpack.c.b16 %v6073, %v6072
    %v6091 = vpack.c.b16 %v6075, %v6074
    %6108 = vmatprep.subr.bf16.mxu0 0
    %6109 = vmatpush1.bf16.msra.mxu0 %v6076
    %6110 = vmatprep.subr.bf16.mxu0 0
    %6111 = vmatpush1.bf16.msra.mxu0 %v6077
    %6112 = vmatprep.subr.bf16.mxu0 0
    %6113 = vmatpush1.bf16.msra.mxu0 %v6078
    %6114 = vmatprep.subr.bf16.mxu0 0
    %6115 = vmatpush1.bf16.msra.mxu0 %v6079
    %6116 = vmatprep.subr.bf16.mxu0 0
    %6117 = vmatpush1.bf16.msra.mxu0 %v6080
    %6118 = vmatprep.subr.bf16.mxu0 0
    %6119 = vmatpush1.bf16.msra.mxu0 %v6081
    %6120 = vmatprep.subr.bf16.mxu0 0
    %6121 = vmatpush1.bf16.msra.mxu0 %v6082
    %6122 = vmatprep.subr.bf16.mxu0 0
    %6123 = vmatpush1.bf16.msra.mxu0 %v6083
    %6124 = vmatprep.subr.bf16.mxu0 0
    %6125 = vmatpush1.bf16.msra.mxu0 %v6084
    %6126 = vmatprep.subr.bf16.mxu0 0
    %6127 = vmatpush1.bf16.msra.mxu0 %v6085
    %6128 = vmatprep.subr.bf16.mxu0 0
    %6129 = vmatpush1.bf16.msra.mxu0 %v6086
    %6130 = vmatprep.subr.bf16.mxu0 0
    %6131 = vmatpush1.bf16.msra.mxu0 %v6087
    %6132 = vmatprep.subr.bf16.mxu0 0
    %6133 = vmatpush1.bf16.msra.mxu0 %v6088
    %6134 = vmatprep.subr.bf16.mxu0 0
    %6135 = vmatpush1.bf16.msra.mxu0 %v6089
    %6136 = vmatprep.subr.bf16.mxu0 0
    %6137 = vmatpush1.bf16.msra.mxu0 %v6090
    %6138 = vmatprep.subr.bf16.mxu0 0
    %6139 = vmatpush1.bf16.msra.mxu0 %v6091
    %6140 = vmatprep.mubr.bf16.mxu0 %v5972
    %6141 = vmatmul.mubr.bf16.gmra.mrb[0].mxu0 %v5971
    %v6142 = vpop.f32.mrb[0].mxu0
    %v6143 = vadd.f32 %v6010, %v6142
    %v6144 = vpop.f32.mrb[0].mxu0
    %v6145 = vpop.f32.mrb[0].mxu0
    %v6146 = vpop.f32.mrb[0].mxu0
    %6147 = vdwg.mxu0
    %v6148 = vxor.u32 %v6143, 2147483648
    %v6149 = vmul.f32 %v6148, 1.442695
    %v6150 = vpow.pop %v6149
    %v6151 = vadd.f32 %v6150, 1.0
    %v6152 = vrcp.pop %v6151
    %v6153 = vmul.f32 1.0, %v6152
    %6154 = vst [vmem:[%s10] sm:$0xff] %v6153
    // Predicated region
    $region70: #{discriminator_forward.1} parent=1 // pred_check
      _
    $region71: #{discriminator_forward.1} parent=1 // pred_check_branch
      %6156 = sbr.rel (0) target = $region73
    $region72: #{discriminator_forward.1} parent=1 // pred_region
      _
    $region73: #{discriminator_forward.1} parent=1 // pred_fallthru
      _
    // Predicated region
    $region74: #{discriminator_forward.1} parent=1 // pred_check
      _
    $region75: #{discriminator_forward.1} parent=1 // pred_check_branch
      %6158 = sbr.rel (0) target = $region77
    $region76: #{discriminator_forward.1} parent=1 // pred_region
      _
    $region77: #{discriminator_forward.1} parent=1 // pred_fallthru
      _
    // Predicated region
    $region78: #{discriminator_forward.1} parent=1 // pred_check
      _
    $region79: #{discriminator_forward.1} parent=1 // pred_check_branch
      %6160 = sbr.rel (0) target = $region81
    $region80: #{discriminator_forward.1} parent=1 // pred_region
      _
    $region81: #{discriminator_forward.1} parent=1 // pred_fallthru
      _
    // Predicated region
    $region82: #{discriminator_forward.1} parent=1 // pred_check
      _
    $region83: #{discriminator_forward.1} parent=1 // pred_check_branch
      %6162 = sbr.rel (0) target = $region85
    $region84: #{discriminator_forward.1} parent=1 // pred_region
      _
    $region85: #{discriminator_forward.1} parent=1 // pred_fallthru
      _
    %6163 = vsyncpa [#allocation3], 1
    %6164 = vsyncpa [#allocation5], 1
    %6165 = vsyncpa [#allocation8], 1
    %6166 = vsyncpa [#allocation11], 1
    %6167 = vsyncpa [#allocation14], 1

</llo_original>
